<compile_context>
chip_gen: v7x
topology: tpu7x:2x2x1
jax: 0.10.0
libtpu: 0.0.40
codegen_flags: <defaults>
</compile_context>

<pallas_src>
import functools

import jax
import jax.numpy as jnp
from jax.experimental import pallas as pl
from jax.experimental.pallas import tpu as pltpu

LANE = 128
SUBLANE = 8


def _round_up(x, m):
    return ((x + m - 1) // m) * m


# --------------------- fused LSTM-stack + FC kernel (single call) ---------------------
def _make_fused_rnn_kernel(n_layers, T, B_pad, HP):
    """HP = lane-padded hidden width (multiple of 128); gate pitch == HP."""
    n_in = 3 + 3 * (n_layers - 1) + 2   # lengths, x0proj, whh0, (wih,whh,b)*(L-1), fcw, fcb

    def kernel(*refs):
        len_ref = refs[0]                         # (B_pad, 1) int32
        x0p_ref = refs[1]                         # (T*B_pad, 4*HP) bf16: layer-0 x-proj (+bias)
        whh0_ref = refs[2]                        # (HP, 4*HP) bf16
        upper_refs = [(refs[3 + 3 * l], refs[4 + 3 * l], refs[5 + 3 * l])
                      for l in range(n_layers - 1)]   # (w_ih, w_hh, b) for layers >= 1
        fcw_ref = refs[n_in - 2]                  # (HP, C_pad) bf16
        fcb_ref = refs[n_in - 1]                  # (1, C_pad) f32
        o_ref = refs[n_in]                        # (B_pad, C_pad) f32
        scratch = refs[n_in + 1:]
        if n_layers > 1:
            xproj_scr, hseq_scr, h_scr, c_scr = scratch
        else:
            h_scr, c_scr = scratch
            xproj_scr = hseq_scr = None

        lengths = len_ref[...]                    # (B_pad, 1) int32, loaded once

        def run_layer(proj_ref, whh_ref, store_hseq):
            h_scr[...] = jnp.zeros_like(h_scr)
            c_scr[...] = jnp.zeros_like(c_scr)
            whh = whh_ref[...]                    # bf16 recurrent weight, hoisted out of T loop

            def step(t, row):
                g_in = proj_ref[pl.ds(row, B_pad), :].astype(jnp.float32)   # (B_pad, 4*HP)
                h = h_scr[...]
                c = c_scr[...]
                gates = g_in + jnp.dot(h.astype(jnp.bfloat16), whh,
                                       preferred_element_type=jnp.float32)
                # Gate pitch == HP (multiple of 128): all slices are lane-tile aligned.
                # PyTorch gate order: i, f, g, o.
                i_g = jax.nn.sigmoid(gates[:, 0 * HP:1 * HP])
                f_g = jax.nn.sigmoid(gates[:, 1 * HP:2 * HP])
                g_g = jnp.tanh(gates[:, 2 * HP:3 * HP])
                o_g = jax.nn.sigmoid(gates[:, 3 * HP:4 * HP])
                c_new = f_g * c + i_g * g_g
                h_new = o_g * jnp.tanh(c_new)
                # packed-sequence semantics: do not advance state past lengths[b];
                # single f32 mask broadcast reused for both state updates.
                keep = jnp.broadcast_to((t < lengths).astype(jnp.float32), (B_pad, HP))
                c_upd = c + keep * (c_new - c)
                h_upd = h + keep * (h_new - h)
                c_scr[...] = c_upd
                h_scr[...] = h_upd
                if store_hseq:                    # only when a next layer exists
                    hseq_scr[pl.ds(row, B_pad), :] = h_upd.astype(jnp.bfloat16)

            if T <= 16:
                for t in range(T):                # short sequences: full static unroll
                    step(t, t * B_pad)
            else:
                def body(t, carry):               # long sequences: bounded live ranges
                    step(t, pl.multiple_of(t * B_pad, B_pad))
                    return carry
                jax.lax.fori_loop(0, T, body, 0, unroll=4)

        # ---- layer 0: input projection hoisted to the wrapper (one big matmul) ----
        run_layer(x0p_ref, whh0_ref, store_hseq=(n_layers > 1))

        # ---- layers 1..L-1: hoist their input projection as one big MXU matmul ----
        for l, (wih_ref, whh_ref, b_ref) in enumerate(upper_refs):
            xproj_scr[...] = (jnp.dot(hseq_scr[...], wih_ref[...],
                                      preferred_element_type=jnp.float32)
                              + b_ref[...]).astype(jnp.bfloat16)
            run_layer(xproj_scr, whh_ref, store_hseq=(l < n_layers - 2))

        # ---- final Linear fused into the same kernel (h_final = h of last layer) ----
        o_ref[...] = (jnp.dot(h_scr[...].astype(jnp.bfloat16), fcw_ref[...],
                              preferred_element_type=jnp.float32) + fcb_ref[...])

    return kernel


# ------------------------------- parameter packing ---------------------------------
def _scatter_gate_cols(w, H, HP):
    """(rows, 4H) -> (rows, 4*HP); gate k columns placed at [k*HP : k*HP+H]."""
    rows = w.shape[0]
    out = jnp.zeros((rows, 4 * HP), w.dtype)
    for k in range(4):
        out = out.at[:, k * HP:k * HP + H].set(w[:, k * H:(k + 1) * H])
    return out


def pack_params(params):
    """One-time re-layout of the PyTorch-style parameters for the fused kernel."""
    H = params["lstm_layers"][0]["w_hh_t"].shape[0]
    C = params["fc_w_t"].shape[1]
    HP = _round_up(H, LANE)
    CP = _round_up(C, LANE)

    layers = []
    for li, lp in enumerate(params["lstm_layers"]):
        whh = jnp.zeros((HP, 4 * HP), jnp.float32)
        whh = whh.at[:H, :].set(_scatter_gate_cols(lp["w_hh_t"], H, HP))
        bias = _scatter_gate_cols(lp["b"], H, HP).astype(jnp.float32)      # (1, 4*HP)
        if li == 0:
            # applied in the wrapper: keep (D, 4*HP) f32
            wih = _scatter_gate_cols(lp["w_ih_t"], H, HP)
        else:
            wih = jnp.zeros((HP, 4 * HP), jnp.float32)
            wih = wih.at[:H, :].set(_scatter_gate_cols(lp["w_ih_t"], H, HP))
            wih = wih.astype(jnp.bfloat16)
        layers.append({"w_ih": wih, "w_hh": whh.astype(jnp.bfloat16), "b": bias})

    fcw = jnp.zeros((HP, CP), jnp.float32).at[:H, :C].set(params["fc_w_t"])
    fcb = jnp.zeros((1, CP), jnp.float32).at[:, :C].set(params["fc_b"])
    return {"embedding": params["embedding"],
            "layers": layers,
            "fc_w": fcw.astype(jnp.bfloat16),
            "fc_b": fcb}


# ---------------------------------- full forward ----------------------------------
@functools.partial(jax.jit, static_argnames=("class_num",))
def rnn_forward(packed, tokens, lengths, *, class_num):
    B, T = tokens.shape
    emb_tbl = packed["embedding"]
    D = emb_tbl.shape[1]
    layers = packed["layers"]
    n_layers = len(layers)
    HP = layers[0]["w_hh"].shape[0]
    GW = 4 * HP
    CP = packed["fc_w"].shape[1]
    B_pad = _round_up(B, SUBLANE)

    # Time-major embedding gather, batch zero-padded to a sublane multiple
    # (padded rows get length 0 -> state stays 0).
    x_tm = emb_tbl[tokens.T].astype(jnp.float32)               # (T, B, D)
    x_tm = jnp.pad(x_tm, ((0, 0), (0, B_pad - B), (0, 0)))     # (T, B_pad, D)

    # Hoisted layer-0 input projection (+ combined bias) as one large matmul, stored bf16.
    x0p = (x_tm.reshape(T * B_pad, D) @ layers[0]["w_ih"]
           + layers[0]["b"]).astype(jnp.bfloat16)              # (T*B_pad, GW)

    lengths_p = jnp.zeros((B_pad, 1), jnp.int32).at[:B, 0].set(lengths.astype(jnp.int32))

    inputs = [lengths_p, x0p, layers[0]["w_hh"]]
    for lp in layers[1:]:
        inputs += [lp["w_ih"], lp["w_hh"], lp["b"]]
    inputs += [packed["fc_w"], packed["fc_b"]]

    scratch = []
    if n_layers > 1:
        scratch += [pltpu.VMEM((T * B_pad, GW), jnp.bfloat16),   # x-proj of layers >= 1
                    pltpu.VMEM((T * B_pad, HP), jnp.bfloat16)]   # inter-layer hidden sequence
    scratch += [pltpu.VMEM((B_pad, HP), jnp.float32),            # h state
                pltpu.VMEM((B_pad, HP), jnp.float32)]            # c state

    grid_spec = pltpu.PrefetchScalarGridSpec(
        num_scalar_prefetch=0,
        grid=(1,),                               # single launch; recurrence is in-kernel
        in_specs=[pl.BlockSpec(x.shape, lambda i: (0, 0)) for x in inputs],
        out_specs=pl.BlockSpec((B_pad, CP), lambda i: (0, 0)),
        scratch_shapes=scratch,
    )

    logits_p = pl.pallas_call(
        _make_fused_rnn_kernel(n_layers, T, B_pad, HP),
        out_shape=jax.ShapeDtypeStruct((B_pad, CP), jnp.float32),
        grid_spec=grid_spec,
        compiler_params=pltpu.CompilerParams(dimension_semantics=("arbitrary",)),
    )(*inputs)
    return logits_p[:B, :class_num]


# --------------------------- pure-JAX reference (check) -----------------------
def rnn_forward_ref(params, tokens, lengths):
    emb = params["embedding"][tokens]
    x_seq = jnp.transpose(emb, (1, 0, 2)).astype(jnp.float32)
    T, B, _ = x_seq.shape
    mask = (jnp.arange(T)[:, None] < lengths[None, :]).astype(jnp.float32)[:, :, None]

    layer_in = x_seq
    h_final = None
    for lp in params["lstm_layers"]:
        H = lp["w_hh_t"].shape[0]

        def step(carry, inp, lp=lp, H=H):
            h, c = carry
            x_t, m = inp
            g = x_t @ lp["w_ih_t"] + h @ lp["w_hh_t"] + lp["b"]
            i = jax.nn.sigmoid(g[:, :H]); f = jax.nn.sigmoid(g[:, H:2 * H])
            gg = jnp.tanh(g[:, 2 * H:3 * H]); o = jax.nn.sigmoid(g[:, 3 * H:])
            c_new = f * c + i * gg
            h_new = o * jnp.tanh(c_new)
            keep = m > 0.0
            c = jnp.where(keep, c_new, c)
            h = jnp.where(keep, h_new, h)
            return (h, c), h

        init = (jnp.zeros((B, H), jnp.float32), jnp.zeros((B, H), jnp.float32))
        (h_final, _), layer_in = jax.lax.scan(step, init, (layer_in, mask))
    return h_final @ params["fc_w_t"] + params["fc_b"]


# ----------------------------------- main --------------------------------------
if __name__ == "__main__":
    # config (small, matches what the module's __init__ implies)
    vocabulary_size = 50
    vector_dim = 16
    hidden_dim = 32
    class_num = 4
    rnn_layers = 2
    B, T = 4, 8

    key = jax.random.PRNGKey(0)
    keys = jax.random.split(key, 16)

    params = {
        "embedding": 0.1 * jax.random.normal(keys[0], (vocabulary_size, vector_dim),
                                             jnp.float32),
        "lstm_layers": [],
        # fc stored pre-transposed: (H, C)
        "fc_w_t": 0.1 * jax.random.normal(keys[1], (hidden_dim, class_num), jnp.float32),
        "fc_b": 0.1 * jax.random.normal(keys[2], (1, class_num), jnp.float32),
    }
    for l in range(rnn_layers):
        din = vector_dim if l == 0 else hidden_dim
        k0, k1, k2, k3 = jax.random.split(keys[3 + l], 4)
        w_ih = 0.1 * jax.random.normal(k0, (4 * hidden_dim, din), jnp.float32)
        w_hh = 0.1 * jax.random.normal(k1, (4 * hidden_dim, hidden_dim), jnp.float32)
        b_ih = 0.1 * jax.random.normal(k2, (4 * hidden_dim,), jnp.float32)
        b_hh = 0.1 * jax.random.normal(k3, (4 * hidden_dim,), jnp.float32)
        params["lstm_layers"].append({
            "w_ih_t": w_ih.T,                       # (din, 4H)
            "w_hh_t": w_hh.T,                       # (H, 4H)
            "b": (b_ih + b_hh)[None, :],            # (1, 4H)
        })

    tokens = jax.random.randint(keys[10], (B, T), 0, vocabulary_size, jnp.int32)
    lengths = jnp.array([8, 6, 5, 3], dtype=jnp.int32)   # sorted descending

    packed = pack_params(params)                          # one-time re-layout
    logits = rnn_forward(packed, tokens, lengths, class_num=class_num)
    jax.block_until_ready(logits)

    ref = rnn_forward_ref(params, tokens, lengths)
    assert logits.shape == (B, class_num)
    # bf16 matmul operands + bf16 sequence buffers -> widened tolerance vs f32 reference.
    assert jnp.allclose(logits, ref, atol=2e-2, rtol=2e-2), (logits, ref)

    print("KERNEL_OK")
</pallas_src>

<mosaic_0001>
module attributes {stable_mosaic.version = 11 : i64} {
  func.func @kernel(%arg0: i32, %arg1: memref<8x1xi32, #tpu.memory_space<vmem>>, %arg2: memref<64x512xbf16, #tpu.memory_space<vmem>>, %arg3: memref<128x512xbf16, #tpu.memory_space<vmem>>, %arg4: memref<128x512xbf16, #tpu.memory_space<vmem>>, %arg5: memref<128x512xbf16, #tpu.memory_space<vmem>>, %arg6: memref<1x512xf32, #tpu.memory_space<vmem>>, %arg7: memref<128x128xbf16, #tpu.memory_space<vmem>>, %arg8: memref<1x128xf32, #tpu.memory_space<vmem>>, %arg9: memref<8x128xf32, #tpu.memory_space<vmem>>, %arg10: memref<64x512xbf16, #tpu.memory_space<vmem>>, %arg11: memref<64x128xbf16, #tpu.memory_space<vmem>>, %arg12: memref<8x128xf32, #tpu.memory_space<vmem>>, %arg13: memref<8x128xf32, #tpu.memory_space<vmem>>) attributes {dimension_semantics = [#tpu.dimension_semantics<arbitrary>], iteration_bounds = array<i64: 1>, scalar_prefetch = 0 : i64, scratch_operands = 4 : i64, tpu.core_type = #tpu.core_type<tc>, window_params = [{pipeline_mode = #tpu.pipeline_mode<synchronous>, transform_indices = @transform_0, window_bounds = array<i64: 8, 1>}, {pipeline_mode = #tpu.pipeline_mode<synchronous>, transform_indices = @transform_1, window_bounds = array<i64: 64, 512>}, {pipeline_mode = #tpu.pipeline_mode<synchronous>, transform_indices = @transform_2, window_bounds = array<i64: 128, 512>}, {pipeline_mode = #tpu.pipeline_mode<synchronous>, transform_indices = @transform_3, window_bounds = array<i64: 128, 512>}, {pipeline_mode = #tpu.pipeline_mode<synchronous>, transform_indices = @transform_4, window_bounds = array<i64: 128, 512>}, {pipeline_mode = #tpu.pipeline_mode<synchronous>, transform_indices = @transform_5, window_bounds = array<i64: 1, 512>}, {pipeline_mode = #tpu.pipeline_mode<synchronous>, transform_indices = @transform_6, window_bounds = array<i64: 128, 128>}, {pipeline_mode = #tpu.pipeline_mode<synchronous>, transform_indices = @transform_7, window_bounds = array<i64: 1, 128>}, {pipeline_mode = #tpu.pipeline_mode<synchronous>, transform_indices = @transform_8, window_bounds = array<i64: 8, 128>}]} {
    %c0 = arith.constant 0 : index
    %c0_0 = arith.constant 0 : index
    %0 = vector.load %arg1[%c0, %c0_0] : memref<8x1xi32, #tpu.memory_space<vmem>>, vector<8x1xi32>
    %cst = arith.constant 0.000000e+00 : f32
    %1 = vector.broadcast %cst : f32 to vector<8x128xf32>
    %c0_1 = arith.constant 0 : index
    %c0_2 = arith.constant 0 : index
    %2 = vector.load %arg12[%c0_1, %c0_2] : memref<8x128xf32, #tpu.memory_space<vmem>>, vector<8x128xf32>
    tpu.vector_store %arg12[%c0_1, %c0_2], %1 {strides = array<i32>} : memref<8x128xf32, #tpu.memory_space<vmem>>, vector<8x128xf32>,
    %cst_3 = arith.constant 0.000000e+00 : f32
    %3 = vector.broadcast %cst_3 : f32 to vector<8x128xf32>
    %c0_4 = arith.constant 0 : index
    %c0_5 = arith.constant 0 : index
    %4 = vector.load %arg13[%c0_4, %c0_5] : memref<8x128xf32, #tpu.memory_space<vmem>>, vector<8x128xf32>
    tpu.vector_store %arg13[%c0_4, %c0_5], %3 {strides = array<i32>} : memref<8x128xf32, #tpu.memory_space<vmem>>, vector<8x128xf32>,
    %c0_6 = arith.constant 0 : index
    %c0_7 = arith.constant 0 : index
    %5 = vector.load %arg3[%c0_6, %c0_7] : memref<128x512xbf16, #tpu.memory_space<vmem>>, vector<128x512xbf16>
    %c0_8 = arith.constant 0 : index
    %c0_9 = arith.constant 0 : index
    %6 = vector.load %arg2[%c0_8, %c0_9] : memref<64x512xbf16, #tpu.memory_space<vmem>>, vector<8x512xbf16>
    %7 = arith.extf %6 : vector<8x512xbf16> to vector<8x512xf32>
    %c0_10 = arith.constant 0 : index
    %c0_11 = arith.constant 0 : index
    %8 = vector.load %arg12[%c0_10, %c0_11] : memref<8x128xf32, #tpu.memory_space<vmem>>, vector<8x128xf32>
    %c0_12 = arith.constant 0 : index
    %c0_13 = arith.constant 0 : index
    %9 = vector.load %arg13[%c0_12, %c0_13] : memref<8x128xf32, #tpu.memory_space<vmem>>, vector<8x128xf32>
    %10 = arith.truncf %8 : vector<8x128xf32> to vector<8x128xbf16>
    %cst_14 = arith.constant dense<0.000000e+00> : vector<8x512xf32>
    %11 = tpu.matmul %10, %5, %cst_14 {dimension_numbers = #tpu.dot_dimension_numbers<[1], [0], [0], [1], [0, 0, 1, 1], [], []>} : vector<8x128xbf16>, vector<128x512xbf16>, vector<8x512xf32> -> vector<8x512xf32>
    %12 = arith.addf %7, %11 : vector<8x512xf32>
    %13 = vector.extract_strided_slice %12 {offsets = [0, 0], sizes = [8, 128], strides = [1, 1]} : vector<8x512xf32> to vector<8x128xf32>
    %14 = arith.negf %13 : vector<8x128xf32>
    %15 = math.exp %14 : vector<8x128xf32>
    %cst_15 = arith.constant 1.000000e+00 : f32
    %16 = vector.broadcast %cst_15 : f32 to vector<8x128xf32>
    %17 = arith.addf %16, %15 : vector<8x128xf32>
    %18 = arith.divf %16, %17 : vector<8x128xf32>
    %19 = vector.extract_strided_slice %12 {offsets = [0, 128], sizes = [8, 128], strides = [1, 1]} : vector<8x512xf32> to vector<8x128xf32>
    %20 = arith.negf %19 : vector<8x128xf32>
    %21 = math.exp %20 : vector<8x128xf32>
    %cst_16 = arith.constant 1.000000e+00 : f32
    %22 = vector.broadcast %cst_16 : f32 to vector<8x128xf32>
    %23 = arith.addf %22, %21 : vector<8x128xf32>
    %24 = arith.divf %22, %23 : vector<8x128xf32>
    %25 = vector.extract_strided_slice %12 {offsets = [0, 256], sizes = [8, 128], strides = [1, 1]} : vector<8x512xf32> to vector<8x128xf32>
    %26 = math.tanh %25 : vector<8x128xf32>
    %27 = vector.extract_strided_slice %12 {offsets = [0, 384], sizes = [8, 128], strides = [1, 1]} : vector<8x512xf32> to vector<8x128xf32>
    %28 = arith.negf %27 : vector<8x128xf32>
    %29 = math.exp %28 : vector<8x128xf32>
    %cst_17 = arith.constant 1.000000e+00 : f32
    %30 = vector.broadcast %cst_17 : f32 to vector<8x128xf32>
    %31 = arith.addf %30, %29 : vector<8x128xf32>
    %32 = arith.divf %30, %31 : vector<8x128xf32>
    %33 = arith.mulf %24, %9 : vector<8x128xf32>
    %34 = arith.mulf %18, %26 : vector<8x128xf32>
    %35 = arith.addf %33, %34 : vector<8x128xf32>
    %36 = math.tanh %35 : vector<8x128xf32>
    %37 = arith.mulf %32, %36 : vector<8x128xf32>
    %c0_i32 = arith.constant 0 : i32
    %38 = vector.broadcast %c0_i32 : i32 to vector<8x1xi32>
    %39 = arith.cmpi sgt, %0, %38 : vector<8x1xi32>
    %40 = arith.extui %39 : vector<8x1xi1> to vector<8x1xi32>
    %41 = arith.sitofp %40 : vector<8x1xi32> to vector<8x1xf32>
    %42 = vector.shape_cast %41 : vector<8x1xf32> to vector<8x1xf32>
    %43 = vector.broadcast %42 : vector<8x1xf32> to vector<8x128xf32>
    %44 = arith.subf %35, %9 : vector<8x128xf32>
    %45 = arith.mulf %43, %44 : vector<8x128xf32>
    %46 = arith.addf %9, %45 : vector<8x128xf32>
    %47 = arith.subf %37, %8 : vector<8x128xf32>
    %48 = arith.mulf %43, %47 : vector<8x128xf32>
    %49 = arith.addf %8, %48 : vector<8x128xf32>
    %c0_18 = arith.constant 0 : index
    %c0_19 = arith.constant 0 : index
    %50 = vector.load %arg13[%c0_18, %c0_19] : memref<8x128xf32, #tpu.memory_space<vmem>>, vector<8x128xf32>
    tpu.vector_store %arg13[%c0_18, %c0_19], %46 {strides = array<i32>} : memref<8x128xf32, #tpu.memory_space<vmem>>, vector<8x128xf32>,
    %c0_20 = arith.constant 0 : index
    %c0_21 = arith.constant 0 : index
    %51 = vector.load %arg12[%c0_20, %c0_21] : memref<8x128xf32, #tpu.memory_space<vmem>>, vector<8x128xf32>
    tpu.vector_store %arg12[%c0_20, %c0_21], %49 {strides = array<i32>} : memref<8x128xf32, #tpu.memory_space<vmem>>, vector<8x128xf32>,
    %52 = arith.truncf %49 : vector<8x128xf32> to vector<8x128xbf16>
    %c0_22 = arith.constant 0 : index
    %c0_23 = arith.constant 0 : index
    %53 = vector.load %arg11[%c0_22, %c0_23] : memref<64x128xbf16, #tpu.memory_space<vmem>>, vector<8x128xbf16>
    tpu.vector_store %arg11[%c0_22, %c0_23], %52 {strides = array<i32>} : memref<64x128xbf16, #tpu.memory_space<vmem>>, vector<8x128xbf16>,
    %c8 = arith.constant 8 : index
    %c0_24 = arith.constant 0 : index
    %54 = vector.load %arg2[%c8, %c0_24] : memref<64x512xbf16, #tpu.memory_space<vmem>>, vector<8x512xbf16>
    %55 = arith.extf %54 : vector<8x512xbf16> to vector<8x512xf32>
    %c0_25 = arith.constant 0 : index
    %c0_26 = arith.constant 0 : index
    %56 = vector.load %arg12[%c0_25, %c0_26] : memref<8x128xf32, #tpu.memory_space<vmem>>, vector<8x128xf32>
    %c0_27 = arith.constant 0 : index
    %c0_28 = arith.constant 0 : index
    %57 = vector.load %arg13[%c0_27, %c0_28] : memref<8x128xf32, #tpu.memory_space<vmem>>, vector<8x128xf32>
    %58 = arith.truncf %56 : vector<8x128xf32> to vector<8x128xbf16>
    %cst_29 = arith.constant dense<0.000000e+00> : vector<8x512xf32>
    %59 = tpu.matmul %58, %5, %cst_29 {dimension_numbers = #tpu.dot_dimension_numbers<[1], [0], [0], [1], [0, 0, 1, 1], [], []>} : vector<8x128xbf16>, vector<128x512xbf16>, vector<8x512xf32> -> vector<8x512xf32>
    %60 = arith.addf %55, %59 : vector<8x512xf32>
    %61 = vector.extract_strided_slice %60 {offsets = [0, 0], sizes = [8, 128], strides = [1, 1]} : vector<8x512xf32> to vector<8x128xf32>
    %62 = arith.negf %61 : vector<8x128xf32>
    %63 = math.exp %62 : vector<8x128xf32>
    %cst_30 = arith.constant 1.000000e+00 : f32
    %64 = vector.broadcast %cst_30 : f32 to vector<8x128xf32>
    %65 = arith.addf %64, %63 : vector<8x128xf32>
    %66 = arith.divf %64, %65 : vector<8x128xf32>
    %67 = vector.extract_strided_slice %60 {offsets = [0, 128], sizes = [8, 128], strides = [1, 1]} : vector<8x512xf32> to vector<8x128xf32>
    %68 = arith.negf %67 : vector<8x128xf32>
    %69 = math.exp %68 : vector<8x128xf32>
    %cst_31 = arith.constant 1.000000e+00 : f32
    %70 = vector.broadcast %cst_31 : f32 to vector<8x128xf32>
    %71 = arith.addf %70, %69 : vector<8x128xf32>
    %72 = arith.divf %70, %71 : vector<8x128xf32>
    %73 = vector.extract_strided_slice %60 {offsets = [0, 256], sizes = [8, 128], strides = [1, 1]} : vector<8x512xf32> to vector<8x128xf32>
    %74 = math.tanh %73 : vector<8x128xf32>
    %75 = vector.extract_strided_slice %60 {offsets = [0, 384], sizes = [8, 128], strides = [1, 1]} : vector<8x512xf32> to vector<8x128xf32>
    %76 = arith.negf %75 : vector<8x128xf32>
    %77 = math.exp %76 : vector<8x128xf32>
    %cst_32 = arith.constant 1.000000e+00 : f32
    %78 = vector.broadcast %cst_32 : f32 to vector<8x128xf32>
    %79 = arith.addf %78, %77 : vector<8x128xf32>
    %80 = arith.divf %78, %79 : vector<8x128xf32>
    %81 = arith.mulf %72, %57 : vector<8x128xf32>
    %82 = arith.mulf %66, %74 : vector<8x128xf32>
    %83 = arith.addf %81, %82 : vector<8x128xf32>
    %84 = math.tanh %83 : vector<8x128xf32>
    %85 = arith.mulf %80, %84 : vector<8x128xf32>
    %c1_i32 = arith.constant 1 : i32
    %86 = vector.broadcast %c1_i32 : i32 to vector<8x1xi32>
    %87 = arith.cmpi sgt, %0, %86 : vector<8x1xi32>
    %88 = arith.extui %87 : vector<8x1xi1> to vector<8x1xi32>
    %89 = arith.sitofp %88 : vector<8x1xi32> to vector<8x1xf32>
    %90 = vector.shape_cast %89 : vector<8x1xf32> to vector<8x1xf32>
    %91 = vector.broadcast %90 : vector<8x1xf32> to vector<8x128xf32>
    %92 = arith.subf %83, %57 : vector<8x128xf32>
    %93 = arith.mulf %91, %92 : vector<8x128xf32>
    %94 = arith.addf %57, %93 : vector<8x128xf32>
    %95 = arith.subf %85, %56 : vector<8x128xf32>
    %96 = arith.mulf %91, %95 : vector<8x128xf32>
    %97 = arith.addf %56, %96 : vector<8x128xf32>
    %c0_33 = arith.constant 0 : index
    %c0_34 = arith.constant 0 : index
    %98 = vector.load %arg13[%c0_33, %c0_34] : memref<8x128xf32, #tpu.memory_space<vmem>>, vector<8x128xf32>
    tpu.vector_store %arg13[%c0_33, %c0_34], %94 {strides = array<i32>} : memref<8x128xf32, #tpu.memory_space<vmem>>, vector<8x128xf32>,
    %c0_35 = arith.constant 0 : index
    %c0_36 = arith.constant 0 : index
    %99 = vector.load %arg12[%c0_35, %c0_36] : memref<8x128xf32, #tpu.memory_space<vmem>>, vector<8x128xf32>
    tpu.vector_store %arg12[%c0_35, %c0_36], %97 {strides = array<i32>} : memref<8x128xf32, #tpu.memory_space<vmem>>, vector<8x128xf32>,
    %100 = arith.truncf %97 : vector<8x128xf32> to vector<8x128xbf16>
    %c8_37 = arith.constant 8 : index
    %c0_38 = arith.constant 0 : index
    %101 = vector.load %arg11[%c8_37, %c0_38] : memref<64x128xbf16, #tpu.memory_space<vmem>>, vector<8x128xbf16>
    tpu.vector_store %arg11[%c8_37, %c0_38], %100 {strides = array<i32>} : memref<64x128xbf16, #tpu.memory_space<vmem>>, vector<8x128xbf16>,
    %c16 = arith.constant 16 : index
    %c0_39 = arith.constant 0 : index
    %102 = vector.load %arg2[%c16, %c0_39] : memref<64x512xbf16, #tpu.memory_space<vmem>>, vector<8x512xbf16>
    %103 = arith.extf %102 : vector<8x512xbf16> to vector<8x512xf32>
    %c0_40 = arith.constant 0 : index
    %c0_41 = arith.constant 0 : index
    %104 = vector.load %arg12[%c0_40, %c0_41] : memref<8x128xf32, #tpu.memory_space<vmem>>, vector<8x128xf32>
    %c0_42 = arith.constant 0 : index
    %c0_43 = arith.constant 0 : index
    %105 = vector.load %arg13[%c0_42, %c0_43] : memref<8x128xf32, #tpu.memory_space<vmem>>, vector<8x128xf32>
    %106 = arith.truncf %104 : vector<8x128xf32> to vector<8x128xbf16>
    %cst_44 = arith.constant dense<0.000000e+00> : vector<8x512xf32>
    %107 = tpu.matmul %106, %5, %cst_44 {dimension_numbers = #tpu.dot_dimension_numbers<[1], [0], [0], [1], [0, 0, 1, 1], [], []>} : vector<8x128xbf16>, vector<128x512xbf16>, vector<8x512xf32> -> vector<8x512xf32>
    %108 = arith.addf %103, %107 : vector<8x512xf32>
    %109 = vector.extract_strided_slice %108 {offsets = [0, 0], sizes = [8, 128], strides = [1, 1]} : vector<8x512xf32> to vector<8x128xf32>
    %110 = arith.negf %109 : vector<8x128xf32>
    %111 = math.exp %110 : vector<8x128xf32>
    %cst_45 = arith.constant 1.000000e+00 : f32
    %112 = vector.broadcast %cst_45 : f32 to vector<8x128xf32>
    %113 = arith.addf %112, %111 : vector<8x128xf32>
    %114 = arith.divf %112, %113 : vector<8x128xf32>
    %115 = vector.extract_strided_slice %108 {offsets = [0, 128], sizes = [8, 128], strides = [1, 1]} : vector<8x512xf32> to vector<8x128xf32>
    %116 = arith.negf %115 : vector<8x128xf32>
    %117 = math.exp %116 : vector<8x128xf32>
    %cst_46 = arith.constant 1.000000e+00 : f32
    %118 = vector.broadcast %cst_46 : f32 to vector<8x128xf32>
    %119 = arith.addf %118, %117 : vector<8x128xf32>
    %120 = arith.divf %118, %119 : vector<8x128xf32>
    %121 = vector.extract_strided_slice %108 {offsets = [0, 256], sizes = [8, 128], strides = [1, 1]} : vector<8x512xf32> to vector<8x128xf32>
    %122 = math.tanh %121 : vector<8x128xf32>
    %123 = vector.extract_strided_slice %108 {offsets = [0, 384], sizes = [8, 128], strides = [1, 1]} : vector<8x512xf32> to vector<8x128xf32>
    %124 = arith.negf %123 : vector<8x128xf32>
    %125 = math.exp %124 : vector<8x128xf32>
    %cst_47 = arith.constant 1.000000e+00 : f32
    %126 = vector.broadcast %cst_47 : f32 to vector<8x128xf32>
    %127 = arith.addf %126, %125 : vector<8x128xf32>
    %128 = arith.divf %126, %127 : vector<8x128xf32>
    %129 = arith.mulf %120, %105 : vector<8x128xf32>
    %130 = arith.mulf %114, %122 : vector<8x128xf32>
    %131 = arith.addf %129, %130 : vector<8x128xf32>
    %132 = math.tanh %131 : vector<8x128xf32>
    %133 = arith.mulf %128, %132 : vector<8x128xf32>
    %c2_i32 = arith.constant 2 : i32
    %134 = vector.broadcast %c2_i32 : i32 to vector<8x1xi32>
    %135 = arith.cmpi sgt, %0, %134 : vector<8x1xi32>
    %136 = arith.extui %135 : vector<8x1xi1> to vector<8x1xi32>
    %137 = arith.sitofp %136 : vector<8x1xi32> to vector<8x1xf32>
    %138 = vector.shape_cast %137 : vector<8x1xf32> to vector<8x1xf32>
    %139 = vector.broadcast %138 : vector<8x1xf32> to vector<8x128xf32>
    %140 = arith.subf %131, %105 : vector<8x128xf32>
    %141 = arith.mulf %139, %140 : vector<8x128xf32>
    %142 = arith.addf %105, %141 : vector<8x128xf32>
    %143 = arith.subf %133, %104 : vector<8x128xf32>
    %144 = arith.mulf %139, %143 : vector<8x128xf32>
    %145 = arith.addf %104, %144 : vector<8x128xf32>
    %c0_48 = arith.constant 0 : index
    %c0_49 = arith.constant 0 : index
    %146 = vector.load %arg13[%c0_48, %c0_49] : memref<8x128xf32, #tpu.memory_space<vmem>>, vector<8x128xf32>
    tpu.vector_store %arg13[%c0_48, %c0_49], %142 {strides = array<i32>} : memref<8x128xf32, #tpu.memory_space<vmem>>, vector<8x128xf32>,
    %c0_50 = arith.constant 0 : index
    %c0_51 = arith.constant 0 : index
    %147 = vector.load %arg12[%c0_50, %c0_51] : memref<8x128xf32, #tpu.memory_space<vmem>>, vector<8x128xf32>
    tpu.vector_store %arg12[%c0_50, %c0_51], %145 {strides = array<i32>} : memref<8x128xf32, #tpu.memory_space<vmem>>, vector<8x128xf32>,
    %148 = arith.truncf %145 : vector<8x128xf32> to vector<8x128xbf16>
    %c16_52 = arith.constant 16 : index
    %c0_53 = arith.constant 0 : index
    %149 = vector.load %arg11[%c16_52, %c0_53] : memref<64x128xbf16, #tpu.memory_space<vmem>>, vector<8x128xbf16>
    tpu.vector_store %arg11[%c16_52, %c0_53], %148 {strides = array<i32>} : memref<64x128xbf16, #tpu.memory_space<vmem>>, vector<8x128xbf16>,
    %c24 = arith.constant 24 : index
    %c0_54 = arith.constant 0 : index
    %150 = vector.load %arg2[%c24, %c0_54] : memref<64x512xbf16, #tpu.memory_space<vmem>>, vector<8x512xbf16>
    %151 = arith.extf %150 : vector<8x512xbf16> to vector<8x512xf32>
    %c0_55 = arith.constant 0 : index
    %c0_56 = arith.constant 0 : index
    %152 = vector.load %arg12[%c0_55, %c0_56] : memref<8x128xf32, #tpu.memory_space<vmem>>, vector<8x128xf32>
    %c0_57 = arith.constant 0 : index
    %c0_58 = arith.constant 0 : index
    %153 = vector.load %arg13[%c0_57, %c0_58] : memref<8x128xf32, #tpu.memory_space<vmem>>, vector<8x128xf32>
    %154 = arith.truncf %152 : vector<8x128xf32> to vector<8x128xbf16>
    %cst_59 = arith.constant dense<0.000000e+00> : vector<8x512xf32>
    %155 = tpu.matmul %154, %5, %cst_59 {dimension_numbers = #tpu.dot_dimension_numbers<[1], [0], [0], [1], [0, 0, 1, 1], [], []>} : vector<8x128xbf16>, vector<128x512xbf16>, vector<8x512xf32> -> vector<8x512xf32>
    %156 = arith.addf %151, %155 : vector<8x512xf32>
    %157 = vector.extract_strided_slice %156 {offsets = [0, 0], sizes = [8, 128], strides = [1, 1]} : vector<8x512xf32> to vector<8x128xf32>
    %158 = arith.negf %157 : vector<8x128xf32>
    %159 = math.exp %158 : vector<8x128xf32>
    %cst_60 = arith.constant 1.000000e+00 : f32
    %160 = vector.broadcast %cst_60 : f32 to vector<8x128xf32>
    %161 = arith.addf %160, %159 : vector<8x128xf32>
    %162 = arith.divf %160, %161 : vector<8x128xf32>
    %163 = vector.extract_strided_slice %156 {offsets = [0, 128], sizes = [8, 128], strides = [1, 1]} : vector<8x512xf32> to vector<8x128xf32>
    %164 = arith.negf %163 : vector<8x128xf32>
    %165 = math.exp %164 : vector<8x128xf32>
    %cst_61 = arith.constant 1.000000e+00 : f32
    %166 = vector.broadcast %cst_61 : f32 to vector<8x128xf32>
    %167 = arith.addf %166, %165 : vector<8x128xf32>
    %168 = arith.divf %166, %167 : vector<8x128xf32>
    %169 = vector.extract_strided_slice %156 {offsets = [0, 256], sizes = [8, 128], strides = [1, 1]} : vector<8x512xf32> to vector<8x128xf32>
    %170 = math.tanh %169 : vector<8x128xf32>
    %171 = vector.extract_strided_slice %156 {offsets = [0, 384], sizes = [8, 128], strides = [1, 1]} : vector<8x512xf32> to vector<8x128xf32>
    %172 = arith.negf %171 : vector<8x128xf32>
    %173 = math.exp %172 : vector<8x128xf32>
    %cst_62 = arith.constant 1.000000e+00 : f32
    %174 = vector.broadcast %cst_62 : f32 to vector<8x128xf32>
    %175 = arith.addf %174, %173 : vector<8x128xf32>
    %176 = arith.divf %174, %175 : vector<8x128xf32>
    %177 = arith.mulf %168, %153 : vector<8x128xf32>
    %178 = arith.mulf %162, %170 : vector<8x128xf32>
    %179 = arith.addf %177, %178 : vector<8x128xf32>
    %180 = math.tanh %179 : vector<8x128xf32>
    %181 = arith.mulf %176, %180 : vector<8x128xf32>
    %c3_i32 = arith.constant 3 : i32
    %182 = vector.broadcast %c3_i32 : i32 to vector<8x1xi32>
    %183 = arith.cmpi sgt, %0, %182 : vector<8x1xi32>
    %184 = arith.extui %183 : vector<8x1xi1> to vector<8x1xi32>
    %185 = arith.sitofp %184 : vector<8x1xi32> to vector<8x1xf32>
    %186 = vector.shape_cast %185 : vector<8x1xf32> to vector<8x1xf32>
    %187 = vector.broadcast %186 : vector<8x1xf32> to vector<8x128xf32>
    %188 = arith.subf %179, %153 : vector<8x128xf32>
    %189 = arith.mulf %187, %188 : vector<8x128xf32>
    %190 = arith.addf %153, %189 : vector<8x128xf32>
    %191 = arith.subf %181, %152 : vector<8x128xf32>
    %192 = arith.mulf %187, %191 : vector<8x128xf32>
    %193 = arith.addf %152, %192 : vector<8x128xf32>
    %c0_63 = arith.constant 0 : index
    %c0_64 = arith.constant 0 : index
    %194 = vector.load %arg13[%c0_63, %c0_64] : memref<8x128xf32, #tpu.memory_space<vmem>>, vector<8x128xf32>
    tpu.vector_store %arg13[%c0_63, %c0_64], %190 {strides = array<i32>} : memref<8x128xf32, #tpu.memory_space<vmem>>, vector<8x128xf32>,
    %c0_65 = arith.constant 0 : index
    %c0_66 = arith.constant 0 : index
    %195 = vector.load %arg12[%c0_65, %c0_66] : memref<8x128xf32, #tpu.memory_space<vmem>>, vector<8x128xf32>
    tpu.vector_store %arg12[%c0_65, %c0_66], %193 {strides = array<i32>} : memref<8x128xf32, #tpu.memory_space<vmem>>, vector<8x128xf32>,
    %196 = arith.truncf %193 : vector<8x128xf32> to vector<8x128xbf16>
    %c24_67 = arith.constant 24 : index
    %c0_68 = arith.constant 0 : index
    %197 = vector.load %arg11[%c24_67, %c0_68] : memref<64x128xbf16, #tpu.memory_space<vmem>>, vector<8x128xbf16>
    tpu.vector_store %arg11[%c24_67, %c0_68], %196 {strides = array<i32>} : memref<64x128xbf16, #tpu.memory_space<vmem>>, vector<8x128xbf16>,
    %c32 = arith.constant 32 : index
    %c0_69 = arith.constant 0 : index
    %198 = vector.load %arg2[%c32, %c0_69] : memref<64x512xbf16, #tpu.memory_space<vmem>>, vector<8x512xbf16>
    %199 = arith.extf %198 : vector<8x512xbf16> to vector<8x512xf32>
    %c0_70 = arith.constant 0 : index
    %c0_71 = arith.constant 0 : index
    %200 = vector.load %arg12[%c0_70, %c0_71] : memref<8x128xf32, #tpu.memory_space<vmem>>, vector<8x128xf32>
    %c0_72 = arith.constant 0 : index
    %c0_73 = arith.constant 0 : index
    %201 = vector.load %arg13[%c0_72, %c0_73] : memref<8x128xf32, #tpu.memory_space<vmem>>, vector<8x128xf32>
    %202 = arith.truncf %200 : vector<8x128xf32> to vector<8x128xbf16>
    %cst_74 = arith.constant dense<0.000000e+00> : vector<8x512xf32>
    %203 = tpu.matmul %202, %5, %cst_74 {dimension_numbers = #tpu.dot_dimension_numbers<[1], [0], [0], [1], [0, 0, 1, 1], [], []>} : vector<8x128xbf16>, vector<128x512xbf16>, vector<8x512xf32> -> vector<8x512xf32>
    %204 = arith.addf %199, %203 : vector<8x512xf32>
    %205 = vector.extract_strided_slice %204 {offsets = [0, 0], sizes = [8, 128], strides = [1, 1]} : vector<8x512xf32> to vector<8x128xf32>
    %206 = arith.negf %205 : vector<8x128xf32>
    %207 = math.exp %206 : vector<8x128xf32>
    %cst_75 = arith.constant 1.000000e+00 : f32
    %208 = vector.broadcast %cst_75 : f32 to vector<8x128xf32>
    %209 = arith.addf %208, %207 : vector<8x128xf32>
    %210 = arith.divf %208, %209 : vector<8x128xf32>
    %211 = vector.extract_strided_slice %204 {offsets = [0, 128], sizes = [8, 128], strides = [1, 1]} : vector<8x512xf32> to vector<8x128xf32>
    %212 = arith.negf %211 : vector<8x128xf32>
    %213 = math.exp %212 : vector<8x128xf32>
    %cst_76 = arith.constant 1.000000e+00 : f32
    %214 = vector.broadcast %cst_76 : f32 to vector<8x128xf32>
    %215 = arith.addf %214, %213 : vector<8x128xf32>
    %216 = arith.divf %214, %215 : vector<8x128xf32>
    %217 = vector.extract_strided_slice %204 {offsets = [0, 256], sizes = [8, 128], strides = [1, 1]} : vector<8x512xf32> to vector<8x128xf32>
    %218 = math.tanh %217 : vector<8x128xf32>
    %219 = vector.extract_strided_slice %204 {offsets = [0, 384], sizes = [8, 128], strides = [1, 1]} : vector<8x512xf32> to vector<8x128xf32>
    %220 = arith.negf %219 : vector<8x128xf32>
    %221 = math.exp %220 : vector<8x128xf32>
    %cst_77 = arith.constant 1.000000e+00 : f32
    %222 = vector.broadcast %cst_77 : f32 to vector<8x128xf32>
    %223 = arith.addf %222, %221 : vector<8x128xf32>
    %224 = arith.divf %222, %223 : vector<8x128xf32>
    %225 = arith.mulf %216, %201 : vector<8x128xf32>
    %226 = arith.mulf %210, %218 : vector<8x128xf32>
    %227 = arith.addf %225, %226 : vector<8x128xf32>
    %228 = math.tanh %227 : vector<8x128xf32>
    %229 = arith.mulf %224, %228 : vector<8x128xf32>
    %c4_i32 = arith.constant 4 : i32
    %230 = vector.broadcast %c4_i32 : i32 to vector<8x1xi32>
    %231 = arith.cmpi sgt, %0, %230 : vector<8x1xi32>
    %232 = arith.extui %231 : vector<8x1xi1> to vector<8x1xi32>
    %233 = arith.sitofp %232 : vector<8x1xi32> to vector<8x1xf32>
    %234 = vector.shape_cast %233 : vector<8x1xf32> to vector<8x1xf32>
    %235 = vector.broadcast %234 : vector<8x1xf32> to vector<8x128xf32>
    %236 = arith.subf %227, %201 : vector<8x128xf32>
    %237 = arith.mulf %235, %236 : vector<8x128xf32>
    %238 = arith.addf %201, %237 : vector<8x128xf32>
    %239 = arith.subf %229, %200 : vector<8x128xf32>
    %240 = arith.mulf %235, %239 : vector<8x128xf32>
    %241 = arith.addf %200, %240 : vector<8x128xf32>
    %c0_78 = arith.constant 0 : index
    %c0_79 = arith.constant 0 : index
    %242 = vector.load %arg13[%c0_78, %c0_79] : memref<8x128xf32, #tpu.memory_space<vmem>>, vector<8x128xf32>
    tpu.vector_store %arg13[%c0_78, %c0_79], %238 {strides = array<i32>} : memref<8x128xf32, #tpu.memory_space<vmem>>, vector<8x128xf32>,
    %c0_80 = arith.constant 0 : index
    %c0_81 = arith.constant 0 : index
    %243 = vector.load %arg12[%c0_80, %c0_81] : memref<8x128xf32, #tpu.memory_space<vmem>>, vector<8x128xf32>
    tpu.vector_store %arg12[%c0_80, %c0_81], %241 {strides = array<i32>} : memref<8x128xf32, #tpu.memory_space<vmem>>, vector<8x128xf32>,
    %244 = arith.truncf %241 : vector<8x128xf32> to vector<8x128xbf16>
    %c32_82 = arith.constant 32 : index
    %c0_83 = arith.constant 0 : index
    %245 = vector.load %arg11[%c32_82, %c0_83] : memref<64x128xbf16, #tpu.memory_space<vmem>>, vector<8x128xbf16>
    tpu.vector_store %arg11[%c32_82, %c0_83], %244 {strides = array<i32>} : memref<64x128xbf16, #tpu.memory_space<vmem>>, vector<8x128xbf16>,
    %c40 = arith.constant 40 : index
    %c0_84 = arith.constant 0 : index
    %246 = vector.load %arg2[%c40, %c0_84] : memref<64x512xbf16, #tpu.memory_space<vmem>>, vector<8x512xbf16>
    %247 = arith.extf %246 : vector<8x512xbf16> to vector<8x512xf32>
    %c0_85 = arith.constant 0 : index
    %c0_86 = arith.constant 0 : index
    %248 = vector.load %arg12[%c0_85, %c0_86] : memref<8x128xf32, #tpu.memory_space<vmem>>, vector<8x128xf32>
    %c0_87 = arith.constant 0 : index
    %c0_88 = arith.constant 0 : index
    %249 = vector.load %arg13[%c0_87, %c0_88] : memref<8x128xf32, #tpu.memory_space<vmem>>, vector<8x128xf32>
    %250 = arith.truncf %248 : vector<8x128xf32> to vector<8x128xbf16>
    %cst_89 = arith.constant dense<0.000000e+00> : vector<8x512xf32>
    %251 = tpu.matmul %250, %5, %cst_89 {dimension_numbers = #tpu.dot_dimension_numbers<[1], [0], [0], [1], [0, 0, 1, 1], [], []>} : vector<8x128xbf16>, vector<128x512xbf16>, vector<8x512xf32> -> vector<8x512xf32>
    %252 = arith.addf %247, %251 : vector<8x512xf32>
    %253 = vector.extract_strided_slice %252 {offsets = [0, 0], sizes = [8, 128], strides = [1, 1]} : vector<8x512xf32> to vector<8x128xf32>
    %254 = arith.negf %253 : vector<8x128xf32>
    %255 = math.exp %254 : vector<8x128xf32>
    %cst_90 = arith.constant 1.000000e+00 : f32
    %256 = vector.broadcast %cst_90 : f32 to vector<8x128xf32>
    %257 = arith.addf %256, %255 : vector<8x128xf32>
    %258 = arith.divf %256, %257 : vector<8x128xf32>
    %259 = vector.extract_strided_slice %252 {offsets = [0, 128], sizes = [8, 128], strides = [1, 1]} : vector<8x512xf32> to vector<8x128xf32>
    %260 = arith.negf %259 : vector<8x128xf32>
    %261 = math.exp %260 : vector<8x128xf32>
    %cst_91 = arith.constant 1.000000e+00 : f32
    %262 = vector.broadcast %cst_91 : f32 to vector<8x128xf32>
    %263 = arith.addf %262, %261 : vector<8x128xf32>
    %264 = arith.divf %262, %263 : vector<8x128xf32>
    %265 = vector.extract_strided_slice %252 {offsets = [0, 256], sizes = [8, 128], strides = [1, 1]} : vector<8x512xf32> to vector<8x128xf32>
    %266 = math.tanh %265 : vector<8x128xf32>
    %267 = vector.extract_strided_slice %252 {offsets = [0, 384], sizes = [8, 128], strides = [1, 1]} : vector<8x512xf32> to vector<8x128xf32>
    %268 = arith.negf %267 : vector<8x128xf32>
    %269 = math.exp %268 : vector<8x128xf32>
    %cst_92 = arith.constant 1.000000e+00 : f32
    %270 = vector.broadcast %cst_92 : f32 to vector<8x128xf32>
    %271 = arith.addf %270, %269 : vector<8x128xf32>
    %272 = arith.divf %270, %271 : vector<8x128xf32>
    %273 = arith.mulf %264, %249 : vector<8x128xf32>
    %274 = arith.mulf %258, %266 : vector<8x128xf32>
    %275 = arith.addf %273, %274 : vector<8x128xf32>
    %276 = math.tanh %275 : vector<8x128xf32>
    %277 = arith.mulf %272, %276 : vector<8x128xf32>
    %c5_i32 = arith.constant 5 : i32
    %278 = vector.broadcast %c5_i32 : i32 to vector<8x1xi32>
    %279 = arith.cmpi sgt, %0, %278 : vector<8x1xi32>
    %280 = arith.extui %279 : vector<8x1xi1> to vector<8x1xi32>
    %281 = arith.sitofp %280 : vector<8x1xi32> to vector<8x1xf32>
    %282 = vector.shape_cast %281 : vector<8x1xf32> to vector<8x1xf32>
    %283 = vector.broadcast %282 : vector<8x1xf32> to vector<8x128xf32>
    %284 = arith.subf %275, %249 : vector<8x128xf32>
    %285 = arith.mulf %283, %284 : vector<8x128xf32>
    %286 = arith.addf %249, %285 : vector<8x128xf32>
    %287 = arith.subf %277, %248 : vector<8x128xf32>
    %288 = arith.mulf %283, %287 : vector<8x128xf32>
    %289 = arith.addf %248, %288 : vector<8x128xf32>
    %c0_93 = arith.constant 0 : index
    %c0_94 = arith.constant 0 : index
    %290 = vector.load %arg13[%c0_93, %c0_94] : memref<8x128xf32, #tpu.memory_space<vmem>>, vector<8x128xf32>
    tpu.vector_store %arg13[%c0_93, %c0_94], %286 {strides = array<i32>} : memref<8x128xf32, #tpu.memory_space<vmem>>, vector<8x128xf32>,
    %c0_95 = arith.constant 0 : index
    %c0_96 = arith.constant 0 : index
    %291 = vector.load %arg12[%c0_95, %c0_96] : memref<8x128xf32, #tpu.memory_space<vmem>>, vector<8x128xf32>
    tpu.vector_store %arg12[%c0_95, %c0_96], %289 {strides = array<i32>} : memref<8x128xf32, #tpu.memory_space<vmem>>, vector<8x128xf32>,
    %292 = arith.truncf %289 : vector<8x128xf32> to vector<8x128xbf16>
    %c40_97 = arith.constant 40 : index
    %c0_98 = arith.constant 0 : index
    %293 = vector.load %arg11[%c40_97, %c0_98] : memref<64x128xbf16, #tpu.memory_space<vmem>>, vector<8x128xbf16>
    tpu.vector_store %arg11[%c40_97, %c0_98], %292 {strides = array<i32>} : memref<64x128xbf16, #tpu.memory_space<vmem>>, vector<8x128xbf16>,
    %c48 = arith.constant 48 : index
    %c0_99 = arith.constant 0 : index
    %294 = vector.load %arg2[%c48, %c0_99] : memref<64x512xbf16, #tpu.memory_space<vmem>>, vector<8x512xbf16>
    %295 = arith.extf %294 : vector<8x512xbf16> to vector<8x512xf32>
    %c0_100 = arith.constant 0 : index
    %c0_101 = arith.constant 0 : index
    %296 = vector.load %arg12[%c0_100, %c0_101] : memref<8x128xf32, #tpu.memory_space<vmem>>, vector<8x128xf32>
    %c0_102 = arith.constant 0 : index
    %c0_103 = arith.constant 0 : index
    %297 = vector.load %arg13[%c0_102, %c0_103] : memref<8x128xf32, #tpu.memory_space<vmem>>, vector<8x128xf32>
    %298 = arith.truncf %296 : vector<8x128xf32> to vector<8x128xbf16>
    %cst_104 = arith.constant dense<0.000000e+00> : vector<8x512xf32>
    %299 = tpu.matmul %298, %5, %cst_104 {dimension_numbers = #tpu.dot_dimension_numbers<[1], [0], [0], [1], [0, 0, 1, 1], [], []>} : vector<8x128xbf16>, vector<128x512xbf16>, vector<8x512xf32> -> vector<8x512xf32>
    %300 = arith.addf %295, %299 : vector<8x512xf32>
    %301 = vector.extract_strided_slice %300 {offsets = [0, 0], sizes = [8, 128], strides = [1, 1]} : vector<8x512xf32> to vector<8x128xf32>
    %302 = arith.negf %301 : vector<8x128xf32>
    %303 = math.exp %302 : vector<8x128xf32>
    %cst_105 = arith.constant 1.000000e+00 : f32
    %304 = vector.broadcast %cst_105 : f32 to vector<8x128xf32>
    %305 = arith.addf %304, %303 : vector<8x128xf32>
    %306 = arith.divf %304, %305 : vector<8x128xf32>
    %307 = vector.extract_strided_slice %300 {offsets = [0, 128], sizes = [8, 128], strides = [1, 1]} : vector<8x512xf32> to vector<8x128xf32>
    %308 = arith.negf %307 : vector<8x128xf32>
    %309 = math.exp %308 : vector<8x128xf32>
    %cst_106 = arith.constant 1.000000e+00 : f32
    %310 = vector.broadcast %cst_106 : f32 to vector<8x128xf32>
    %311 = arith.addf %310, %309 : vector<8x128xf32>
    %312 = arith.divf %310, %311 : vector<8x128xf32>
    %313 = vector.extract_strided_slice %300 {offsets = [0, 256], sizes = [8, 128], strides = [1, 1]} : vector<8x512xf32> to vector<8x128xf32>
    %314 = math.tanh %313 : vector<8x128xf32>
    %315 = vector.extract_strided_slice %300 {offsets = [0, 384], sizes = [8, 128], strides = [1, 1]} : vector<8x512xf32> to vector<8x128xf32>
    %316 = arith.negf %315 : vector<8x128xf32>
    %317 = math.exp %316 : vector<8x128xf32>
    %cst_107 = arith.constant 1.000000e+00 : f32
    %318 = vector.broadcast %cst_107 : f32 to vector<8x128xf32>
    %319 = arith.addf %318, %317 : vector<8x128xf32>
    %320 = arith.divf %318, %319 : vector<8x128xf32>
    %321 = arith.mulf %312, %297 : vector<8x128xf32>
    %322 = arith.mulf %306, %314 : vector<8x128xf32>
    %323 = arith.addf %321, %322 : vector<8x128xf32>
    %324 = math.tanh %323 : vector<8x128xf32>
    %325 = arith.mulf %320, %324 : vector<8x128xf32>
    %c6_i32 = arith.constant 6 : i32
    %326 = vector.broadcast %c6_i32 : i32 to vector<8x1xi32>
    %327 = arith.cmpi sgt, %0, %326 : vector<8x1xi32>
    %328 = arith.extui %327 : vector<8x1xi1> to vector<8x1xi32>
    %329 = arith.sitofp %328 : vector<8x1xi32> to vector<8x1xf32>
    %330 = vector.shape_cast %329 : vector<8x1xf32> to vector<8x1xf32>
    %331 = vector.broadcast %330 : vector<8x1xf32> to vector<8x128xf32>
    %332 = arith.subf %323, %297 : vector<8x128xf32>
    %333 = arith.mulf %331, %332 : vector<8x128xf32>
    %334 = arith.addf %297, %333 : vector<8x128xf32>
    %335 = arith.subf %325, %296 : vector<8x128xf32>
    %336 = arith.mulf %331, %335 : vector<8x128xf32>
    %337 = arith.addf %296, %336 : vector<8x128xf32>
    %c0_108 = arith.constant 0 : index
    %c0_109 = arith.constant 0 : index
    %338 = vector.load %arg13[%c0_108, %c0_109] : memref<8x128xf32, #tpu.memory_space<vmem>>, vector<8x128xf32>
    tpu.vector_store %arg13[%c0_108, %c0_109], %334 {strides = array<i32>} : memref<8x128xf32, #tpu.memory_space<vmem>>, vector<8x128xf32>,
    %c0_110 = arith.constant 0 : index
    %c0_111 = arith.constant 0 : index
    %339 = vector.load %arg12[%c0_110, %c0_111] : memref<8x128xf32, #tpu.memory_space<vmem>>, vector<8x128xf32>
    tpu.vector_store %arg12[%c0_110, %c0_111], %337 {strides = array<i32>} : memref<8x128xf32, #tpu.memory_space<vmem>>, vector<8x128xf32>,
    %340 = arith.truncf %337 : vector<8x128xf32> to vector<8x128xbf16>
    %c48_112 = arith.constant 48 : index
    %c0_113 = arith.constant 0 : index
    %341 = vector.load %arg11[%c48_112, %c0_113] : memref<64x128xbf16, #tpu.memory_space<vmem>>, vector<8x128xbf16>
    tpu.vector_store %arg11[%c48_112, %c0_113], %340 {strides = array<i32>} : memref<64x128xbf16, #tpu.memory_space<vmem>>, vector<8x128xbf16>,
    %c56 = arith.constant 56 : index
    %c0_114 = arith.constant 0 : index
    %342 = vector.load %arg2[%c56, %c0_114] : memref<64x512xbf16, #tpu.memory_space<vmem>>, vector<8x512xbf16>
    %343 = arith.extf %342 : vector<8x512xbf16> to vector<8x512xf32>
    %c0_115 = arith.constant 0 : index
    %c0_116 = arith.constant 0 : index
    %344 = vector.load %arg12[%c0_115, %c0_116] : memref<8x128xf32, #tpu.memory_space<vmem>>, vector<8x128xf32>
    %c0_117 = arith.constant 0 : index
    %c0_118 = arith.constant 0 : index
    %345 = vector.load %arg13[%c0_117, %c0_118] : memref<8x128xf32, #tpu.memory_space<vmem>>, vector<8x128xf32>
    %346 = arith.truncf %344 : vector<8x128xf32> to vector<8x128xbf16>
    %cst_119 = arith.constant dense<0.000000e+00> : vector<8x512xf32>
    %347 = tpu.matmul %346, %5, %cst_119 {dimension_numbers = #tpu.dot_dimension_numbers<[1], [0], [0], [1], [0, 0, 1, 1], [], []>} : vector<8x128xbf16>, vector<128x512xbf16>, vector<8x512xf32> -> vector<8x512xf32>
    %348 = arith.addf %343, %347 : vector<8x512xf32>
    %349 = vector.extract_strided_slice %348 {offsets = [0, 0], sizes = [8, 128], strides = [1, 1]} : vector<8x512xf32> to vector<8x128xf32>
    %350 = arith.negf %349 : vector<8x128xf32>
    %351 = math.exp %350 : vector<8x128xf32>
    %cst_120 = arith.constant 1.000000e+00 : f32
    %352 = vector.broadcast %cst_120 : f32 to vector<8x128xf32>
    %353 = arith.addf %352, %351 : vector<8x128xf32>
    %354 = arith.divf %352, %353 : vector<8x128xf32>
    %355 = vector.extract_strided_slice %348 {offsets = [0, 128], sizes = [8, 128], strides = [1, 1]} : vector<8x512xf32> to vector<8x128xf32>
    %356 = arith.negf %355 : vector<8x128xf32>
    %357 = math.exp %356 : vector<8x128xf32>
    %cst_121 = arith.constant 1.000000e+00 : f32
    %358 = vector.broadcast %cst_121 : f32 to vector<8x128xf32>
    %359 = arith.addf %358, %357 : vector<8x128xf32>
    %360 = arith.divf %358, %359 : vector<8x128xf32>
    %361 = vector.extract_strided_slice %348 {offsets = [0, 256], sizes = [8, 128], strides = [1, 1]} : vector<8x512xf32> to vector<8x128xf32>
    %362 = math.tanh %361 : vector<8x128xf32>
    %363 = vector.extract_strided_slice %348 {offsets = [0, 384], sizes = [8, 128], strides = [1, 1]} : vector<8x512xf32> to vector<8x128xf32>
    %364 = arith.negf %363 : vector<8x128xf32>
    %365 = math.exp %364 : vector<8x128xf32>
    %cst_122 = arith.constant 1.000000e+00 : f32
    %366 = vector.broadcast %cst_122 : f32 to vector<8x128xf32>
    %367 = arith.addf %366, %365 : vector<8x128xf32>
    %368 = arith.divf %366, %367 : vector<8x128xf32>
    %369 = arith.mulf %360, %345 : vector<8x128xf32>
    %370 = arith.mulf %354, %362 : vector<8x128xf32>
    %371 = arith.addf %369, %370 : vector<8x128xf32>
    %372 = math.tanh %371 : vector<8x128xf32>
    %373 = arith.mulf %368, %372 : vector<8x128xf32>
    %c7_i32 = arith.constant 7 : i32
    %374 = vector.broadcast %c7_i32 : i32 to vector<8x1xi32>
    %375 = arith.cmpi sgt, %0, %374 : vector<8x1xi32>
    %376 = arith.extui %375 : vector<8x1xi1> to vector<8x1xi32>
    %377 = arith.sitofp %376 : vector<8x1xi32> to vector<8x1xf32>
    %378 = vector.shape_cast %377 : vector<8x1xf32> to vector<8x1xf32>
    %379 = vector.broadcast %378 : vector<8x1xf32> to vector<8x128xf32>
    %380 = arith.subf %371, %345 : vector<8x128xf32>
    %381 = arith.mulf %379, %380 : vector<8x128xf32>
    %382 = arith.addf %345, %381 : vector<8x128xf32>
    %383 = arith.subf %373, %344 : vector<8x128xf32>
    %384 = arith.mulf %379, %383 : vector<8x128xf32>
    %385 = arith.addf %344, %384 : vector<8x128xf32>
    %c0_123 = arith.constant 0 : index
    %c0_124 = arith.constant 0 : index
    %386 = vector.load %arg13[%c0_123, %c0_124] : memref<8x128xf32, #tpu.memory_space<vmem>>, vector<8x128xf32>
    tpu.vector_store %arg13[%c0_123, %c0_124], %382 {strides = array<i32>} : memref<8x128xf32, #tpu.memory_space<vmem>>, vector<8x128xf32>,
    %c0_125 = arith.constant 0 : index
    %c0_126 = arith.constant 0 : index
    %387 = vector.load %arg12[%c0_125, %c0_126] : memref<8x128xf32, #tpu.memory_space<vmem>>, vector<8x128xf32>
    tpu.vector_store %arg12[%c0_125, %c0_126], %385 {strides = array<i32>} : memref<8x128xf32, #tpu.memory_space<vmem>>, vector<8x128xf32>,
    %388 = arith.truncf %385 : vector<8x128xf32> to vector<8x128xbf16>
    %c56_127 = arith.constant 56 : index
    %c0_128 = arith.constant 0 : index
    %389 = vector.load %arg11[%c56_127, %c0_128] : memref<64x128xbf16, #tpu.memory_space<vmem>>, vector<8x128xbf16>
    tpu.vector_store %arg11[%c56_127, %c0_128], %388 {strides = array<i32>} : memref<64x128xbf16, #tpu.memory_space<vmem>>, vector<8x128xbf16>,
    %c0_129 = arith.constant 0 : index
    %c0_130 = arith.constant 0 : index
    %390 = vector.load %arg11[%c0_129, %c0_130] : memref<64x128xbf16, #tpu.memory_space<vmem>>, vector<64x128xbf16>
    %c0_131 = arith.constant 0 : index
    %c0_132 = arith.constant 0 : index
    %391 = vector.load %arg4[%c0_131, %c0_132] : memref<128x512xbf16, #tpu.memory_space<vmem>>, vector<128x512xbf16>
    %cst_133 = arith.constant dense<0.000000e+00> : vector<64x512xf32>
    %392 = tpu.matmul %390, %391, %cst_133 {dimension_numbers = #tpu.dot_dimension_numbers<[1], [0], [0], [1], [0, 0, 1, 1], [], []>} : vector<64x128xbf16>, vector<128x512xbf16>, vector<64x512xf32> -> vector<64x512xf32>
    %c0_134 = arith.constant 0 : index
    %c0_135 = arith.constant 0 : index
    %393 = vector.load %arg6[%c0_134, %c0_135] : memref<1x512xf32, #tpu.memory_space<vmem>>, vector<1x512xf32>
    %394 = vector.broadcast %393 : vector<1x512xf32> to vector<64x512xf32>
    %395 = arith.addf %392, %394 : vector<64x512xf32>
    %396 = arith.truncf %395 : vector<64x512xf32> to vector<64x512xbf16>
    %c0_136 = arith.constant 0 : index
    %c0_137 = arith.constant 0 : index
    %397 = vector.load %arg10[%c0_136, %c0_137] : memref<64x512xbf16, #tpu.memory_space<vmem>>, vector<64x512xbf16>
    tpu.vector_store %arg10[%c0_136, %c0_137], %396 {strides = array<i32>} : memref<64x512xbf16, #tpu.memory_space<vmem>>, vector<64x512xbf16>,
    %cst_138 = arith.constant 0.000000e+00 : f32
    %398 = vector.broadcast %cst_138 : f32 to vector<8x128xf32>
    %c0_139 = arith.constant 0 : index
    %c0_140 = arith.constant 0 : index
    %399 = vector.load %arg12[%c0_139, %c0_140] : memref<8x128xf32, #tpu.memory_space<vmem>>, vector<8x128xf32>
    tpu.vector_store %arg12[%c0_139, %c0_140], %398 {strides = array<i32>} : memref<8x128xf32, #tpu.memory_space<vmem>>, vector<8x128xf32>,
    %cst_141 = arith.constant 0.000000e+00 : f32
    %400 = vector.broadcast %cst_141 : f32 to vector<8x128xf32>
    %c0_142 = arith.constant 0 : index
    %c0_143 = arith.constant 0 : index
    %401 = vector.load %arg13[%c0_142, %c0_143] : memref<8x128xf32, #tpu.memory_space<vmem>>, vector<8x128xf32>
    tpu.vector_store %arg13[%c0_142, %c0_143], %400 {strides = array<i32>} : memref<8x128xf32, #tpu.memory_space<vmem>>, vector<8x128xf32>,
    %c0_144 = arith.constant 0 : index
    %c0_145 = arith.constant 0 : index
    %402 = vector.load %arg5[%c0_144, %c0_145] : memref<128x512xbf16, #tpu.memory_space<vmem>>, vector<128x512xbf16>
    %c0_146 = arith.constant 0 : index
    %c0_147 = arith.constant 0 : index
    %403 = vector.load %arg10[%c0_146, %c0_147] : memref<64x512xbf16, #tpu.memory_space<vmem>>, vector<8x512xbf16>
    %404 = arith.extf %403 : vector<8x512xbf16> to vector<8x512xf32>
    %c0_148 = arith.constant 0 : index
    %c0_149 = arith.constant 0 : index
    %405 = vector.load %arg12[%c0_148, %c0_149] : memref<8x128xf32, #tpu.memory_space<vmem>>, vector<8x128xf32>
    %c0_150 = arith.constant 0 : index
    %c0_151 = arith.constant 0 : index
    %406 = vector.load %arg13[%c0_150, %c0_151] : memref<8x128xf32, #tpu.memory_space<vmem>>, vector<8x128xf32>
    %407 = arith.truncf %405 : vector<8x128xf32> to vector<8x128xbf16>
    %cst_152 = arith.constant dense<0.000000e+00> : vector<8x512xf32>
    %408 = tpu.matmul %407, %402, %cst_152 {dimension_numbers = #tpu.dot_dimension_numbers<[1], [0], [0], [1], [0, 0, 1, 1], [], []>} : vector<8x128xbf16>, vector<128x512xbf16>, vector<8x512xf32> -> vector<8x512xf32>
    %409 = arith.addf %404, %408 : vector<8x512xf32>
    %410 = vector.extract_strided_slice %409 {offsets = [0, 0], sizes = [8, 128], strides = [1, 1]} : vector<8x512xf32> to vector<8x128xf32>
    %411 = arith.negf %410 : vector<8x128xf32>
    %412 = math.exp %411 : vector<8x128xf32>
    %cst_153 = arith.constant 1.000000e+00 : f32
    %413 = vector.broadcast %cst_153 : f32 to vector<8x128xf32>
    %414 = arith.addf %413, %412 : vector<8x128xf32>
    %415 = arith.divf %413, %414 : vector<8x128xf32>
    %416 = vector.extract_strided_slice %409 {offsets = [0, 128], sizes = [8, 128], strides = [1, 1]} : vector<8x512xf32> to vector<8x128xf32>
    %417 = arith.negf %416 : vector<8x128xf32>
    %418 = math.exp %417 : vector<8x128xf32>
    %cst_154 = arith.constant 1.000000e+00 : f32
    %419 = vector.broadcast %cst_154 : f32 to vector<8x128xf32>
    %420 = arith.addf %419, %418 : vector<8x128xf32>
    %421 = arith.divf %419, %420 : vector<8x128xf32>
    %422 = vector.extract_strided_slice %409 {offsets = [0, 256], sizes = [8, 128], strides = [1, 1]} : vector<8x512xf32> to vector<8x128xf32>
    %423 = math.tanh %422 : vector<8x128xf32>
    %424 = vector.extract_strided_slice %409 {offsets = [0, 384], sizes = [8, 128], strides = [1, 1]} : vector<8x512xf32> to vector<8x128xf32>
    %425 = arith.negf %424 : vector<8x128xf32>
    %426 = math.exp %425 : vector<8x128xf32>
    %cst_155 = arith.constant 1.000000e+00 : f32
    %427 = vector.broadcast %cst_155 : f32 to vector<8x128xf32>
    %428 = arith.addf %427, %426 : vector<8x128xf32>
    %429 = arith.divf %427, %428 : vector<8x128xf32>
    %430 = arith.mulf %421, %406 : vector<8x128xf32>
    %431 = arith.mulf %415, %423 : vector<8x128xf32>
    %432 = arith.addf %430, %431 : vector<8x128xf32>
    %433 = math.tanh %432 : vector<8x128xf32>
    %434 = arith.mulf %429, %433 : vector<8x128xf32>
    %c0_i32_156 = arith.constant 0 : i32
    %435 = vector.broadcast %c0_i32_156 : i32 to vector<8x1xi32>
    %436 = arith.cmpi sgt, %0, %435 : vector<8x1xi32>
    %437 = arith.extui %436 : vector<8x1xi1> to vector<8x1xi32>
    %438 = arith.sitofp %437 : vector<8x1xi32> to vector<8x1xf32>
    %439 = vector.shape_cast %438 : vector<8x1xf32> to vector<8x1xf32>
    %440 = vector.broadcast %439 : vector<8x1xf32> to vector<8x128xf32>
    %441 = arith.subf %432, %406 : vector<8x128xf32>
    %442 = arith.mulf %440, %441 : vector<8x128xf32>
    %443 = arith.addf %406, %442 : vector<8x128xf32>
    %444 = arith.subf %434, %405 : vector<8x128xf32>
    %445 = arith.mulf %440, %444 : vector<8x128xf32>
    %446 = arith.addf %405, %445 : vector<8x128xf32>
    %c0_157 = arith.constant 0 : index
    %c0_158 = arith.constant 0 : index
    %447 = vector.load %arg13[%c0_157, %c0_158] : memref<8x128xf32, #tpu.memory_space<vmem>>, vector<8x128xf32>
    tpu.vector_store %arg13[%c0_157, %c0_158], %443 {strides = array<i32>} : memref<8x128xf32, #tpu.memory_space<vmem>>, vector<8x128xf32>,
    %c0_159 = arith.constant 0 : index
    %c0_160 = arith.constant 0 : index
    %448 = vector.load %arg12[%c0_159, %c0_160] : memref<8x128xf32, #tpu.memory_space<vmem>>, vector<8x128xf32>
    tpu.vector_store %arg12[%c0_159, %c0_160], %446 {strides = array<i32>} : memref<8x128xf32, #tpu.memory_space<vmem>>, vector<8x128xf32>,
    %c8_161 = arith.constant 8 : index
    %c0_162 = arith.constant 0 : index
    %449 = vector.load %arg10[%c8_161, %c0_162] : memref<64x512xbf16, #tpu.memory_space<vmem>>, vector<8x512xbf16>
    %450 = arith.extf %449 : vector<8x512xbf16> to vector<8x512xf32>
    %c0_163 = arith.constant 0 : index
    %c0_164 = arith.constant 0 : index
    %451 = vector.load %arg12[%c0_163, %c0_164] : memref<8x128xf32, #tpu.memory_space<vmem>>, vector<8x128xf32>
    %c0_165 = arith.constant 0 : index
    %c0_166 = arith.constant 0 : index
    %452 = vector.load %arg13[%c0_165, %c0_166] : memref<8x128xf32, #tpu.memory_space<vmem>>, vector<8x128xf32>
    %453 = arith.truncf %451 : vector<8x128xf32> to vector<8x128xbf16>
    %cst_167 = arith.constant dense<0.000000e+00> : vector<8x512xf32>
    %454 = tpu.matmul %453, %402, %cst_167 {dimension_numbers = #tpu.dot_dimension_numbers<[1], [0], [0], [1], [0, 0, 1, 1], [], []>} : vector<8x128xbf16>, vector<128x512xbf16>, vector<8x512xf32> -> vector<8x512xf32>
    %455 = arith.addf %450, %454 : vector<8x512xf32>
    %456 = vector.extract_strided_slice %455 {offsets = [0, 0], sizes = [8, 128], strides = [1, 1]} : vector<8x512xf32> to vector<8x128xf32>
    %457 = arith.negf %456 : vector<8x128xf32>
    %458 = math.exp %457 : vector<8x128xf32>
    %cst_168 = arith.constant 1.000000e+00 : f32
    %459 = vector.broadcast %cst_168 : f32 to vector<8x128xf32>
    %460 = arith.addf %459, %458 : vector<8x128xf32>
    %461 = arith.divf %459, %460 : vector<8x128xf32>
    %462 = vector.extract_strided_slice %455 {offsets = [0, 128], sizes = [8, 128], strides = [1, 1]} : vector<8x512xf32> to vector<8x128xf32>
    %463 = arith.negf %462 : vector<8x128xf32>
    %464 = math.exp %463 : vector<8x128xf32>
    %cst_169 = arith.constant 1.000000e+00 : f32
    %465 = vector.broadcast %cst_169 : f32 to vector<8x128xf32>
    %466 = arith.addf %465, %464 : vector<8x128xf32>
    %467 = arith.divf %465, %466 : vector<8x128xf32>
    %468 = vector.extract_strided_slice %455 {offsets = [0, 256], sizes = [8, 128], strides = [1, 1]} : vector<8x512xf32> to vector<8x128xf32>
    %469 = math.tanh %468 : vector<8x128xf32>
    %470 = vector.extract_strided_slice %455 {offsets = [0, 384], sizes = [8, 128], strides = [1, 1]} : vector<8x512xf32> to vector<8x128xf32>
    %471 = arith.negf %470 : vector<8x128xf32>
    %472 = math.exp %471 : vector<8x128xf32>
    %cst_170 = arith.constant 1.000000e+00 : f32
    %473 = vector.broadcast %cst_170 : f32 to vector<8x128xf32>
    %474 = arith.addf %473, %472 : vector<8x128xf32>
    %475 = arith.divf %473, %474 : vector<8x128xf32>
    %476 = arith.mulf %467, %452 : vector<8x128xf32>
    %477 = arith.mulf %461, %469 : vector<8x128xf32>
    %478 = arith.addf %476, %477 : vector<8x128xf32>
    %479 = math.tanh %478 : vector<8x128xf32>
    %480 = arith.mulf %475, %479 : vector<8x128xf32>
    %c1_i32_171 = arith.constant 1 : i32
    %481 = vector.broadcast %c1_i32_171 : i32 to vector<8x1xi32>
    %482 = arith.cmpi sgt, %0, %481 : vector<8x1xi32>
    %483 = arith.extui %482 : vector<8x1xi1> to vector<8x1xi32>
    %484 = arith.sitofp %483 : vector<8x1xi32> to vector<8x1xf32>
    %485 = vector.shape_cast %484 : vector<8x1xf32> to vector<8x1xf32>
    %486 = vector.broadcast %485 : vector<8x1xf32> to vector<8x128xf32>
    %487 = arith.subf %478, %452 : vector<8x128xf32>
    %488 = arith.mulf %486, %487 : vector<8x128xf32>
    %489 = arith.addf %452, %488 : vector<8x128xf32>
    %490 = arith.subf %480, %451 : vector<8x128xf32>
    %491 = arith.mulf %486, %490 : vector<8x128xf32>
    %492 = arith.addf %451, %491 : vector<8x128xf32>
    %c0_172 = arith.constant 0 : index
    %c0_173 = arith.constant 0 : index
    %493 = vector.load %arg13[%c0_172, %c0_173] : memref<8x128xf32, #tpu.memory_space<vmem>>, vector<8x128xf32>
    tpu.vector_store %arg13[%c0_172, %c0_173], %489 {strides = array<i32>} : memref<8x128xf32, #tpu.memory_space<vmem>>, vector<8x128xf32>,
    %c0_174 = arith.constant 0 : index
    %c0_175 = arith.constant 0 : index
    %494 = vector.load %arg12[%c0_174, %c0_175] : memref<8x128xf32, #tpu.memory_space<vmem>>, vector<8x128xf32>
    tpu.vector_store %arg12[%c0_174, %c0_175], %492 {strides = array<i32>} : memref<8x128xf32, #tpu.memory_space<vmem>>, vector<8x128xf32>,
    %c16_176 = arith.constant 16 : index
    %c0_177 = arith.constant 0 : index
    %495 = vector.load %arg10[%c16_176, %c0_177] : memref<64x512xbf16, #tpu.memory_space<vmem>>, vector<8x512xbf16>
    %496 = arith.extf %495 : vector<8x512xbf16> to vector<8x512xf32>
    %c0_178 = arith.constant 0 : index
    %c0_179 = arith.constant 0 : index
    %497 = vector.load %arg12[%c0_178, %c0_179] : memref<8x128xf32, #tpu.memory_space<vmem>>, vector<8x128xf32>
    %c0_180 = arith.constant 0 : index
    %c0_181 = arith.constant 0 : index
    %498 = vector.load %arg13[%c0_180, %c0_181] : memref<8x128xf32, #tpu.memory_space<vmem>>, vector<8x128xf32>
    %499 = arith.truncf %497 : vector<8x128xf32> to vector<8x128xbf16>
    %cst_182 = arith.constant dense<0.000000e+00> : vector<8x512xf32>
    %500 = tpu.matmul %499, %402, %cst_182 {dimension_numbers = #tpu.dot_dimension_numbers<[1], [0], [0], [1], [0, 0, 1, 1], [], []>} : vector<8x128xbf16>, vector<128x512xbf16>, vector<8x512xf32> -> vector<8x512xf32>
    %501 = arith.addf %496, %500 : vector<8x512xf32>
    %502 = vector.extract_strided_slice %501 {offsets = [0, 0], sizes = [8, 128], strides = [1, 1]} : vector<8x512xf32> to vector<8x128xf32>
    %503 = arith.negf %502 : vector<8x128xf32>
    %504 = math.exp %503 : vector<8x128xf32>
    %cst_183 = arith.constant 1.000000e+00 : f32
    %505 = vector.broadcast %cst_183 : f32 to vector<8x128xf32>
    %506 = arith.addf %505, %504 : vector<8x128xf32>
    %507 = arith.divf %505, %506 : vector<8x128xf32>
    %508 = vector.extract_strided_slice %501 {offsets = [0, 128], sizes = [8, 128], strides = [1, 1]} : vector<8x512xf32> to vector<8x128xf32>
    %509 = arith.negf %508 : vector<8x128xf32>
    %510 = math.exp %509 : vector<8x128xf32>
    %cst_184 = arith.constant 1.000000e+00 : f32
    %511 = vector.broadcast %cst_184 : f32 to vector<8x128xf32>
    %512 = arith.addf %511, %510 : vector<8x128xf32>
    %513 = arith.divf %511, %512 : vector<8x128xf32>
    %514 = vector.extract_strided_slice %501 {offsets = [0, 256], sizes = [8, 128], strides = [1, 1]} : vector<8x512xf32> to vector<8x128xf32>
    %515 = math.tanh %514 : vector<8x128xf32>
    %516 = vector.extract_strided_slice %501 {offsets = [0, 384], sizes = [8, 128], strides = [1, 1]} : vector<8x512xf32> to vector<8x128xf32>
    %517 = arith.negf %516 : vector<8x128xf32>
    %518 = math.exp %517 : vector<8x128xf32>
    %cst_185 = arith.constant 1.000000e+00 : f32
    %519 = vector.broadcast %cst_185 : f32 to vector<8x128xf32>
    %520 = arith.addf %519, %518 : vector<8x128xf32>
    %521 = arith.divf %519, %520 : vector<8x128xf32>
    %522 = arith.mulf %513, %498 : vector<8x128xf32>
    %523 = arith.mulf %507, %515 : vector<8x128xf32>
    %524 = arith.addf %522, %523 : vector<8x128xf32>
    %525 = math.tanh %524 : vector<8x128xf32>
    %526 = arith.mulf %521, %525 : vector<8x128xf32>
    %c2_i32_186 = arith.constant 2 : i32
    %527 = vector.broadcast %c2_i32_186 : i32 to vector<8x1xi32>
    %528 = arith.cmpi sgt, %0, %527 : vector<8x1xi32>
    %529 = arith.extui %528 : vector<8x1xi1> to vector<8x1xi32>
    %530 = arith.sitofp %529 : vector<8x1xi32> to vector<8x1xf32>
    %531 = vector.shape_cast %530 : vector<8x1xf32> to vector<8x1xf32>
    %532 = vector.broadcast %531 : vector<8x1xf32> to vector<8x128xf32>
    %533 = arith.subf %524, %498 : vector<8x128xf32>
    %534 = arith.mulf %532, %533 : vector<8x128xf32>
    %535 = arith.addf %498, %534 : vector<8x128xf32>
    %536 = arith.subf %526, %497 : vector<8x128xf32>
    %537 = arith.mulf %532, %536 : vector<8x128xf32>
    %538 = arith.addf %497, %537 : vector<8x128xf32>
    %c0_187 = arith.constant 0 : index
    %c0_188 = arith.constant 0 : index
    %539 = vector.load %arg13[%c0_187, %c0_188] : memref<8x128xf32, #tpu.memory_space<vmem>>, vector<8x128xf32>
    tpu.vector_store %arg13[%c0_187, %c0_188], %535 {strides = array<i32>} : memref<8x128xf32, #tpu.memory_space<vmem>>, vector<8x128xf32>,
    %c0_189 = arith.constant 0 : index
    %c0_190 = arith.constant 0 : index
    %540 = vector.load %arg12[%c0_189, %c0_190] : memref<8x128xf32, #tpu.memory_space<vmem>>, vector<8x128xf32>
    tpu.vector_store %arg12[%c0_189, %c0_190], %538 {strides = array<i32>} : memref<8x128xf32, #tpu.memory_space<vmem>>, vector<8x128xf32>,
    %c24_191 = arith.constant 24 : index
    %c0_192 = arith.constant 0 : index
    %541 = vector.load %arg10[%c24_191, %c0_192] : memref<64x512xbf16, #tpu.memory_space<vmem>>, vector<8x512xbf16>
    %542 = arith.extf %541 : vector<8x512xbf16> to vector<8x512xf32>
    %c0_193 = arith.constant 0 : index
    %c0_194 = arith.constant 0 : index
    %543 = vector.load %arg12[%c0_193, %c0_194] : memref<8x128xf32, #tpu.memory_space<vmem>>, vector<8x128xf32>
    %c0_195 = arith.constant 0 : index
    %c0_196 = arith.constant 0 : index
    %544 = vector.load %arg13[%c0_195, %c0_196] : memref<8x128xf32, #tpu.memory_space<vmem>>, vector<8x128xf32>
    %545 = arith.truncf %543 : vector<8x128xf32> to vector<8x128xbf16>
    %cst_197 = arith.constant dense<0.000000e+00> : vector<8x512xf32>
    %546 = tpu.matmul %545, %402, %cst_197 {dimension_numbers = #tpu.dot_dimension_numbers<[1], [0], [0], [1], [0, 0, 1, 1], [], []>} : vector<8x128xbf16>, vector<128x512xbf16>, vector<8x512xf32> -> vector<8x512xf32>
    %547 = arith.addf %542, %546 : vector<8x512xf32>
    %548 = vector.extract_strided_slice %547 {offsets = [0, 0], sizes = [8, 128], strides = [1, 1]} : vector<8x512xf32> to vector<8x128xf32>
    %549 = arith.negf %548 : vector<8x128xf32>
    %550 = math.exp %549 : vector<8x128xf32>
    %cst_198 = arith.constant 1.000000e+00 : f32
    %551 = vector.broadcast %cst_198 : f32 to vector<8x128xf32>
    %552 = arith.addf %551, %550 : vector<8x128xf32>
    %553 = arith.divf %551, %552 : vector<8x128xf32>
    %554 = vector.extract_strided_slice %547 {offsets = [0, 128], sizes = [8, 128], strides = [1, 1]} : vector<8x512xf32> to vector<8x128xf32>
    %555 = arith.negf %554 : vector<8x128xf32>
    %556 = math.exp %555 : vector<8x128xf32>
    %cst_199 = arith.constant 1.000000e+00 : f32
    %557 = vector.broadcast %cst_199 : f32 to vector<8x128xf32>
    %558 = arith.addf %557, %556 : vector<8x128xf32>
    %559 = arith.divf %557, %558 : vector<8x128xf32>
    %560 = vector.extract_strided_slice %547 {offsets = [0, 256], sizes = [8, 128], strides = [1, 1]} : vector<8x512xf32> to vector<8x128xf32>
    %561 = math.tanh %560 : vector<8x128xf32>
    %562 = vector.extract_strided_slice %547 {offsets = [0, 384], sizes = [8, 128], strides = [1, 1]} : vector<8x512xf32> to vector<8x128xf32>
    %563 = arith.negf %562 : vector<8x128xf32>
    %564 = math.exp %563 : vector<8x128xf32>
    %cst_200 = arith.constant 1.000000e+00 : f32
    %565 = vector.broadcast %cst_200 : f32 to vector<8x128xf32>
    %566 = arith.addf %565, %564 : vector<8x128xf32>
    %567 = arith.divf %565, %566 : vector<8x128xf32>
    %568 = arith.mulf %559, %544 : vector<8x128xf32>
    %569 = arith.mulf %553, %561 : vector<8x128xf32>
    %570 = arith.addf %568, %569 : vector<8x128xf32>
    %571 = math.tanh %570 : vector<8x128xf32>
    %572 = arith.mulf %567, %571 : vector<8x128xf32>
    %c3_i32_201 = arith.constant 3 : i32
    %573 = vector.broadcast %c3_i32_201 : i32 to vector<8x1xi32>
    %574 = arith.cmpi sgt, %0, %573 : vector<8x1xi32>
    %575 = arith.extui %574 : vector<8x1xi1> to vector<8x1xi32>
    %576 = arith.sitofp %575 : vector<8x1xi32> to vector<8x1xf32>
    %577 = vector.shape_cast %576 : vector<8x1xf32> to vector<8x1xf32>
    %578 = vector.broadcast %577 : vector<8x1xf32> to vector<8x128xf32>
    %579 = arith.subf %570, %544 : vector<8x128xf32>
    %580 = arith.mulf %578, %579 : vector<8x128xf32>
    %581 = arith.addf %544, %580 : vector<8x128xf32>
    %582 = arith.subf %572, %543 : vector<8x128xf32>
    %583 = arith.mulf %578, %582 : vector<8x128xf32>
    %584 = arith.addf %543, %583 : vector<8x128xf32>
    %c0_202 = arith.constant 0 : index
    %c0_203 = arith.constant 0 : index
    %585 = vector.load %arg13[%c0_202, %c0_203] : memref<8x128xf32, #tpu.memory_space<vmem>>, vector<8x128xf32>
    tpu.vector_store %arg13[%c0_202, %c0_203], %581 {strides = array<i32>} : memref<8x128xf32, #tpu.memory_space<vmem>>, vector<8x128xf32>,
    %c0_204 = arith.constant 0 : index
    %c0_205 = arith.constant 0 : index
    %586 = vector.load %arg12[%c0_204, %c0_205] : memref<8x128xf32, #tpu.memory_space<vmem>>, vector<8x128xf32>
    tpu.vector_store %arg12[%c0_204, %c0_205], %584 {strides = array<i32>} : memref<8x128xf32, #tpu.memory_space<vmem>>, vector<8x128xf32>,
    %c32_206 = arith.constant 32 : index
    %c0_207 = arith.constant 0 : index
    %587 = vector.load %arg10[%c32_206, %c0_207] : memref<64x512xbf16, #tpu.memory_space<vmem>>, vector<8x512xbf16>
    %588 = arith.extf %587 : vector<8x512xbf16> to vector<8x512xf32>
    %c0_208 = arith.constant 0 : index
    %c0_209 = arith.constant 0 : index
    %589 = vector.load %arg12[%c0_208, %c0_209] : memref<8x128xf32, #tpu.memory_space<vmem>>, vector<8x128xf32>
    %c0_210 = arith.constant 0 : index
    %c0_211 = arith.constant 0 : index
    %590 = vector.load %arg13[%c0_210, %c0_211] : memref<8x128xf32, #tpu.memory_space<vmem>>, vector<8x128xf32>
    %591 = arith.truncf %589 : vector<8x128xf32> to vector<8x128xbf16>
    %cst_212 = arith.constant dense<0.000000e+00> : vector<8x512xf32>
    %592 = tpu.matmul %591, %402, %cst_212 {dimension_numbers = #tpu.dot_dimension_numbers<[1], [0], [0], [1], [0, 0, 1, 1], [], []>} : vector<8x128xbf16>, vector<128x512xbf16>, vector<8x512xf32> -> vector<8x512xf32>
    %593 = arith.addf %588, %592 : vector<8x512xf32>
    %594 = vector.extract_strided_slice %593 {offsets = [0, 0], sizes = [8, 128], strides = [1, 1]} : vector<8x512xf32> to vector<8x128xf32>
    %595 = arith.negf %594 : vector<8x128xf32>
    %596 = math.exp %595 : vector<8x128xf32>
    %cst_213 = arith.constant 1.000000e+00 : f32
    %597 = vector.broadcast %cst_213 : f32 to vector<8x128xf32>
    %598 = arith.addf %597, %596 : vector<8x128xf32>
    %599 = arith.divf %597, %598 : vector<8x128xf32>
    %600 = vector.extract_strided_slice %593 {offsets = [0, 128], sizes = [8, 128], strides = [1, 1]} : vector<8x512xf32> to vector<8x128xf32>
    %601 = arith.negf %600 : vector<8x128xf32>
    %602 = math.exp %601 : vector<8x128xf32>
    %cst_214 = arith.constant 1.000000e+00 : f32
    %603 = vector.broadcast %cst_214 : f32 to vector<8x128xf32>
    %604 = arith.addf %603, %602 : vector<8x128xf32>
    %605 = arith.divf %603, %604 : vector<8x128xf32>
    %606 = vector.extract_strided_slice %593 {offsets = [0, 256], sizes = [8, 128], strides = [1, 1]} : vector<8x512xf32> to vector<8x128xf32>
    %607 = math.tanh %606 : vector<8x128xf32>
    %608 = vector.extract_strided_slice %593 {offsets = [0, 384], sizes = [8, 128], strides = [1, 1]} : vector<8x512xf32> to vector<8x128xf32>
    %609 = arith.negf %608 : vector<8x128xf32>
    %610 = math.exp %609 : vector<8x128xf32>
    %cst_215 = arith.constant 1.000000e+00 : f32
    %611 = vector.broadcast %cst_215 : f32 to vector<8x128xf32>
    %612 = arith.addf %611, %610 : vector<8x128xf32>
    %613 = arith.divf %611, %612 : vector<8x128xf32>
    %614 = arith.mulf %605, %590 : vector<8x128xf32>
    %615 = arith.mulf %599, %607 : vector<8x128xf32>
    %616 = arith.addf %614, %615 : vector<8x128xf32>
    %617 = math.tanh %616 : vector<8x128xf32>
    %618 = arith.mulf %613, %617 : vector<8x128xf32>
    %c4_i32_216 = arith.constant 4 : i32
    %619 = vector.broadcast %c4_i32_216 : i32 to vector<8x1xi32>
    %620 = arith.cmpi sgt, %0, %619 : vector<8x1xi32>
    %621 = arith.extui %620 : vector<8x1xi1> to vector<8x1xi32>
    %622 = arith.sitofp %621 : vector<8x1xi32> to vector<8x1xf32>
    %623 = vector.shape_cast %622 : vector<8x1xf32> to vector<8x1xf32>
    %624 = vector.broadcast %623 : vector<8x1xf32> to vector<8x128xf32>
    %625 = arith.subf %616, %590 : vector<8x128xf32>
    %626 = arith.mulf %624, %625 : vector<8x128xf32>
    %627 = arith.addf %590, %626 : vector<8x128xf32>
    %628 = arith.subf %618, %589 : vector<8x128xf32>
    %629 = arith.mulf %624, %628 : vector<8x128xf32>
    %630 = arith.addf %589, %629 : vector<8x128xf32>
    %c0_217 = arith.constant 0 : index
    %c0_218 = arith.constant 0 : index
    %631 = vector.load %arg13[%c0_217, %c0_218] : memref<8x128xf32, #tpu.memory_space<vmem>>, vector<8x128xf32>
    tpu.vector_store %arg13[%c0_217, %c0_218], %627 {strides = array<i32>} : memref<8x128xf32, #tpu.memory_space<vmem>>, vector<8x128xf32>,
    %c0_219 = arith.constant 0 : index
    %c0_220 = arith.constant 0 : index
    %632 = vector.load %arg12[%c0_219, %c0_220] : memref<8x128xf32, #tpu.memory_space<vmem>>, vector<8x128xf32>
    tpu.vector_store %arg12[%c0_219, %c0_220], %630 {strides = array<i32>} : memref<8x128xf32, #tpu.memory_space<vmem>>, vector<8x128xf32>,
    %c40_221 = arith.constant 40 : index
    %c0_222 = arith.constant 0 : index
    %633 = vector.load %arg10[%c40_221, %c0_222] : memref<64x512xbf16, #tpu.memory_space<vmem>>, vector<8x512xbf16>
    %634 = arith.extf %633 : vector<8x512xbf16> to vector<8x512xf32>
    %c0_223 = arith.constant 0 : index
    %c0_224 = arith.constant 0 : index
    %635 = vector.load %arg12[%c0_223, %c0_224] : memref<8x128xf32, #tpu.memory_space<vmem>>, vector<8x128xf32>
    %c0_225 = arith.constant 0 : index
    %c0_226 = arith.constant 0 : index
    %636 = vector.load %arg13[%c0_225, %c0_226] : memref<8x128xf32, #tpu.memory_space<vmem>>, vector<8x128xf32>
    %637 = arith.truncf %635 : vector<8x128xf32> to vector<8x128xbf16>
    %cst_227 = arith.constant dense<0.000000e+00> : vector<8x512xf32>
    %638 = tpu.matmul %637, %402, %cst_227 {dimension_numbers = #tpu.dot_dimension_numbers<[1], [0], [0], [1], [0, 0, 1, 1], [], []>} : vector<8x128xbf16>, vector<128x512xbf16>, vector<8x512xf32> -> vector<8x512xf32>
    %639 = arith.addf %634, %638 : vector<8x512xf32>
    %640 = vector.extract_strided_slice %639 {offsets = [0, 0], sizes = [8, 128], strides = [1, 1]} : vector<8x512xf32> to vector<8x128xf32>
    %641 = arith.negf %640 : vector<8x128xf32>
    %642 = math.exp %641 : vector<8x128xf32>
    %cst_228 = arith.constant 1.000000e+00 : f32
    %643 = vector.broadcast %cst_228 : f32 to vector<8x128xf32>
    %644 = arith.addf %643, %642 : vector<8x128xf32>
    %645 = arith.divf %643, %644 : vector<8x128xf32>
    %646 = vector.extract_strided_slice %639 {offsets = [0, 128], sizes = [8, 128], strides = [1, 1]} : vector<8x512xf32> to vector<8x128xf32>
    %647 = arith.negf %646 : vector<8x128xf32>
    %648 = math.exp %647 : vector<8x128xf32>
    %cst_229 = arith.constant 1.000000e+00 : f32
    %649 = vector.broadcast %cst_229 : f32 to vector<8x128xf32>
    %650 = arith.addf %649, %648 : vector<8x128xf32>
    %651 = arith.divf %649, %650 : vector<8x128xf32>
    %652 = vector.extract_strided_slice %639 {offsets = [0, 256], sizes = [8, 128], strides = [1, 1]} : vector<8x512xf32> to vector<8x128xf32>
    %653 = math.tanh %652 : vector<8x128xf32>
    %654 = vector.extract_strided_slice %639 {offsets = [0, 384], sizes = [8, 128], strides = [1, 1]} : vector<8x512xf32> to vector<8x128xf32>
    %655 = arith.negf %654 : vector<8x128xf32>
    %656 = math.exp %655 : vector<8x128xf32>
    %cst_230 = arith.constant 1.000000e+00 : f32
    %657 = vector.broadcast %cst_230 : f32 to vector<8x128xf32>
    %658 = arith.addf %657, %656 : vector<8x128xf32>
    %659 = arith.divf %657, %658 : vector<8x128xf32>
    %660 = arith.mulf %651, %636 : vector<8x128xf32>
    %661 = arith.mulf %645, %653 : vector<8x128xf32>
    %662 = arith.addf %660, %661 : vector<8x128xf32>
    %663 = math.tanh %662 : vector<8x128xf32>
    %664 = arith.mulf %659, %663 : vector<8x128xf32>
    %c5_i32_231 = arith.constant 5 : i32
    %665 = vector.broadcast %c5_i32_231 : i32 to vector<8x1xi32>
    %666 = arith.cmpi sgt, %0, %665 : vector<8x1xi32>
    %667 = arith.extui %666 : vector<8x1xi1> to vector<8x1xi32>
    %668 = arith.sitofp %667 : vector<8x1xi32> to vector<8x1xf32>
    %669 = vector.shape_cast %668 : vector<8x1xf32> to vector<8x1xf32>
    %670 = vector.broadcast %669 : vector<8x1xf32> to vector<8x128xf32>
    %671 = arith.subf %662, %636 : vector<8x128xf32>
    %672 = arith.mulf %670, %671 : vector<8x128xf32>
    %673 = arith.addf %636, %672 : vector<8x128xf32>
    %674 = arith.subf %664, %635 : vector<8x128xf32>
    %675 = arith.mulf %670, %674 : vector<8x128xf32>
    %676 = arith.addf %635, %675 : vector<8x128xf32>
    %c0_232 = arith.constant 0 : index
    %c0_233 = arith.constant 0 : index
    %677 = vector.load %arg13[%c0_232, %c0_233] : memref<8x128xf32, #tpu.memory_space<vmem>>, vector<8x128xf32>
    tpu.vector_store %arg13[%c0_232, %c0_233], %673 {strides = array<i32>} : memref<8x128xf32, #tpu.memory_space<vmem>>, vector<8x128xf32>,
    %c0_234 = arith.constant 0 : index
    %c0_235 = arith.constant 0 : index
    %678 = vector.load %arg12[%c0_234, %c0_235] : memref<8x128xf32, #tpu.memory_space<vmem>>, vector<8x128xf32>
    tpu.vector_store %arg12[%c0_234, %c0_235], %676 {strides = array<i32>} : memref<8x128xf32, #tpu.memory_space<vmem>>, vector<8x128xf32>,
    %c48_236 = arith.constant 48 : index
    %c0_237 = arith.constant 0 : index
    %679 = vector.load %arg10[%c48_236, %c0_237] : memref<64x512xbf16, #tpu.memory_space<vmem>>, vector<8x512xbf16>
    %680 = arith.extf %679 : vector<8x512xbf16> to vector<8x512xf32>
    %c0_238 = arith.constant 0 : index
    %c0_239 = arith.constant 0 : index
    %681 = vector.load %arg12[%c0_238, %c0_239] : memref<8x128xf32, #tpu.memory_space<vmem>>, vector<8x128xf32>
    %c0_240 = arith.constant 0 : index
    %c0_241 = arith.constant 0 : index
    %682 = vector.load %arg13[%c0_240, %c0_241] : memref<8x128xf32, #tpu.memory_space<vmem>>, vector<8x128xf32>
    %683 = arith.truncf %681 : vector<8x128xf32> to vector<8x128xbf16>
    %cst_242 = arith.constant dense<0.000000e+00> : vector<8x512xf32>
    %684 = tpu.matmul %683, %402, %cst_242 {dimension_numbers = #tpu.dot_dimension_numbers<[1], [0], [0], [1], [0, 0, 1, 1], [], []>} : vector<8x128xbf16>, vector<128x512xbf16>, vector<8x512xf32> -> vector<8x512xf32>
    %685 = arith.addf %680, %684 : vector<8x512xf32>
    %686 = vector.extract_strided_slice %685 {offsets = [0, 0], sizes = [8, 128], strides = [1, 1]} : vector<8x512xf32> to vector<8x128xf32>
    %687 = arith.negf %686 : vector<8x128xf32>
    %688 = math.exp %687 : vector<8x128xf32>
    %cst_243 = arith.constant 1.000000e+00 : f32
    %689 = vector.broadcast %cst_243 : f32 to vector<8x128xf32>
    %690 = arith.addf %689, %688 : vector<8x128xf32>
    %691 = arith.divf %689, %690 : vector<8x128xf32>
    %692 = vector.extract_strided_slice %685 {offsets = [0, 128], sizes = [8, 128], strides = [1, 1]} : vector<8x512xf32> to vector<8x128xf32>
    %693 = arith.negf %692 : vector<8x128xf32>
    %694 = math.exp %693 : vector<8x128xf32>
    %cst_244 = arith.constant 1.000000e+00 : f32
    %695 = vector.broadcast %cst_244 : f32 to vector<8x128xf32>
    %696 = arith.addf %695, %694 : vector<8x128xf32>
    %697 = arith.divf %695, %696 : vector<8x128xf32>
    %698 = vector.extract_strided_slice %685 {offsets = [0, 256], sizes = [8, 128], strides = [1, 1]} : vector<8x512xf32> to vector<8x128xf32>
    %699 = math.tanh %698 : vector<8x128xf32>
    %700 = vector.extract_strided_slice %685 {offsets = [0, 384], sizes = [8, 128], strides = [1, 1]} : vector<8x512xf32> to vector<8x128xf32>
    %701 = arith.negf %700 : vector<8x128xf32>
    %702 = math.exp %701 : vector<8x128xf32>
    %cst_245 = arith.constant 1.000000e+00 : f32
    %703 = vector.broadcast %cst_245 : f32 to vector<8x128xf32>
    %704 = arith.addf %703, %702 : vector<8x128xf32>
    %705 = arith.divf %703, %704 : vector<8x128xf32>
    %706 = arith.mulf %697, %682 : vector<8x128xf32>
    %707 = arith.mulf %691, %699 : vector<8x128xf32>
    %708 = arith.addf %706, %707 : vector<8x128xf32>
    %709 = math.tanh %708 : vector<8x128xf32>
    %710 = arith.mulf %705, %709 : vector<8x128xf32>
    %c6_i32_246 = arith.constant 6 : i32
    %711 = vector.broadcast %c6_i32_246 : i32 to vector<8x1xi32>
    %712 = arith.cmpi sgt, %0, %711 : vector<8x1xi32>
    %713 = arith.extui %712 : vector<8x1xi1> to vector<8x1xi32>
    %714 = arith.sitofp %713 : vector<8x1xi32> to vector<8x1xf32>
    %715 = vector.shape_cast %714 : vector<8x1xf32> to vector<8x1xf32>
    %716 = vector.broadcast %715 : vector<8x1xf32> to vector<8x128xf32>
    %717 = arith.subf %708, %682 : vector<8x128xf32>
    %718 = arith.mulf %716, %717 : vector<8x128xf32>
    %719 = arith.addf %682, %718 : vector<8x128xf32>
    %720 = arith.subf %710, %681 : vector<8x128xf32>
    %721 = arith.mulf %716, %720 : vector<8x128xf32>
    %722 = arith.addf %681, %721 : vector<8x128xf32>
    %c0_247 = arith.constant 0 : index
    %c0_248 = arith.constant 0 : index
    %723 = vector.load %arg13[%c0_247, %c0_248] : memref<8x128xf32, #tpu.memory_space<vmem>>, vector<8x128xf32>
    tpu.vector_store %arg13[%c0_247, %c0_248], %719 {strides = array<i32>} : memref<8x128xf32, #tpu.memory_space<vmem>>, vector<8x128xf32>,
    %c0_249 = arith.constant 0 : index
    %c0_250 = arith.constant 0 : index
    %724 = vector.load %arg12[%c0_249, %c0_250] : memref<8x128xf32, #tpu.memory_space<vmem>>, vector<8x128xf32>
    tpu.vector_store %arg12[%c0_249, %c0_250], %722 {strides = array<i32>} : memref<8x128xf32, #tpu.memory_space<vmem>>, vector<8x128xf32>,
    %c56_251 = arith.constant 56 : index
    %c0_252 = arith.constant 0 : index
    %725 = vector.load %arg10[%c56_251, %c0_252] : memref<64x512xbf16, #tpu.memory_space<vmem>>, vector<8x512xbf16>
    %726 = arith.extf %725 : vector<8x512xbf16> to vector<8x512xf32>
    %c0_253 = arith.constant 0 : index
    %c0_254 = arith.constant 0 : index
    %727 = vector.load %arg12[%c0_253, %c0_254] : memref<8x128xf32, #tpu.memory_space<vmem>>, vector<8x128xf32>
    %c0_255 = arith.constant 0 : index
    %c0_256 = arith.constant 0 : index
    %728 = vector.load %arg13[%c0_255, %c0_256] : memref<8x128xf32, #tpu.memory_space<vmem>>, vector<8x128xf32>
    %729 = arith.truncf %727 : vector<8x128xf32> to vector<8x128xbf16>
    %cst_257 = arith.constant dense<0.000000e+00> : vector<8x512xf32>
    %730 = tpu.matmul %729, %402, %cst_257 {dimension_numbers = #tpu.dot_dimension_numbers<[1], [0], [0], [1], [0, 0, 1, 1], [], []>} : vector<8x128xbf16>, vector<128x512xbf16>, vector<8x512xf32> -> vector<8x512xf32>
    %731 = arith.addf %726, %730 : vector<8x512xf32>
    %732 = vector.extract_strided_slice %731 {offsets = [0, 0], sizes = [8, 128], strides = [1, 1]} : vector<8x512xf32> to vector<8x128xf32>
    %733 = arith.negf %732 : vector<8x128xf32>
    %734 = math.exp %733 : vector<8x128xf32>
    %cst_258 = arith.constant 1.000000e+00 : f32
    %735 = vector.broadcast %cst_258 : f32 to vector<8x128xf32>
    %736 = arith.addf %735, %734 : vector<8x128xf32>
    %737 = arith.divf %735, %736 : vector<8x128xf32>
    %738 = vector.extract_strided_slice %731 {offsets = [0, 128], sizes = [8, 128], strides = [1, 1]} : vector<8x512xf32> to vector<8x128xf32>
    %739 = arith.negf %738 : vector<8x128xf32>
    %740 = math.exp %739 : vector<8x128xf32>
    %cst_259 = arith.constant 1.000000e+00 : f32
    %741 = vector.broadcast %cst_259 : f32 to vector<8x128xf32>
    %742 = arith.addf %741, %740 : vector<8x128xf32>
    %743 = arith.divf %741, %742 : vector<8x128xf32>
    %744 = vector.extract_strided_slice %731 {offsets = [0, 256], sizes = [8, 128], strides = [1, 1]} : vector<8x512xf32> to vector<8x128xf32>
    %745 = math.tanh %744 : vector<8x128xf32>
    %746 = vector.extract_strided_slice %731 {offsets = [0, 384], sizes = [8, 128], strides = [1, 1]} : vector<8x512xf32> to vector<8x128xf32>
    %747 = arith.negf %746 : vector<8x128xf32>
    %748 = math.exp %747 : vector<8x128xf32>
    %cst_260 = arith.constant 1.000000e+00 : f32
    %749 = vector.broadcast %cst_260 : f32 to vector<8x128xf32>
    %750 = arith.addf %749, %748 : vector<8x128xf32>
    %751 = arith.divf %749, %750 : vector<8x128xf32>
    %752 = arith.mulf %743, %728 : vector<8x128xf32>
    %753 = arith.mulf %737, %745 : vector<8x128xf32>
    %754 = arith.addf %752, %753 : vector<8x128xf32>
    %755 = math.tanh %754 : vector<8x128xf32>
    %756 = arith.mulf %751, %755 : vector<8x128xf32>
    %c7_i32_261 = arith.constant 7 : i32
    %757 = vector.broadcast %c7_i32_261 : i32 to vector<8x1xi32>
    %758 = arith.cmpi sgt, %0, %757 : vector<8x1xi32>
    %759 = arith.extui %758 : vector<8x1xi1> to vector<8x1xi32>
    %760 = arith.sitofp %759 : vector<8x1xi32> to vector<8x1xf32>
    %761 = vector.shape_cast %760 : vector<8x1xf32> to vector<8x1xf32>
    %762 = vector.broadcast %761 : vector<8x1xf32> to vector<8x128xf32>
    %763 = arith.subf %754, %728 : vector<8x128xf32>
    %764 = arith.mulf %762, %763 : vector<8x128xf32>
    %765 = arith.addf %728, %764 : vector<8x128xf32>
    %766 = arith.subf %756, %727 : vector<8x128xf32>
    %767 = arith.mulf %762, %766 : vector<8x128xf32>
    %768 = arith.addf %727, %767 : vector<8x128xf32>
    %c0_262 = arith.constant 0 : index
    %c0_263 = arith.constant 0 : index
    %769 = vector.load %arg13[%c0_262, %c0_263] : memref<8x128xf32, #tpu.memory_space<vmem>>, vector<8x128xf32>
    tpu.vector_store %arg13[%c0_262, %c0_263], %765 {strides = array<i32>} : memref<8x128xf32, #tpu.memory_space<vmem>>, vector<8x128xf32>,
    %c0_264 = arith.constant 0 : index
    %c0_265 = arith.constant 0 : index
    %770 = vector.load %arg12[%c0_264, %c0_265] : memref<8x128xf32, #tpu.memory_space<vmem>>, vector<8x128xf32>
    tpu.vector_store %arg12[%c0_264, %c0_265], %768 {strides = array<i32>} : memref<8x128xf32, #tpu.memory_space<vmem>>, vector<8x128xf32>,
    %c0_266 = arith.constant 0 : index
    %c0_267 = arith.constant 0 : index
    %771 = vector.load %arg12[%c0_266, %c0_267] : memref<8x128xf32, #tpu.memory_space<vmem>>, vector<8x128xf32>
    %772 = arith.truncf %771 : vector<8x128xf32> to vector<8x128xbf16>
    %c0_268 = arith.constant 0 : index
    %c0_269 = arith.constant 0 : index
    %773 = vector.load %arg7[%c0_268, %c0_269] : memref<128x128xbf16, #tpu.memory_space<vmem>>, vector<128x128xbf16>
    %cst_270 = arith.constant dense<0.000000e+00> : vector<8x128xf32>
    %774 = tpu.matmul %772, %773, %cst_270 {dimension_numbers = #tpu.dot_dimension_numbers<[1], [0], [0], [1], [0, 0, 1, 1], [], []>} : vector<8x128xbf16>, vector<128x128xbf16>, vector<8x128xf32> -> vector<8x128xf32>
    %c0_271 = arith.constant 0 : index
    %c0_272 = arith.constant 0 : index
    %775 = vector.load %arg8[%c0_271, %c0_272] : memref<1x128xf32, #tpu.memory_space<vmem>>, vector<1x128xf32>
    %776 = vector.broadcast %775 : vector<1x128xf32> to vector<8x128xf32>
    %777 = arith.addf %774, %776 : vector<8x128xf32>
    %c0_273 = arith.constant 0 : index
    %c0_274 = arith.constant 0 : index
    %778 = vector.load %arg9[%c0_273, %c0_274] : memref<8x128xf32, #tpu.memory_space<vmem>>, vector<8x128xf32>
    tpu.vector_store %arg9[%c0_273, %c0_274], %777 {strides = array<i32>} : memref<8x128xf32, #tpu.memory_space<vmem>>, vector<8x128xf32>,
    return
  }
  func.func @transform_0(%arg0: i32) -> (i32, i32) {
    %c0_i32 = arith.constant 0 : i32
    %c0_i32_0 = arith.constant 0 : i32
    %c0_i32_1 = arith.constant 0 : i32
    return %c0_i32, %c0_i32_0 : i32, i32
  }
  func.func @transform_1(%arg0: i32) -> (i32, i32) {
    %c0_i32 = arith.constant 0 : i32
    %c0_i32_0 = arith.constant 0 : i32
    %c0_i32_1 = arith.constant 0 : i32
    return %c0_i32, %c0_i32_0 : i32, i32
  }
  func.func @transform_2(%arg0: i32) -> (i32, i32) {
    %c0_i32 = arith.constant 0 : i32
    %c0_i32_0 = arith.constant 0 : i32
    %c0_i32_1 = arith.constant 0 : i32
    return %c0_i32, %c0_i32_0 : i32, i32
  }
  func.func @transform_3(%arg0: i32) -> (i32, i32) {
    %c0_i32 = arith.constant 0 : i32
    %c0_i32_0 = arith.constant 0 : i32
    %c0_i32_1 = arith.constant 0 : i32
    return %c0_i32, %c0_i32_0 : i32, i32
  }
  func.func @transform_4(%arg0: i32) -> (i32, i32) {
    %c0_i32 = arith.constant 0 : i32
    %c0_i32_0 = arith.constant 0 : i32
    %c0_i32_1 = arith.constant 0 : i32
    return %c0_i32, %c0_i32_0 : i32, i32
  }
  func.func @transform_5(%arg0: i32) -> (i32, i32) {
    %c0_i32 = arith.constant 0 : i32
    %c0_i32_0 = arith.constant 0 : i32
    %c0_i32_1 = arith.constant 0 : i32
    return %c0_i32, %c0_i32_0 : i32, i32
  }
  func.func @transform_6(%arg0: i32) -> (i32, i32) {
    %c0_i32 = arith.constant 0 : i32
    %c0_i32_0 = arith.constant 0 : i32
    %c0_i32_1 = arith.constant 0 : i32
    return %c0_i32, %c0_i32_0 : i32, i32
  }
  func.func @transform_7(%arg0: i32) -> (i32, i32) {
    %c0_i32 = arith.constant 0 : i32
    %c0_i32_0 = arith.constant 0 : i32
    %c0_i32_1 = arith.constant 0 : i32
    return %c0_i32, %c0_i32_0 : i32, i32
  }
  func.func @transform_8(%arg0: i32) -> (i32, i32) {
    %c0_i32 = arith.constant 0 : i32
    %c0_i32_0 = arith.constant 0 : i32
    %c0_i32_1 = arith.constant 0 : i32
    return %c0_i32, %c0_i32_0 : i32, i32
  }
}

</mosaic_0001>

<llo_original>
// kernel: rnn_forward.1
$region0: #{rnn_forward.1}
  #allocation0 [shape = 'u32[]', space=smem, size = 0x4, offset = 0x4, fixed_abs, tag = 'smem constant byte address 0x4 - core index']
  #allocation1 [shape = 'u32[144,128]{1,0:T(1,128)}', space=vmem, size = 0x12000, scoped, tag = 'internal scratch']
  #allocation2 [shape = 'bf16[64,512]{1,0:T(16,128)(2,1)}', space=vmem, size = 0x10000, scoped, tag = 'scratch operand']
  #allocation3 [shape = 'bf16[64,128]{1,0:T(16,128)(2,1)}', space=vmem, size = 0x4000, scoped, tag = 'scratch operand']
  #allocation4 [shape = 'f32[8,128]{1,0:T(8,128)}', space=vmem, size = 0x1000, scoped, tag = 'scratch operand']
  #allocation5 [shape = 'f32[8,128]{1,0:T(8,128)}', space=vmem, size = 0x1000, scoped, tag = 'scratch operand']
  %s0 = inlined_call_operand.vmem [shape: s32[8,1], index: 0, kind: input, shape index: {}]
  %s1 = inlined_call_operand.vmem [shape: bf16[64,512], index: 1, kind: input, shape index: {}]
  %s2 = inlined_call_operand.vmem [shape: bf16[128,512], index: 2, kind: input, shape index: {}]
  %s3 = inlined_call_operand.hbm [shape: bf16[128,512], index: 3, kind: input, shape index: {}]
  %s4 = inlined_call_operand.hbm [shape: bf16[128,512], index: 4, kind: input, shape index: {}]
  %s5 = inlined_call_operand.vmem [shape: f32[1,512], index: 5, kind: input, shape index: {}]
  %s6 = inlined_call_operand.vmem [shape: bf16[128,128], index: 6, kind: input, shape index: {}]
  %s7 = inlined_call_operand.vmem [shape: f32[1,128], index: 7, kind: input, shape index: {}]
  %s8 = inlined_call_operand.vmem [shape: f32[8,128], index: 8, kind: output, shape index: {}]
  %s9 = sld [smem:[#allocation0]]
  $region50: #{rnn_forward.1} parent=0
    _
  %s11 = ssub.s32 1, %s9
  %s12 = scalar_select 0, %s11, %s9
  $region1: #{rnn_forward.1} parent=0
    #allocation6 [shape = 'u8[131072]{0}', space=vmem, size = 0x20000, scoped, tag = 'input window, operand 3, single buffered']
    #allocation7 [shape = 's32[1]{0}', space=sflag, size = 0x4, scoped, tag = 'scoped memory for rnn_forward.1']
    #allocation8 [shape = 'u8[131072]{0}', space=vmem, size = 0x20000, scoped, tag = 'input window, operand 4, single buffered']
    #allocation9 [shape = 's32[1]{0}', space=sflag, size = 0x4, scoped, tag = 'scoped memory for rnn_forward.1']
    %13 = vsyncpa [#allocation7], 0
    %14 = vsyncpa [#allocation9], 0
    // Predicated region
    $region2: #{rnn_forward.1} parent=1 // pred_check
      _
    $region3: #{rnn_forward.1} parent=1 // pred_check_branch
      %16 = sbr.rel (0) target = $region5
    $region4: #{rnn_forward.1} parent=1 // pred_region
      _
    $region5: #{rnn_forward.1} parent=1 // pred_fallthru
      _
    // Predicated region
    $region6: #{rnn_forward.1} parent=1 // pred_check
      _
    $region7: #{rnn_forward.1} parent=1 // pred_check_branch
      %18 = sbr.rel (0) target = $region9
    $region8: #{rnn_forward.1} parent=1 // pred_region
      _
    $region9: #{rnn_forward.1} parent=1 // pred_fallthru
      _
    // Predicated region
    $region10: #{rnn_forward.1} parent=1 // pred_check
      _
    $region11: #{rnn_forward.1} parent=1 // pred_check_branch
      %20 = sbr.rel (0) target = $region13
    $region12: #{rnn_forward.1} parent=1 // pred_region
      _
    $region13: #{rnn_forward.1} parent=1 // pred_fallthru
      _
    // Predicated region
    $region14: #{rnn_forward.1} parent=1 // pred_check
      _
    $region15: #{rnn_forward.1} parent=1 // pred_check_branch
      %22 = sbr.rel (0) target = $region17
    $region16: #{rnn_forward.1} parent=1 // pred_region
      %s24 = ssub.s32 4096, 4096
      %25 = vsyncadd [#allocation7], %s24
      %s26 = sshll.u32 [#allocation6], 4
      %s27 = int_to_ptr.vmem [resolvable:$true] %s26
      %32 = dma.hbm_to_vmem [thread:$0]  %s3, 4096, %s27, [#allocation7], 256, 256, 16
    $region17: #{rnn_forward.1} parent=1 // pred_fallthru
      _
    // Predicated region
    $region18: #{rnn_forward.1} parent=1 // pred_check
      _
    $region19: #{rnn_forward.1} parent=1 // pred_check_branch
      %34 = sbr.rel (0) target = $region21
    $region20: #{rnn_forward.1} parent=1 // pred_region
      %s36 = ssub.s32 4096, 4096
      %37 = vsyncadd [#allocation9], %s36
      %s38 = sshll.u32 [#allocation8], 4
      %s39 = int_to_ptr.vmem [resolvable:$true] %s38
      %44 = dma.hbm_to_vmem [thread:$0]  %s4, 4096, %s39, [#allocation9], 256, 256, 16
    $region21: #{rnn_forward.1} parent=1 // pred_fallthru
      _
    // Predicated region
    $region22: #{rnn_forward.1} parent=1 // pred_check
      _
    $region23: #{rnn_forward.1} parent=1 // pred_check_branch
      %46 = sbr.rel (0) target = $region25
    $region24: #{rnn_forward.1} parent=1 // pred_region
      _
    $region25: #{rnn_forward.1} parent=1 // pred_fallthru
      _
    // Predicated region
    $region26: #{rnn_forward.1} parent=1 // pred_check
      _
    $region27: #{rnn_forward.1} parent=1 // pred_check_branch
      %48 = sbr.rel (0) target = $region29
    $region28: #{rnn_forward.1} parent=1 // pred_region
      _
    $region29: #{rnn_forward.1} parent=1 // pred_fallthru
      _
    // Predicated region
    $region30: #{rnn_forward.1} parent=1 // pred_check
      _
    $region31: #{rnn_forward.1} parent=1 // pred_check_branch
      %50 = sbr.rel (0) target = $region33
    $region32: #{rnn_forward.1} parent=1 // pred_region
      _
    $region33: #{rnn_forward.1} parent=1 // pred_fallthru
      _
    // Predicated region
    $region34: #{rnn_forward.1} parent=1 // pred_check
      _
    $region35: #{rnn_forward.1} parent=1 // pred_check_branch
      %52 = sbr.rel (0) target = $region37
    $region36: #{rnn_forward.1} parent=1 // pred_region
      %53 = dma.done [#allocation7], 4096
    $region37: #{rnn_forward.1} parent=1 // pred_fallthru
      _
    // Predicated region
    $region38: #{rnn_forward.1} parent=1 // pred_check
      _
    $region39: #{rnn_forward.1} parent=1 // pred_check_branch
      %55 = sbr.rel (0) target = $region41
    $region40: #{rnn_forward.1} parent=1 // pred_region
      %56 = dma.done [#allocation9], 4096
    $region41: #{rnn_forward.1} parent=1 // pred_fallthru
      _
    %v58 = vld [vmem:[%s0] sm:$0xff]
    %59 = vst [vmem:[#allocation4] sm:$0xff] 0.0
    %60 = vst [vmem:[#allocation5] sm:$0xff] 0.0
    %v61 = vld [vmem:[%s2] sm:$0xff]
    %v62 = vld [vmem:[%s2 + $0x8] sm:$0xff]
    %v63 = vld [vmem:[%s2 + $0x10] sm:$0xff]
    %v64 = vld [vmem:[%s2 + $0x18] sm:$0xff]
    %v65 = vld [vmem:[%s2 + $0x20] sm:$0xff]
    %v66 = vld [vmem:[%s2 + $0x28] sm:$0xff]
    %v67 = vld [vmem:[%s2 + $0x30] sm:$0xff]
    %v68 = vld [vmem:[%s2 + $0x38] sm:$0xff]
    %v69 = vld [vmem:[%s2 + $0x40] sm:$0xff]
    %v70 = vld [vmem:[%s2 + $0x48] sm:$0xff]
    %v71 = vld [vmem:[%s2 + $0x50] sm:$0xff]
    %v72 = vld [vmem:[%s2 + $0x58] sm:$0xff]
    %v73 = vld [vmem:[%s2 + $0x60] sm:$0xff]
    %v74 = vld [vmem:[%s2 + $0x68] sm:$0xff]
    %v75 = vld [vmem:[%s2 + $0x70] sm:$0xff]
    %v76 = vld [vmem:[%s2 + $0x78] sm:$0xff]
    %v77 = vld [vmem:[%s2 + $0x80] sm:$0xff]
    %v78 = vld [vmem:[%s2 + $0x88] sm:$0xff]
    %v79 = vld [vmem:[%s2 + $0x90] sm:$0xff]
    %v80 = vld [vmem:[%s2 + $0x98] sm:$0xff]
    %v81 = vld [vmem:[%s2 + $0xa0] sm:$0xff]
    %v82 = vld [vmem:[%s2 + $0xa8] sm:$0xff]
    %v83 = vld [vmem:[%s2 + $0xb0] sm:$0xff]
    %v84 = vld [vmem:[%s2 + $0xb8] sm:$0xff]
    %v85 = vld [vmem:[%s2 + $0xc0] sm:$0xff]
    %v86 = vld [vmem:[%s2 + $0xc8] sm:$0xff]
    %v87 = vld [vmem:[%s2 + $0xd0] sm:$0xff]
    %v88 = vld [vmem:[%s2 + $0xd8] sm:$0xff]
    %v89 = vld [vmem:[%s2 + $0xe0] sm:$0xff]
    %v90 = vld [vmem:[%s2 + $0xe8] sm:$0xff]
    %v91 = vld [vmem:[%s2 + $0xf0] sm:$0xff]
    %v92 = vld [vmem:[%s2 + $0xf8] sm:$0xff]
    %v93 = vld [vmem:[%s1] sm:$0xff]
    %v94 = vld [vmem:[%s1 + $0x8] sm:$0xff]
    %v95 = vunpack.c.l.bf16 %v93
    %v96 = vunpack.c.h.bf16 %v93
    %v97 = vunpack.c.l.bf16 %v94
    %v98 = vunpack.c.h.bf16 %v94
    %v99 = vld [vmem:[#allocation4] sm:$0xff]
    %v100 = vld [vmem:[#allocation5] sm:$0xff]
    %v101 = vpack.c.bf16 %v99, %v99
    %v134 = vunpack.c.l.b16 %v61
    %v135 = vunpack.c.h.b16 %v61
    %v136 = vunpack.c.l.b16 %v62
    %v137 = vunpack.c.h.b16 %v62
    %v138 = vunpack.c.l.b16 %v63
    %v139 = vunpack.c.h.b16 %v63
    %v140 = vunpack.c.l.b16 %v64
    %v141 = vunpack.c.h.b16 %v64
    %v142 = vunpack.c.l.b16 %v65
    %v143 = vunpack.c.h.b16 %v65
    %v144 = vunpack.c.l.b16 %v66
    %v145 = vunpack.c.h.b16 %v66
    %v146 = vunpack.c.l.b16 %v67
    %v147 = vunpack.c.h.b16 %v67
    %v148 = vunpack.c.l.b16 %v68
    %v149 = vunpack.c.h.b16 %v68
    %v150 = vunpack.c.l.b16 %v69
    %v151 = vunpack.c.h.b16 %v69
    %v152 = vunpack.c.l.b16 %v70
    %v153 = vunpack.c.h.b16 %v70
    %v154 = vunpack.c.l.b16 %v71
    %v155 = vunpack.c.h.b16 %v71
    %v156 = vunpack.c.l.b16 %v72
    %v157 = vunpack.c.h.b16 %v72
    %v158 = vunpack.c.l.b16 %v73
    %v159 = vunpack.c.h.b16 %v73
    %v160 = vunpack.c.l.b16 %v74
    %v161 = vunpack.c.h.b16 %v74
    %v162 = vunpack.c.l.b16 %v75
    %v163 = vunpack.c.h.b16 %v75
    %v164 = vunpack.c.l.b16 %v76
    %v165 = vunpack.c.h.b16 %v76
    %v166 = vunpack.c.l.b16 %v77
    %v167 = vunpack.c.h.b16 %v77
    %v168 = vunpack.c.l.b16 %v78
    %v169 = vunpack.c.h.b16 %v78
    %v170 = vunpack.c.l.b16 %v79
    %v171 = vunpack.c.h.b16 %v79
    %v172 = vunpack.c.l.b16 %v80
    %v173 = vunpack.c.h.b16 %v80
    %v174 = vunpack.c.l.b16 %v81
    %v175 = vunpack.c.h.b16 %v81
    %v176 = vunpack.c.l.b16 %v82
    %v177 = vunpack.c.h.b16 %v82
    %v178 = vunpack.c.l.b16 %v83
    %v179 = vunpack.c.h.b16 %v83
    %v180 = vunpack.c.l.b16 %v84
    %v181 = vunpack.c.h.b16 %v84
    %v182 = vunpack.c.l.b16 %v85
    %v183 = vunpack.c.h.b16 %v85
    %v184 = vunpack.c.l.b16 %v86
    %v185 = vunpack.c.h.b16 %v86
    %v186 = vunpack.c.l.b16 %v87
    %v187 = vunpack.c.h.b16 %v87
    %v188 = vunpack.c.l.b16 %v88
    %v189 = vunpack.c.h.b16 %v88
    %v190 = vunpack.c.l.b16 %v89
    %v191 = vunpack.c.h.b16 %v89
    %v192 = vunpack.c.l.b16 %v90
    %v193 = vunpack.c.h.b16 %v90
    %v194 = vunpack.c.l.b16 %v91
    %v195 = vunpack.c.h.b16 %v91
    %v196 = vunpack.c.l.b16 %v92
    %v197 = vunpack.c.h.b16 %v92
    %v198 = vpack.c.b16 %v138, %v134
    %v199 = vpack.c.b16 %v139, %v135
    %v200 = vpack.c.b16 %v140, %v136
    %v201 = vpack.c.b16 %v141, %v137
    %v202 = vpack.c.b16 %v146, %v142
    %v203 = vpack.c.b16 %v147, %v143
    %v204 = vpack.c.b16 %v148, %v144
    %v205 = vpack.c.b16 %v149, %v145
    %v206 = vpack.c.b16 %v154, %v150
    %v207 = vpack.c.b16 %v155, %v151
    %v208 = vpack.c.b16 %v156, %v152
    %v209 = vpack.c.b16 %v157, %v153
    %v210 = vpack.c.b16 %v162, %v158
    %v211 = vpack.c.b16 %v163, %v159
    %v212 = vpack.c.b16 %v164, %v160
    %v213 = vpack.c.b16 %v165, %v161
    %v214 = vpack.c.b16 %v170, %v166
    %v215 = vpack.c.b16 %v171, %v167
    %v216 = vpack.c.b16 %v172, %v168
    %v217 = vpack.c.b16 %v173, %v169
    %v218 = vpack.c.b16 %v178, %v174
    %v219 = vpack.c.b16 %v179, %v175
    %v220 = vpack.c.b16 %v180, %v176
    %v221 = vpack.c.b16 %v181, %v177
    %v222 = vpack.c.b16 %v186, %v182
    %v223 = vpack.c.b16 %v187, %v183
    %v224 = vpack.c.b16 %v188, %v184
    %v225 = vpack.c.b16 %v189, %v185
    %v226 = vpack.c.b16 %v194, %v190
    %v227 = vpack.c.b16 %v195, %v191
    %v228 = vpack.c.b16 %v196, %v192
    %v229 = vpack.c.b16 %v197, %v193
    %262 = vmatprep.subr.bf16.mxu0 %v199
    %263 = vmatpush1.bf16.msra.mxu0 %v198
    %264 = vmatprep.subr.bf16.mxu0 %v203
    %265 = vmatpush1.bf16.msra.mxu0 %v202
    %266 = vmatprep.subr.bf16.mxu0 %v207
    %267 = vmatpush1.bf16.msra.mxu0 %v206
    %268 = vmatprep.subr.bf16.mxu0 %v211
    %269 = vmatpush1.bf16.msra.mxu0 %v210
    %270 = vmatprep.subr.bf16.mxu0 %v215
    %271 = vmatpush1.bf16.msra.mxu0 %v214
    %272 = vmatprep.subr.bf16.mxu0 %v219
    %273 = vmatpush1.bf16.msra.mxu0 %v218
    %274 = vmatprep.subr.bf16.mxu0 %v223
    %275 = vmatpush1.bf16.msra.mxu0 %v222
    %276 = vmatprep.subr.bf16.mxu0 %v227
    %277 = vmatpush1.bf16.msra.mxu0 %v226
    %278 = vmatprep.subr.bf16.mxu0 0
    %279 = vmatpush1.bf16.msra.mxu0 0
    %280 = vmatprep.subr.bf16.mxu0 0
    %281 = vmatpush1.bf16.msra.mxu0 0
    %282 = vmatprep.subr.bf16.mxu0 0
    %283 = vmatpush1.bf16.msra.mxu0 0
    %284 = vmatprep.subr.bf16.mxu0 0
    %285 = vmatpush1.bf16.msra.mxu0 0
    %286 = vmatprep.subr.bf16.mxu0 0
    %287 = vmatpush1.bf16.msra.mxu0 0
    %288 = vmatprep.subr.bf16.mxu0 0
    %289 = vmatpush1.bf16.msra.mxu0 0
    %290 = vmatprep.subr.bf16.mxu0 0
    %291 = vmatpush1.bf16.msra.mxu0 0
    %292 = vmatprep.subr.bf16.mxu0 0
    %293 = vmatpush1.bf16.msra.mxu0 0
    %294 = vmatprep.mubr.bf16.mxu0 0
    %295 = vmatmul.mubr.bf16.gmra.mrb[0].mxu0 %v101
    %v296 = vpop.f32.mrb[0].mxu0
    %v297 = vadd.f32 0.0, %v296
    %v298 = vpop.f32.mrb[0].mxu0
    %v299 = vadd.f32 0.0, %v298
    %v300 = vpop.f32.mrb[0].mxu0
    %v301 = vpop.f32.mrb[0].mxu0
    %302 = vdwg.mxu0
    %303 = vmatprep.subr.bf16.mxu0 %v201
    %304 = vmatpush1.bf16.msra.mxu0 %v200
    %305 = vmatprep.subr.bf16.mxu0 %v205
    %306 = vmatpush1.bf16.msra.mxu0 %v204
    %307 = vmatprep.subr.bf16.mxu0 %v209
    %308 = vmatpush1.bf16.msra.mxu0 %v208
    %309 = vmatprep.subr.bf16.mxu0 %v213
    %310 = vmatpush1.bf16.msra.mxu0 %v212
    %311 = vmatprep.subr.bf16.mxu0 %v217
    %312 = vmatpush1.bf16.msra.mxu0 %v216
    %313 = vmatprep.subr.bf16.mxu0 %v221
    %314 = vmatpush1.bf16.msra.mxu0 %v220
    %315 = vmatprep.subr.bf16.mxu0 %v225
    %316 = vmatpush1.bf16.msra.mxu0 %v224
    %317 = vmatprep.subr.bf16.mxu0 %v229
    %318 = vmatpush1.bf16.msra.mxu0 %v228
    %319 = vmatprep.subr.bf16.mxu0 0
    %320 = vmatpush1.bf16.msra.mxu0 0
    %321 = vmatprep.subr.bf16.mxu0 0
    %322 = vmatpush1.bf16.msra.mxu0 0
    %323 = vmatprep.subr.bf16.mxu0 0
    %324 = vmatpush1.bf16.msra.mxu0 0
    %325 = vmatprep.subr.bf16.mxu0 0
    %326 = vmatpush1.bf16.msra.mxu0 0
    %327 = vmatprep.subr.bf16.mxu0 0
    %328 = vmatpush1.bf16.msra.mxu0 0
    %329 = vmatprep.subr.bf16.mxu0 0
    %330 = vmatpush1.bf16.msra.mxu0 0
    %331 = vmatprep.subr.bf16.mxu0 0
    %332 = vmatpush1.bf16.msra.mxu0 0
    %333 = vmatprep.subr.bf16.mxu0 0
    %334 = vmatpush1.bf16.msra.mxu0 0
    %335 = vmatprep.mubr.bf16.mxu0 0
    %336 = vmatmul.mubr.bf16.gmra.mrb[0].mxu0 %v101
    %v337 = vpop.f32.mrb[0].mxu0
    %v338 = vadd.f32 0.0, %v337
    %v339 = vpop.f32.mrb[0].mxu0
    %v340 = vadd.f32 0.0, %v339
    %v341 = vpop.f32.mrb[0].mxu0
    %v342 = vpop.f32.mrb[0].mxu0
    %343 = vdwg.mxu0
    %v344 = vadd.f32 %v95, %v297
    %v345 = vadd.f32 %v96, %v299
    %v346 = vadd.f32 %v97, %v338
    %v347 = vadd.f32 %v98, %v340
    %v348 = vxor.u32 %v344, 2147483648
    %v349 = vmul.f32 %v348, 1.442695
    %v350 = vpow.pop %v349
    %v351 = vadd.f32 %v350, 1.0
    %v352 = vrcp.pop %v351
    %v353 = vmul.f32 1.0, %v352
    %v354 = vxor.u32 %v345, 2147483648
    %v355 = vmul.f32 %v354, 1.442695
    %v356 = vpow.pop %v355
    %v357 = vadd.f32 %v356, 1.0
    %v358 = vrcp.pop %v357
    %v359 = vmul.f32 1.0, %v358
    %v360 = vtanh.pop %v346
    %v361 = vxor.u32 %v347, 2147483648
    %v362 = vmul.f32 %v361, 1.442695
    %v363 = vpow.pop %v362
    %v364 = vadd.f32 %v363, 1.0
    %v365 = vrcp.pop %v364
    %v366 = vmul.f32 1.0, %v365
    %v367 = vmul.f32 %v359, %v100
    %v368 = vmul.f32 %v353, %v360
    %v369 = vadd.f32 %v367, %v368
    %v370 = vtanh.pop %v369
    %v371 = vmul.f32 %v366, %v370
    %vm372 = vcmp.gt.s32.totalorder %v58, 0
    %v373 = vsel %vm372, 1, 0
    %v374 = vcvt.s32.f32 %v373
    %376 = vset.pattern.permute.xlu0 0
    %377 = vperm.xlu0 %376, %v374
    %v378 = vpop.permute.xlu0 %377
    %v380 = vsub.f32 %v369, %v100
    %v381 = vmul.f32 %v378, %v380
    %v382 = vadd.f32 %v100, %v381
    %v383 = vsub.f32 %v371, %v99
    %v384 = vmul.f32 %v378, %v383
    %v385 = vadd.f32 %v99, %v384
    %386 = vst [vmem:[#allocation5] sm:$0xff] %v382
    %387 = vst [vmem:[#allocation4] sm:$0xff] %v385
    %v388 = vpack.c.bf16 %v385, %v385
    %389 = vst [vmem:[#allocation3] sm:$0xf] %v388
    %v390 = vld [vmem:[%s1 + $0x10] sm:$0xff]
    %v391 = vld [vmem:[%s1 + $0x18] sm:$0xff]
    %v392 = vunpack.c.l.bf16 %v390
    %v393 = vunpack.c.h.bf16 %v390
    %v394 = vunpack.c.l.bf16 %v391
    %v395 = vunpack.c.h.bf16 %v391
    %v396 = vld [vmem:[#allocation4] sm:$0xff]
    %v397 = vld [vmem:[#allocation5] sm:$0xff]
    %v398 = vpack.c.bf16 %v396, %v396
    %399 = vmatprep.subr.bf16.mxu0 %v199
    %400 = vmatpush1.bf16.msra.mxu0 %v198
    %401 = vmatprep.subr.bf16.mxu0 %v203
    %402 = vmatpush1.bf16.msra.mxu0 %v202
    %403 = vmatprep.subr.bf16.mxu0 %v207
    %404 = vmatpush1.bf16.msra.mxu0 %v206
    %405 = vmatprep.subr.bf16.mxu0 %v211
    %406 = vmatpush1.bf16.msra.mxu0 %v210
    %407 = vmatprep.subr.bf16.mxu0 %v215
    %408 = vmatpush1.bf16.msra.mxu0 %v214
    %409 = vmatprep.subr.bf16.mxu0 %v219
    %410 = vmatpush1.bf16.msra.mxu0 %v218
    %411 = vmatprep.subr.bf16.mxu0 %v223
    %412 = vmatpush1.bf16.msra.mxu0 %v222
    %413 = vmatprep.subr.bf16.mxu0 %v227
    %414 = vmatpush1.bf16.msra.mxu0 %v226
    %415 = vmatprep.subr.bf16.mxu0 0
    %416 = vmatpush1.bf16.msra.mxu0 0
    %417 = vmatprep.subr.bf16.mxu0 0
    %418 = vmatpush1.bf16.msra.mxu0 0
    %419 = vmatprep.subr.bf16.mxu0 0
    %420 = vmatpush1.bf16.msra.mxu0 0
    %421 = vmatprep.subr.bf16.mxu0 0
    %422 = vmatpush1.bf16.msra.mxu0 0
    %423 = vmatprep.subr.bf16.mxu0 0
    %424 = vmatpush1.bf16.msra.mxu0 0
    %425 = vmatprep.subr.bf16.mxu0 0
    %426 = vmatpush1.bf16.msra.mxu0 0
    %427 = vmatprep.subr.bf16.mxu0 0
    %428 = vmatpush1.bf16.msra.mxu0 0
    %429 = vmatprep.subr.bf16.mxu0 0
    %430 = vmatpush1.bf16.msra.mxu0 0
    %431 = vmatprep.mubr.bf16.mxu0 0
    %432 = vmatmul.mubr.bf16.gmra.mrb[0].mxu0 %v398
    %v433 = vpop.f32.mrb[0].mxu0
    %v434 = vadd.f32 0.0, %v433
    %v435 = vpop.f32.mrb[0].mxu0
    %v436 = vadd.f32 0.0, %v435
    %v437 = vpop.f32.mrb[0].mxu0
    %v438 = vpop.f32.mrb[0].mxu0
    %439 = vdwg.mxu0
    %440 = vmatprep.subr.bf16.mxu0 %v201
    %441 = vmatpush1.bf16.msra.mxu0 %v200
    %442 = vmatprep.subr.bf16.mxu0 %v205
    %443 = vmatpush1.bf16.msra.mxu0 %v204
    %444 = vmatprep.subr.bf16.mxu0 %v209
    %445 = vmatpush1.bf16.msra.mxu0 %v208
    %446 = vmatprep.subr.bf16.mxu0 %v213
    %447 = vmatpush1.bf16.msra.mxu0 %v212
    %448 = vmatprep.subr.bf16.mxu0 %v217
    %449 = vmatpush1.bf16.msra.mxu0 %v216
    %450 = vmatprep.subr.bf16.mxu0 %v221
    %451 = vmatpush1.bf16.msra.mxu0 %v220
    %452 = vmatprep.subr.bf16.mxu0 %v225
    %453 = vmatpush1.bf16.msra.mxu0 %v224
    %454 = vmatprep.subr.bf16.mxu0 %v229
    %455 = vmatpush1.bf16.msra.mxu0 %v228
    %456 = vmatprep.subr.bf16.mxu0 0
    %457 = vmatpush1.bf16.msra.mxu0 0
    %458 = vmatprep.subr.bf16.mxu0 0
    %459 = vmatpush1.bf16.msra.mxu0 0
    %460 = vmatprep.subr.bf16.mxu0 0
    %461 = vmatpush1.bf16.msra.mxu0 0
    %462 = vmatprep.subr.bf16.mxu0 0
    %463 = vmatpush1.bf16.msra.mxu0 0
    %464 = vmatprep.subr.bf16.mxu0 0
    %465 = vmatpush1.bf16.msra.mxu0 0
    %466 = vmatprep.subr.bf16.mxu0 0
    %467 = vmatpush1.bf16.msra.mxu0 0
    %468 = vmatprep.subr.bf16.mxu0 0
    %469 = vmatpush1.bf16.msra.mxu0 0
    %470 = vmatprep.subr.bf16.mxu0 0
    %471 = vmatpush1.bf16.msra.mxu0 0
    %472 = vmatprep.mubr.bf16.mxu0 0
    %473 = vmatmul.mubr.bf16.gmra.mrb[0].mxu0 %v398
    %v474 = vpop.f32.mrb[0].mxu0
    %v475 = vadd.f32 0.0, %v474
    %v476 = vpop.f32.mrb[0].mxu0
    %v477 = vadd.f32 0.0, %v476
    %v478 = vpop.f32.mrb[0].mxu0
    %v479 = vpop.f32.mrb[0].mxu0
    %480 = vdwg.mxu0
    %v481 = vadd.f32 %v392, %v434
    %v482 = vadd.f32 %v393, %v436
    %v483 = vadd.f32 %v394, %v475
    %v484 = vadd.f32 %v395, %v477
    %v485 = vxor.u32 %v481, 2147483648
    %v486 = vmul.f32 %v485, 1.442695
    %v487 = vpow.pop %v486
    %v488 = vadd.f32 %v487, 1.0
    %v489 = vrcp.pop %v488
    %v490 = vmul.f32 1.0, %v489
    %v491 = vxor.u32 %v482, 2147483648
    %v492 = vmul.f32 %v491, 1.442695
    %v493 = vpow.pop %v492
    %v494 = vadd.f32 %v493, 1.0
    %v495 = vrcp.pop %v494
    %v496 = vmul.f32 1.0, %v495
    %v497 = vtanh.pop %v483
    %v498 = vxor.u32 %v484, 2147483648
    %v499 = vmul.f32 %v498, 1.442695
    %v500 = vpow.pop %v499
    %v501 = vadd.f32 %v500, 1.0
    %v502 = vrcp.pop %v501
    %v503 = vmul.f32 1.0, %v502
    %v504 = vmul.f32 %v496, %v397
    %v505 = vmul.f32 %v490, %v497
    %v506 = vadd.f32 %v504, %v505
    %v507 = vtanh.pop %v506
    %v508 = vmul.f32 %v503, %v507
    %vm509 = vcmp.gt.s32.totalorder %v58, 1
    %v510 = vsel %vm509, 1, 0
    %v511 = vcvt.s32.f32 %v510
    %513 = vset.pattern.permute.xlu0 0
    %514 = vperm.xlu0 %513, %v511
    %v515 = vpop.permute.xlu0 %514
    %v517 = vsub.f32 %v506, %v397
    %v518 = vmul.f32 %v515, %v517
    %v519 = vadd.f32 %v397, %v518
    %v520 = vsub.f32 %v508, %v396
    %v521 = vmul.f32 %v515, %v520
    %v522 = vadd.f32 %v396, %v521
    %523 = vst [vmem:[#allocation5] sm:$0xff] %v519
    %524 = vst [vmem:[#allocation4] sm:$0xff] %v522
    %v525 = vpack.c.bf16 %v522, %v522
    %v527 = vrot.slane %v525, 4
    %529 = vst [vmem:[#allocation3] sm:$0xf0] %v527
    %v530 = vld [vmem:[%s1 + $0x20] sm:$0xff]
    %v531 = vld [vmem:[%s1 + $0x28] sm:$0xff]
    %v532 = vunpack.c.l.bf16 %v530
    %v533 = vunpack.c.h.bf16 %v530
    %v534 = vunpack.c.l.bf16 %v531
    %v535 = vunpack.c.h.bf16 %v531
    %v536 = vld [vmem:[#allocation4] sm:$0xff]
    %v537 = vld [vmem:[#allocation5] sm:$0xff]
    %v538 = vpack.c.bf16 %v536, %v536
    %539 = vmatprep.subr.bf16.mxu0 %v199
    %540 = vmatpush1.bf16.msra.mxu0 %v198
    %541 = vmatprep.subr.bf16.mxu0 %v203
    %542 = vmatpush1.bf16.msra.mxu0 %v202
    %543 = vmatprep.subr.bf16.mxu0 %v207
    %544 = vmatpush1.bf16.msra.mxu0 %v206
    %545 = vmatprep.subr.bf16.mxu0 %v211
    %546 = vmatpush1.bf16.msra.mxu0 %v210
    %547 = vmatprep.subr.bf16.mxu0 %v215
    %548 = vmatpush1.bf16.msra.mxu0 %v214
    %549 = vmatprep.subr.bf16.mxu0 %v219
    %550 = vmatpush1.bf16.msra.mxu0 %v218
    %551 = vmatprep.subr.bf16.mxu0 %v223
    %552 = vmatpush1.bf16.msra.mxu0 %v222
    %553 = vmatprep.subr.bf16.mxu0 %v227
    %554 = vmatpush1.bf16.msra.mxu0 %v226
    %555 = vmatprep.subr.bf16.mxu0 0
    %556 = vmatpush1.bf16.msra.mxu0 0
    %557 = vmatprep.subr.bf16.mxu0 0
    %558 = vmatpush1.bf16.msra.mxu0 0
    %559 = vmatprep.subr.bf16.mxu0 0
    %560 = vmatpush1.bf16.msra.mxu0 0
    %561 = vmatprep.subr.bf16.mxu0 0
    %562 = vmatpush1.bf16.msra.mxu0 0
    %563 = vmatprep.subr.bf16.mxu0 0
    %564 = vmatpush1.bf16.msra.mxu0 0
    %565 = vmatprep.subr.bf16.mxu0 0
    %566 = vmatpush1.bf16.msra.mxu0 0
    %567 = vmatprep.subr.bf16.mxu0 0
    %568 = vmatpush1.bf16.msra.mxu0 0
    %569 = vmatprep.subr.bf16.mxu0 0
    %570 = vmatpush1.bf16.msra.mxu0 0
    %571 = vmatprep.mubr.bf16.mxu0 0
    %572 = vmatmul.mubr.bf16.gmra.mrb[0].mxu0 %v538
    %v573 = vpop.f32.mrb[0].mxu0
    %v574 = vadd.f32 0.0, %v573
    %v575 = vpop.f32.mrb[0].mxu0
    %v576 = vadd.f32 0.0, %v575
    %v577 = vpop.f32.mrb[0].mxu0
    %v578 = vpop.f32.mrb[0].mxu0
    %579 = vdwg.mxu0
    %580 = vmatprep.subr.bf16.mxu0 %v201
    %581 = vmatpush1.bf16.msra.mxu0 %v200
    %582 = vmatprep.subr.bf16.mxu0 %v205
    %583 = vmatpush1.bf16.msra.mxu0 %v204
    %584 = vmatprep.subr.bf16.mxu0 %v209
    %585 = vmatpush1.bf16.msra.mxu0 %v208
    %586 = vmatprep.subr.bf16.mxu0 %v213
    %587 = vmatpush1.bf16.msra.mxu0 %v212
    %588 = vmatprep.subr.bf16.mxu0 %v217
    %589 = vmatpush1.bf16.msra.mxu0 %v216
    %590 = vmatprep.subr.bf16.mxu0 %v221
    %591 = vmatpush1.bf16.msra.mxu0 %v220
    %592 = vmatprep.subr.bf16.mxu0 %v225
    %593 = vmatpush1.bf16.msra.mxu0 %v224
    %594 = vmatprep.subr.bf16.mxu0 %v229
    %595 = vmatpush1.bf16.msra.mxu0 %v228
    %596 = vmatprep.subr.bf16.mxu0 0
    %597 = vmatpush1.bf16.msra.mxu0 0
    %598 = vmatprep.subr.bf16.mxu0 0
    %599 = vmatpush1.bf16.msra.mxu0 0
    %600 = vmatprep.subr.bf16.mxu0 0
    %601 = vmatpush1.bf16.msra.mxu0 0
    %602 = vmatprep.subr.bf16.mxu0 0
    %603 = vmatpush1.bf16.msra.mxu0 0
    %604 = vmatprep.subr.bf16.mxu0 0
    %605 = vmatpush1.bf16.msra.mxu0 0
    %606 = vmatprep.subr.bf16.mxu0 0
    %607 = vmatpush1.bf16.msra.mxu0 0
    %608 = vmatprep.subr.bf16.mxu0 0
    %609 = vmatpush1.bf16.msra.mxu0 0
    %610 = vmatprep.subr.bf16.mxu0 0
    %611 = vmatpush1.bf16.msra.mxu0 0
    %612 = vmatprep.mubr.bf16.mxu0 0
    %613 = vmatmul.mubr.bf16.gmra.mrb[0].mxu0 %v538
    %v614 = vpop.f32.mrb[0].mxu0
    %v615 = vadd.f32 0.0, %v614
    %v616 = vpop.f32.mrb[0].mxu0
    %v617 = vadd.f32 0.0, %v616
    %v618 = vpop.f32.mrb[0].mxu0
    %v619 = vpop.f32.mrb[0].mxu0
    %620 = vdwg.mxu0
    %v621 = vadd.f32 %v532, %v574
    %v622 = vadd.f32 %v533, %v576
    %v623 = vadd.f32 %v534, %v615
    %v624 = vadd.f32 %v535, %v617
    %v625 = vxor.u32 %v621, 2147483648
    %v626 = vmul.f32 %v625, 1.442695
    %v627 = vpow.pop %v626
    %v628 = vadd.f32 %v627, 1.0
    %v629 = vrcp.pop %v628
    %v630 = vmul.f32 1.0, %v629
    %v631 = vxor.u32 %v622, 2147483648
    %v632 = vmul.f32 %v631, 1.442695
    %v633 = vpow.pop %v632
    %v634 = vadd.f32 %v633, 1.0
    %v635 = vrcp.pop %v634
    %v636 = vmul.f32 1.0, %v635
    %v637 = vtanh.pop %v623
    %v638 = vxor.u32 %v624, 2147483648
    %v639 = vmul.f32 %v638, 1.442695
    %v640 = vpow.pop %v639
    %v641 = vadd.f32 %v640, 1.0
    %v642 = vrcp.pop %v641
    %v643 = vmul.f32 1.0, %v642
    %v644 = vmul.f32 %v636, %v537
    %v645 = vmul.f32 %v630, %v637
    %v646 = vadd.f32 %v644, %v645
    %v647 = vtanh.pop %v646
    %v648 = vmul.f32 %v643, %v647
    %vm649 = vcmp.gt.s32.totalorder %v58, 2
    %v650 = vsel %vm649, 1, 0
    %v651 = vcvt.s32.f32 %v650
    %653 = vset.pattern.permute.xlu0 0
    %654 = vperm.xlu0 %653, %v651
    %v655 = vpop.permute.xlu0 %654
    %v657 = vsub.f32 %v646, %v537
    %v658 = vmul.f32 %v655, %v657
    %v659 = vadd.f32 %v537, %v658
    %v660 = vsub.f32 %v648, %v536
    %v661 = vmul.f32 %v655, %v660
    %v662 = vadd.f32 %v536, %v661
    %663 = vst [vmem:[#allocation5] sm:$0xff] %v659
    %664 = vst [vmem:[#allocation4] sm:$0xff] %v662
    %v665 = vpack.c.bf16 %v662, %v662
    %666 = vst [vmem:[#allocation3 + $0x8] sm:$0xf] %v665
    %v667 = vld [vmem:[%s1 + $0x30] sm:$0xff]
    %v668 = vld [vmem:[%s1 + $0x38] sm:$0xff]
    %v669 = vunpack.c.l.bf16 %v667
    %v670 = vunpack.c.h.bf16 %v667
    %v671 = vunpack.c.l.bf16 %v668
    %v672 = vunpack.c.h.bf16 %v668
    %v673 = vld [vmem:[#allocation4] sm:$0xff]
    %v674 = vld [vmem:[#allocation5] sm:$0xff]
    %v675 = vpack.c.bf16 %v673, %v673
    %676 = vmatprep.subr.bf16.mxu0 %v199
    %677 = vmatpush1.bf16.msra.mxu0 %v198
    %678 = vmatprep.subr.bf16.mxu0 %v203
    %679 = vmatpush1.bf16.msra.mxu0 %v202
    %680 = vmatprep.subr.bf16.mxu0 %v207
    %681 = vmatpush1.bf16.msra.mxu0 %v206
    %682 = vmatprep.subr.bf16.mxu0 %v211
    %683 = vmatpush1.bf16.msra.mxu0 %v210
    %684 = vmatprep.subr.bf16.mxu0 %v215
    %685 = vmatpush1.bf16.msra.mxu0 %v214
    %686 = vmatprep.subr.bf16.mxu0 %v219
    %687 = vmatpush1.bf16.msra.mxu0 %v218
    %688 = vmatprep.subr.bf16.mxu0 %v223
    %689 = vmatpush1.bf16.msra.mxu0 %v222
    %690 = vmatprep.subr.bf16.mxu0 %v227
    %691 = vmatpush1.bf16.msra.mxu0 %v226
    %692 = vmatprep.subr.bf16.mxu0 0
    %693 = vmatpush1.bf16.msra.mxu0 0
    %694 = vmatprep.subr.bf16.mxu0 0
    %695 = vmatpush1.bf16.msra.mxu0 0
    %696 = vmatprep.subr.bf16.mxu0 0
    %697 = vmatpush1.bf16.msra.mxu0 0
    %698 = vmatprep.subr.bf16.mxu0 0
    %699 = vmatpush1.bf16.msra.mxu0 0
    %700 = vmatprep.subr.bf16.mxu0 0
    %701 = vmatpush1.bf16.msra.mxu0 0
    %702 = vmatprep.subr.bf16.mxu0 0
    %703 = vmatpush1.bf16.msra.mxu0 0
    %704 = vmatprep.subr.bf16.mxu0 0
    %705 = vmatpush1.bf16.msra.mxu0 0
    %706 = vmatprep.subr.bf16.mxu0 0
    %707 = vmatpush1.bf16.msra.mxu0 0
    %708 = vmatprep.mubr.bf16.mxu0 0
    %709 = vmatmul.mubr.bf16.gmra.mrb[0].mxu0 %v675
    %v710 = vpop.f32.mrb[0].mxu0
    %v711 = vadd.f32 0.0, %v710
    %v712 = vpop.f32.mrb[0].mxu0
    %v713 = vadd.f32 0.0, %v712
    %v714 = vpop.f32.mrb[0].mxu0
    %v715 = vpop.f32.mrb[0].mxu0
    %716 = vdwg.mxu0
    %717 = vmatprep.subr.bf16.mxu0 %v201
    %718 = vmatpush1.bf16.msra.mxu0 %v200
    %719 = vmatprep.subr.bf16.mxu0 %v205
    %720 = vmatpush1.bf16.msra.mxu0 %v204
    %721 = vmatprep.subr.bf16.mxu0 %v209
    %722 = vmatpush1.bf16.msra.mxu0 %v208
    %723 = vmatprep.subr.bf16.mxu0 %v213
    %724 = vmatpush1.bf16.msra.mxu0 %v212
    %725 = vmatprep.subr.bf16.mxu0 %v217
    %726 = vmatpush1.bf16.msra.mxu0 %v216
    %727 = vmatprep.subr.bf16.mxu0 %v221
    %728 = vmatpush1.bf16.msra.mxu0 %v220
    %729 = vmatprep.subr.bf16.mxu0 %v225
    %730 = vmatpush1.bf16.msra.mxu0 %v224
    %731 = vmatprep.subr.bf16.mxu0 %v229
    %732 = vmatpush1.bf16.msra.mxu0 %v228
    %733 = vmatprep.subr.bf16.mxu0 0
    %734 = vmatpush1.bf16.msra.mxu0 0
    %735 = vmatprep.subr.bf16.mxu0 0
    %736 = vmatpush1.bf16.msra.mxu0 0
    %737 = vmatprep.subr.bf16.mxu0 0
    %738 = vmatpush1.bf16.msra.mxu0 0
    %739 = vmatprep.subr.bf16.mxu0 0
    %740 = vmatpush1.bf16.msra.mxu0 0
    %741 = vmatprep.subr.bf16.mxu0 0
    %742 = vmatpush1.bf16.msra.mxu0 0
    %743 = vmatprep.subr.bf16.mxu0 0
    %744 = vmatpush1.bf16.msra.mxu0 0
    %745 = vmatprep.subr.bf16.mxu0 0
    %746 = vmatpush1.bf16.msra.mxu0 0
    %747 = vmatprep.subr.bf16.mxu0 0
    %748 = vmatpush1.bf16.msra.mxu0 0
    %749 = vmatprep.mubr.bf16.mxu0 0
    %750 = vmatmul.mubr.bf16.gmra.mrb[0].mxu0 %v675
    %v751 = vpop.f32.mrb[0].mxu0
    %v752 = vadd.f32 0.0, %v751
    %v753 = vpop.f32.mrb[0].mxu0
    %v754 = vadd.f32 0.0, %v753
    %v755 = vpop.f32.mrb[0].mxu0
    %v756 = vpop.f32.mrb[0].mxu0
    %757 = vdwg.mxu0
    %v758 = vadd.f32 %v669, %v711
    %v759 = vadd.f32 %v670, %v713
    %v760 = vadd.f32 %v671, %v752
    %v761 = vadd.f32 %v672, %v754
    %v762 = vxor.u32 %v758, 2147483648
    %v763 = vmul.f32 %v762, 1.442695
    %v764 = vpow.pop %v763
    %v765 = vadd.f32 %v764, 1.0
    %v766 = vrcp.pop %v765
    %v767 = vmul.f32 1.0, %v766
    %v768 = vxor.u32 %v759, 2147483648
    %v769 = vmul.f32 %v768, 1.442695
    %v770 = vpow.pop %v769
    %v771 = vadd.f32 %v770, 1.0
    %v772 = vrcp.pop %v771
    %v773 = vmul.f32 1.0, %v772
    %v774 = vtanh.pop %v760
    %v775 = vxor.u32 %v761, 2147483648
    %v776 = vmul.f32 %v775, 1.442695
    %v777 = vpow.pop %v776
    %v778 = vadd.f32 %v777, 1.0
    %v779 = vrcp.pop %v778
    %v780 = vmul.f32 1.0, %v779
    %v781 = vmul.f32 %v773, %v674
    %v782 = vmul.f32 %v767, %v774
    %v783 = vadd.f32 %v781, %v782
    %v784 = vtanh.pop %v783
    %v785 = vmul.f32 %v780, %v784
    %vm786 = vcmp.gt.s32.totalorder %v58, 3
    %v787 = vsel %vm786, 1, 0
    %v788 = vcvt.s32.f32 %v787
    %790 = vset.pattern.permute.xlu0 0
    %791 = vperm.xlu0 %790, %v788
    %v792 = vpop.permute.xlu0 %791
    %v794 = vsub.f32 %v783, %v674
    %v795 = vmul.f32 %v792, %v794
    %v796 = vadd.f32 %v674, %v795
    %v797 = vsub.f32 %v785, %v673
    %v798 = vmul.f32 %v792, %v797
    %v799 = vadd.f32 %v673, %v798
    %800 = vst [vmem:[#allocation5] sm:$0xff] %v796
    %801 = vst [vmem:[#allocation4] sm:$0xff] %v799
    %v802 = vpack.c.bf16 %v799, %v799
    %v804 = vrot.slane %v802, 4
    %806 = vst [vmem:[#allocation3 + $0x8] sm:$0xf0] %v804
    %v807 = vld [vmem:[%s1 + $0x40] sm:$0xff]
    %v808 = vld [vmem:[%s1 + $0x48] sm:$0xff]
    %v809 = vunpack.c.l.bf16 %v807
    %v810 = vunpack.c.h.bf16 %v807
    %v811 = vunpack.c.l.bf16 %v808
    %v812 = vunpack.c.h.bf16 %v808
    %v813 = vld [vmem:[#allocation4] sm:$0xff]
    %v814 = vld [vmem:[#allocation5] sm:$0xff]
    %v815 = vpack.c.bf16 %v813, %v813
    %816 = vmatprep.subr.bf16.mxu0 %v199
    %817 = vmatpush1.bf16.msra.mxu0 %v198
    %818 = vmatprep.subr.bf16.mxu0 %v203
    %819 = vmatpush1.bf16.msra.mxu0 %v202
    %820 = vmatprep.subr.bf16.mxu0 %v207
    %821 = vmatpush1.bf16.msra.mxu0 %v206
    %822 = vmatprep.subr.bf16.mxu0 %v211
    %823 = vmatpush1.bf16.msra.mxu0 %v210
    %824 = vmatprep.subr.bf16.mxu0 %v215
    %825 = vmatpush1.bf16.msra.mxu0 %v214
    %826 = vmatprep.subr.bf16.mxu0 %v219
    %827 = vmatpush1.bf16.msra.mxu0 %v218
    %828 = vmatprep.subr.bf16.mxu0 %v223
    %829 = vmatpush1.bf16.msra.mxu0 %v222
    %830 = vmatprep.subr.bf16.mxu0 %v227
    %831 = vmatpush1.bf16.msra.mxu0 %v226
    %832 = vmatprep.subr.bf16.mxu0 0
    %833 = vmatpush1.bf16.msra.mxu0 0
    %834 = vmatprep.subr.bf16.mxu0 0
    %835 = vmatpush1.bf16.msra.mxu0 0
    %836 = vmatprep.subr.bf16.mxu0 0
    %837 = vmatpush1.bf16.msra.mxu0 0
    %838 = vmatprep.subr.bf16.mxu0 0
    %839 = vmatpush1.bf16.msra.mxu0 0
    %840 = vmatprep.subr.bf16.mxu0 0
    %841 = vmatpush1.bf16.msra.mxu0 0
    %842 = vmatprep.subr.bf16.mxu0 0
    %843 = vmatpush1.bf16.msra.mxu0 0
    %844 = vmatprep.subr.bf16.mxu0 0
    %845 = vmatpush1.bf16.msra.mxu0 0
    %846 = vmatprep.subr.bf16.mxu0 0
    %847 = vmatpush1.bf16.msra.mxu0 0
    %848 = vmatprep.mubr.bf16.mxu0 0
    %849 = vmatmul.mubr.bf16.gmra.mrb[0].mxu0 %v815
    %v850 = vpop.f32.mrb[0].mxu0
    %v851 = vadd.f32 0.0, %v850
    %v852 = vpop.f32.mrb[0].mxu0
    %v853 = vadd.f32 0.0, %v852
    %v854 = vpop.f32.mrb[0].mxu0
    %v855 = vpop.f32.mrb[0].mxu0
    %856 = vdwg.mxu0
    %857 = vmatprep.subr.bf16.mxu0 %v201
    %858 = vmatpush1.bf16.msra.mxu0 %v200
    %859 = vmatprep.subr.bf16.mxu0 %v205
    %860 = vmatpush1.bf16.msra.mxu0 %v204
    %861 = vmatprep.subr.bf16.mxu0 %v209
    %862 = vmatpush1.bf16.msra.mxu0 %v208
    %863 = vmatprep.subr.bf16.mxu0 %v213
    %864 = vmatpush1.bf16.msra.mxu0 %v212
    %865 = vmatprep.subr.bf16.mxu0 %v217
    %866 = vmatpush1.bf16.msra.mxu0 %v216
    %867 = vmatprep.subr.bf16.mxu0 %v221
    %868 = vmatpush1.bf16.msra.mxu0 %v220
    %869 = vmatprep.subr.bf16.mxu0 %v225
    %870 = vmatpush1.bf16.msra.mxu0 %v224
    %871 = vmatprep.subr.bf16.mxu0 %v229
    %872 = vmatpush1.bf16.msra.mxu0 %v228
    %873 = vmatprep.subr.bf16.mxu0 0
    %874 = vmatpush1.bf16.msra.mxu0 0
    %875 = vmatprep.subr.bf16.mxu0 0
    %876 = vmatpush1.bf16.msra.mxu0 0
    %877 = vmatprep.subr.bf16.mxu0 0
    %878 = vmatpush1.bf16.msra.mxu0 0
    %879 = vmatprep.subr.bf16.mxu0 0
    %880 = vmatpush1.bf16.msra.mxu0 0
    %881 = vmatprep.subr.bf16.mxu0 0
    %882 = vmatpush1.bf16.msra.mxu0 0
    %883 = vmatprep.subr.bf16.mxu0 0
    %884 = vmatpush1.bf16.msra.mxu0 0
    %885 = vmatprep.subr.bf16.mxu0 0
    %886 = vmatpush1.bf16.msra.mxu0 0
    %887 = vmatprep.subr.bf16.mxu0 0
    %888 = vmatpush1.bf16.msra.mxu0 0
    %889 = vmatprep.mubr.bf16.mxu0 0
    %890 = vmatmul.mubr.bf16.gmra.mrb[0].mxu0 %v815
    %v891 = vpop.f32.mrb[0].mxu0
    %v892 = vadd.f32 0.0, %v891
    %v893 = vpop.f32.mrb[0].mxu0
    %v894 = vadd.f32 0.0, %v893
    %v895 = vpop.f32.mrb[0].mxu0
    %v896 = vpop.f32.mrb[0].mxu0
    %897 = vdwg.mxu0
    %v898 = vadd.f32 %v809, %v851
    %v899 = vadd.f32 %v810, %v853
    %v900 = vadd.f32 %v811, %v892
    %v901 = vadd.f32 %v812, %v894
    %v902 = vxor.u32 %v898, 2147483648
    %v903 = vmul.f32 %v902, 1.442695
    %v904 = vpow.pop %v903
    %v905 = vadd.f32 %v904, 1.0
    %v906 = vrcp.pop %v905
    %v907 = vmul.f32 1.0, %v906
    %v908 = vxor.u32 %v899, 2147483648
    %v909 = vmul.f32 %v908, 1.442695
    %v910 = vpow.pop %v909
    %v911 = vadd.f32 %v910, 1.0
    %v912 = vrcp.pop %v911
    %v913 = vmul.f32 1.0, %v912
    %v914 = vtanh.pop %v900
    %v915 = vxor.u32 %v901, 2147483648
    %v916 = vmul.f32 %v915, 1.442695
    %v917 = vpow.pop %v916
    %v918 = vadd.f32 %v917, 1.0
    %v919 = vrcp.pop %v918
    %v920 = vmul.f32 1.0, %v919
    %v921 = vmul.f32 %v913, %v814
    %v922 = vmul.f32 %v907, %v914
    %v923 = vadd.f32 %v921, %v922
    %v924 = vtanh.pop %v923
    %v925 = vmul.f32 %v920, %v924
    %vm926 = vcmp.gt.s32.totalorder %v58, 4
    %v927 = vsel %vm926, 1, 0
    %v928 = vcvt.s32.f32 %v927
    %930 = vset.pattern.permute.xlu0 0
    %931 = vperm.xlu0 %930, %v928
    %v932 = vpop.permute.xlu0 %931
    %v934 = vsub.f32 %v923, %v814
    %v935 = vmul.f32 %v932, %v934
    %v936 = vadd.f32 %v814, %v935
    %v937 = vsub.f32 %v925, %v813
    %v938 = vmul.f32 %v932, %v937
    %v939 = vadd.f32 %v813, %v938
    %940 = vst [vmem:[#allocation5] sm:$0xff] %v936
    %941 = vst [vmem:[#allocation4] sm:$0xff] %v939
    %v942 = vpack.c.bf16 %v939, %v939
    %943 = vst [vmem:[#allocation3 + $0x10] sm:$0xf] %v942
    %v944 = vld [vmem:[%s1 + $0x50] sm:$0xff]
    %v945 = vld [vmem:[%s1 + $0x58] sm:$0xff]
    %v946 = vunpack.c.l.bf16 %v944
    %v947 = vunpack.c.h.bf16 %v944
    %v948 = vunpack.c.l.bf16 %v945
    %v949 = vunpack.c.h.bf16 %v945
    %v950 = vld [vmem:[#allocation4] sm:$0xff]
    %v951 = vld [vmem:[#allocation5] sm:$0xff]
    %v952 = vpack.c.bf16 %v950, %v950
    %953 = vmatprep.subr.bf16.mxu0 %v199
    %954 = vmatpush1.bf16.msra.mxu0 %v198
    %955 = vmatprep.subr.bf16.mxu0 %v203
    %956 = vmatpush1.bf16.msra.mxu0 %v202
    %957 = vmatprep.subr.bf16.mxu0 %v207
    %958 = vmatpush1.bf16.msra.mxu0 %v206
    %959 = vmatprep.subr.bf16.mxu0 %v211
    %960 = vmatpush1.bf16.msra.mxu0 %v210
    %961 = vmatprep.subr.bf16.mxu0 %v215
    %962 = vmatpush1.bf16.msra.mxu0 %v214
    %963 = vmatprep.subr.bf16.mxu0 %v219
    %964 = vmatpush1.bf16.msra.mxu0 %v218
    %965 = vmatprep.subr.bf16.mxu0 %v223
    %966 = vmatpush1.bf16.msra.mxu0 %v222
    %967 = vmatprep.subr.bf16.mxu0 %v227
    %968 = vmatpush1.bf16.msra.mxu0 %v226
    %969 = vmatprep.subr.bf16.mxu0 0
    %970 = vmatpush1.bf16.msra.mxu0 0
    %971 = vmatprep.subr.bf16.mxu0 0
    %972 = vmatpush1.bf16.msra.mxu0 0
    %973 = vmatprep.subr.bf16.mxu0 0
    %974 = vmatpush1.bf16.msra.mxu0 0
    %975 = vmatprep.subr.bf16.mxu0 0
    %976 = vmatpush1.bf16.msra.mxu0 0
    %977 = vmatprep.subr.bf16.mxu0 0
    %978 = vmatpush1.bf16.msra.mxu0 0
    %979 = vmatprep.subr.bf16.mxu0 0
    %980 = vmatpush1.bf16.msra.mxu0 0
    %981 = vmatprep.subr.bf16.mxu0 0
    %982 = vmatpush1.bf16.msra.mxu0 0
    %983 = vmatprep.subr.bf16.mxu0 0
    %984 = vmatpush1.bf16.msra.mxu0 0
    %985 = vmatprep.mubr.bf16.mxu0 0
    %986 = vmatmul.mubr.bf16.gmra.mrb[0].mxu0 %v952
    %v987 = vpop.f32.mrb[0].mxu0
    %v988 = vadd.f32 0.0, %v987
    %v989 = vpop.f32.mrb[0].mxu0
    %v990 = vadd.f32 0.0, %v989
    %v991 = vpop.f32.mrb[0].mxu0
    %v992 = vpop.f32.mrb[0].mxu0
    %993 = vdwg.mxu0
    %994 = vmatprep.subr.bf16.mxu0 %v201
    %995 = vmatpush1.bf16.msra.mxu0 %v200
    %996 = vmatprep.subr.bf16.mxu0 %v205
    %997 = vmatpush1.bf16.msra.mxu0 %v204
    %998 = vmatprep.subr.bf16.mxu0 %v209
    %999 = vmatpush1.bf16.msra.mxu0 %v208
    %1000 = vmatprep.subr.bf16.mxu0 %v213
    %1001 = vmatpush1.bf16.msra.mxu0 %v212
    %1002 = vmatprep.subr.bf16.mxu0 %v217
    %1003 = vmatpush1.bf16.msra.mxu0 %v216
    %1004 = vmatprep.subr.bf16.mxu0 %v221
    %1005 = vmatpush1.bf16.msra.mxu0 %v220
    %1006 = vmatprep.subr.bf16.mxu0 %v225
    %1007 = vmatpush1.bf16.msra.mxu0 %v224
    %1008 = vmatprep.subr.bf16.mxu0 %v229
    %1009 = vmatpush1.bf16.msra.mxu0 %v228
    %1010 = vmatprep.subr.bf16.mxu0 0
    %1011 = vmatpush1.bf16.msra.mxu0 0
    %1012 = vmatprep.subr.bf16.mxu0 0
    %1013 = vmatpush1.bf16.msra.mxu0 0
    %1014 = vmatprep.subr.bf16.mxu0 0
    %1015 = vmatpush1.bf16.msra.mxu0 0
    %1016 = vmatprep.subr.bf16.mxu0 0
    %1017 = vmatpush1.bf16.msra.mxu0 0
    %1018 = vmatprep.subr.bf16.mxu0 0
    %1019 = vmatpush1.bf16.msra.mxu0 0
    %1020 = vmatprep.subr.bf16.mxu0 0
    %1021 = vmatpush1.bf16.msra.mxu0 0
    %1022 = vmatprep.subr.bf16.mxu0 0
    %1023 = vmatpush1.bf16.msra.mxu0 0
    %1024 = vmatprep.subr.bf16.mxu0 0
    %1025 = vmatpush1.bf16.msra.mxu0 0
    %1026 = vmatprep.mubr.bf16.mxu0 0
    %1027 = vmatmul.mubr.bf16.gmra.mrb[0].mxu0 %v952
    %v1028 = vpop.f32.mrb[0].mxu0
    %v1029 = vadd.f32 0.0, %v1028
    %v1030 = vpop.f32.mrb[0].mxu0
    %v1031 = vadd.f32 0.0, %v1030
    %v1032 = vpop.f32.mrb[0].mxu0
    %v1033 = vpop.f32.mrb[0].mxu0
    %1034 = vdwg.mxu0
    %v1035 = vadd.f32 %v946, %v988
    %v1036 = vadd.f32 %v947, %v990
    %v1037 = vadd.f32 %v948, %v1029
    %v1038 = vadd.f32 %v949, %v1031
    %v1039 = vxor.u32 %v1035, 2147483648
    %v1040 = vmul.f32 %v1039, 1.442695
    %v1041 = vpow.pop %v1040
    %v1042 = vadd.f32 %v1041, 1.0
    %v1043 = vrcp.pop %v1042
    %v1044 = vmul.f32 1.0, %v1043
    %v1045 = vxor.u32 %v1036, 2147483648
    %v1046 = vmul.f32 %v1045, 1.442695
    %v1047 = vpow.pop %v1046
    %v1048 = vadd.f32 %v1047, 1.0
    %v1049 = vrcp.pop %v1048
    %v1050 = vmul.f32 1.0, %v1049
    %v1051 = vtanh.pop %v1037
    %v1052 = vxor.u32 %v1038, 2147483648
    %v1053 = vmul.f32 %v1052, 1.442695
    %v1054 = vpow.pop %v1053
    %v1055 = vadd.f32 %v1054, 1.0
    %v1056 = vrcp.pop %v1055
    %v1057 = vmul.f32 1.0, %v1056
    %v1058 = vmul.f32 %v1050, %v951
    %v1059 = vmul.f32 %v1044, %v1051
    %v1060 = vadd.f32 %v1058, %v1059
    %v1061 = vtanh.pop %v1060
    %v1062 = vmul.f32 %v1057, %v1061
    %vm1063 = vcmp.gt.s32.totalorder %v58, 5
    %v1064 = vsel %vm1063, 1, 0
    %v1065 = vcvt.s32.f32 %v1064
    %1067 = vset.pattern.permute.xlu0 0
    %1068 = vperm.xlu0 %1067, %v1065
    %v1069 = vpop.permute.xlu0 %1068
    %v1071 = vsub.f32 %v1060, %v951
    %v1072 = vmul.f32 %v1069, %v1071
    %v1073 = vadd.f32 %v951, %v1072
    %v1074 = vsub.f32 %v1062, %v950
    %v1075 = vmul.f32 %v1069, %v1074
    %v1076 = vadd.f32 %v950, %v1075
    %1077 = vst [vmem:[#allocation5] sm:$0xff] %v1073
    %1078 = vst [vmem:[#allocation4] sm:$0xff] %v1076
    %v1079 = vpack.c.bf16 %v1076, %v1076
    %v1081 = vrot.slane %v1079, 4
    %1083 = vst [vmem:[#allocation3 + $0x10] sm:$0xf0] %v1081
    %v1084 = vld [vmem:[%s1 + $0x60] sm:$0xff]
    %v1085 = vld [vmem:[%s1 + $0x68] sm:$0xff]
    %v1086 = vunpack.c.l.bf16 %v1084
    %v1087 = vunpack.c.h.bf16 %v1084
    %v1088 = vunpack.c.l.bf16 %v1085
    %v1089 = vunpack.c.h.bf16 %v1085
    %v1090 = vld [vmem:[#allocation4] sm:$0xff]
    %v1091 = vld [vmem:[#allocation5] sm:$0xff]
    %v1092 = vpack.c.bf16 %v1090, %v1090
    %1093 = vmatprep.subr.bf16.mxu0 %v199
    %1094 = vmatpush1.bf16.msra.mxu0 %v198
    %1095 = vmatprep.subr.bf16.mxu0 %v203
    %1096 = vmatpush1.bf16.msra.mxu0 %v202
    %1097 = vmatprep.subr.bf16.mxu0 %v207
    %1098 = vmatpush1.bf16.msra.mxu0 %v206
    %1099 = vmatprep.subr.bf16.mxu0 %v211
    %1100 = vmatpush1.bf16.msra.mxu0 %v210
    %1101 = vmatprep.subr.bf16.mxu0 %v215
    %1102 = vmatpush1.bf16.msra.mxu0 %v214
    %1103 = vmatprep.subr.bf16.mxu0 %v219
    %1104 = vmatpush1.bf16.msra.mxu0 %v218
    %1105 = vmatprep.subr.bf16.mxu0 %v223
    %1106 = vmatpush1.bf16.msra.mxu0 %v222
    %1107 = vmatprep.subr.bf16.mxu0 %v227
    %1108 = vmatpush1.bf16.msra.mxu0 %v226
    %1109 = vmatprep.subr.bf16.mxu0 0
    %1110 = vmatpush1.bf16.msra.mxu0 0
    %1111 = vmatprep.subr.bf16.mxu0 0
    %1112 = vmatpush1.bf16.msra.mxu0 0
    %1113 = vmatprep.subr.bf16.mxu0 0
    %1114 = vmatpush1.bf16.msra.mxu0 0
    %1115 = vmatprep.subr.bf16.mxu0 0
    %1116 = vmatpush1.bf16.msra.mxu0 0
    %1117 = vmatprep.subr.bf16.mxu0 0
    %1118 = vmatpush1.bf16.msra.mxu0 0
    %1119 = vmatprep.subr.bf16.mxu0 0
    %1120 = vmatpush1.bf16.msra.mxu0 0
    %1121 = vmatprep.subr.bf16.mxu0 0
    %1122 = vmatpush1.bf16.msra.mxu0 0
    %1123 = vmatprep.subr.bf16.mxu0 0
    %1124 = vmatpush1.bf16.msra.mxu0 0
    %1125 = vmatprep.mubr.bf16.mxu0 0
    %1126 = vmatmul.mubr.bf16.gmra.mrb[0].mxu0 %v1092
    %v1127 = vpop.f32.mrb[0].mxu0
    %v1128 = vadd.f32 0.0, %v1127
    %v1129 = vpop.f32.mrb[0].mxu0
    %v1130 = vadd.f32 0.0, %v1129
    %v1131 = vpop.f32.mrb[0].mxu0
    %v1132 = vpop.f32.mrb[0].mxu0
    %1133 = vdwg.mxu0
    %1134 = vmatprep.subr.bf16.mxu0 %v201
    %1135 = vmatpush1.bf16.msra.mxu0 %v200
    %1136 = vmatprep.subr.bf16.mxu0 %v205
    %1137 = vmatpush1.bf16.msra.mxu0 %v204
    %1138 = vmatprep.subr.bf16.mxu0 %v209
    %1139 = vmatpush1.bf16.msra.mxu0 %v208
    %1140 = vmatprep.subr.bf16.mxu0 %v213
    %1141 = vmatpush1.bf16.msra.mxu0 %v212
    %1142 = vmatprep.subr.bf16.mxu0 %v217
    %1143 = vmatpush1.bf16.msra.mxu0 %v216
    %1144 = vmatprep.subr.bf16.mxu0 %v221
    %1145 = vmatpush1.bf16.msra.mxu0 %v220
    %1146 = vmatprep.subr.bf16.mxu0 %v225
    %1147 = vmatpush1.bf16.msra.mxu0 %v224
    %1148 = vmatprep.subr.bf16.mxu0 %v229
    %1149 = vmatpush1.bf16.msra.mxu0 %v228
    %1150 = vmatprep.subr.bf16.mxu0 0
    %1151 = vmatpush1.bf16.msra.mxu0 0
    %1152 = vmatprep.subr.bf16.mxu0 0
    %1153 = vmatpush1.bf16.msra.mxu0 0
    %1154 = vmatprep.subr.bf16.mxu0 0
    %1155 = vmatpush1.bf16.msra.mxu0 0
    %1156 = vmatprep.subr.bf16.mxu0 0
    %1157 = vmatpush1.bf16.msra.mxu0 0
    %1158 = vmatprep.subr.bf16.mxu0 0
    %1159 = vmatpush1.bf16.msra.mxu0 0
    %1160 = vmatprep.subr.bf16.mxu0 0
    %1161 = vmatpush1.bf16.msra.mxu0 0
    %1162 = vmatprep.subr.bf16.mxu0 0
    %1163 = vmatpush1.bf16.msra.mxu0 0
    %1164 = vmatprep.subr.bf16.mxu0 0
    %1165 = vmatpush1.bf16.msra.mxu0 0
    %1166 = vmatprep.mubr.bf16.mxu0 0
    %1167 = vmatmul.mubr.bf16.gmra.mrb[0].mxu0 %v1092
    %v1168 = vpop.f32.mrb[0].mxu0
    %v1169 = vadd.f32 0.0, %v1168
    %v1170 = vpop.f32.mrb[0].mxu0
    %v1171 = vadd.f32 0.0, %v1170
    %v1172 = vpop.f32.mrb[0].mxu0
    %v1173 = vpop.f32.mrb[0].mxu0
    %1174 = vdwg.mxu0
    %v1175 = vadd.f32 %v1086, %v1128
    %v1176 = vadd.f32 %v1087, %v1130
    %v1177 = vadd.f32 %v1088, %v1169
    %v1178 = vadd.f32 %v1089, %v1171
    %v1179 = vxor.u32 %v1175, 2147483648
    %v1180 = vmul.f32 %v1179, 1.442695
    %v1181 = vpow.pop %v1180
    %v1182 = vadd.f32 %v1181, 1.0
    %v1183 = vrcp.pop %v1182
    %v1184 = vmul.f32 1.0, %v1183
    %v1185 = vxor.u32 %v1176, 2147483648
    %v1186 = vmul.f32 %v1185, 1.442695
    %v1187 = vpow.pop %v1186
    %v1188 = vadd.f32 %v1187, 1.0
    %v1189 = vrcp.pop %v1188
    %v1190 = vmul.f32 1.0, %v1189
    %v1191 = vtanh.pop %v1177
    %v1192 = vxor.u32 %v1178, 2147483648
    %v1193 = vmul.f32 %v1192, 1.442695
    %v1194 = vpow.pop %v1193
    %v1195 = vadd.f32 %v1194, 1.0
    %v1196 = vrcp.pop %v1195
    %v1197 = vmul.f32 1.0, %v1196
    %v1198 = vmul.f32 %v1190, %v1091
    %v1199 = vmul.f32 %v1184, %v1191
    %v1200 = vadd.f32 %v1198, %v1199
    %v1201 = vtanh.pop %v1200
    %v1202 = vmul.f32 %v1197, %v1201
    %vm1203 = vcmp.gt.s32.totalorder %v58, 6
    %v1204 = vsel %vm1203, 1, 0
    %v1205 = vcvt.s32.f32 %v1204
    %1207 = vset.pattern.permute.xlu0 0
    %1208 = vperm.xlu0 %1207, %v1205
    %v1209 = vpop.permute.xlu0 %1208
    %v1211 = vsub.f32 %v1200, %v1091
    %v1212 = vmul.f32 %v1209, %v1211
    %v1213 = vadd.f32 %v1091, %v1212
    %v1214 = vsub.f32 %v1202, %v1090
    %v1215 = vmul.f32 %v1209, %v1214
    %v1216 = vadd.f32 %v1090, %v1215
    %1217 = vst [vmem:[#allocation5] sm:$0xff] %v1213
    %1218 = vst [vmem:[#allocation4] sm:$0xff] %v1216
    %v1219 = vpack.c.bf16 %v1216, %v1216
    %1220 = vst [vmem:[#allocation3 + $0x18] sm:$0xf] %v1219
    %v1221 = vld [vmem:[%s1 + $0x70] sm:$0xff]
    %v1222 = vld [vmem:[%s1 + $0x78] sm:$0xff]
    %v1223 = vunpack.c.l.bf16 %v1221
    %v1224 = vunpack.c.h.bf16 %v1221
    %v1225 = vunpack.c.l.bf16 %v1222
    %v1226 = vunpack.c.h.bf16 %v1222
    %v1227 = vld [vmem:[#allocation4] sm:$0xff]
    %v1228 = vld [vmem:[#allocation5] sm:$0xff]
    %v1229 = vpack.c.bf16 %v1227, %v1227
    %1230 = vmatprep.subr.bf16.mxu0 %v199
    %1231 = vmatpush1.bf16.msra.mxu0 %v198
    %1232 = vmatprep.subr.bf16.mxu0 %v203
    %1233 = vmatpush1.bf16.msra.mxu0 %v202
    %1234 = vmatprep.subr.bf16.mxu0 %v207
    %1235 = vmatpush1.bf16.msra.mxu0 %v206
    %1236 = vmatprep.subr.bf16.mxu0 %v211
    %1237 = vmatpush1.bf16.msra.mxu0 %v210
    %1238 = vmatprep.subr.bf16.mxu0 %v215
    %1239 = vmatpush1.bf16.msra.mxu0 %v214
    %1240 = vmatprep.subr.bf16.mxu0 %v219
    %1241 = vmatpush1.bf16.msra.mxu0 %v218
    %1242 = vmatprep.subr.bf16.mxu0 %v223
    %1243 = vmatpush1.bf16.msra.mxu0 %v222
    %1244 = vmatprep.subr.bf16.mxu0 %v227
    %1245 = vmatpush1.bf16.msra.mxu0 %v226
    %1246 = vmatprep.subr.bf16.mxu0 0
    %1247 = vmatpush1.bf16.msra.mxu0 0
    %1248 = vmatprep.subr.bf16.mxu0 0
    %1249 = vmatpush1.bf16.msra.mxu0 0
    %1250 = vmatprep.subr.bf16.mxu0 0
    %1251 = vmatpush1.bf16.msra.mxu0 0
    %1252 = vmatprep.subr.bf16.mxu0 0
    %1253 = vmatpush1.bf16.msra.mxu0 0
    %1254 = vmatprep.subr.bf16.mxu0 0
    %1255 = vmatpush1.bf16.msra.mxu0 0
    %1256 = vmatprep.subr.bf16.mxu0 0
    %1257 = vmatpush1.bf16.msra.mxu0 0
    %1258 = vmatprep.subr.bf16.mxu0 0
    %1259 = vmatpush1.bf16.msra.mxu0 0
    %1260 = vmatprep.subr.bf16.mxu0 0
    %1261 = vmatpush1.bf16.msra.mxu0 0
    %1262 = vmatprep.mubr.bf16.mxu0 0
    %1263 = vmatmul.mubr.bf16.gmra.mrb[0].mxu0 %v1229
    %v1264 = vpop.f32.mrb[0].mxu0
    %v1265 = vadd.f32 0.0, %v1264
    %v1266 = vpop.f32.mrb[0].mxu0
    %v1267 = vadd.f32 0.0, %v1266
    %v1268 = vpop.f32.mrb[0].mxu0
    %v1269 = vpop.f32.mrb[0].mxu0
    %1270 = vdwg.mxu0
    %1271 = vmatprep.subr.bf16.mxu0 %v201
    %1272 = vmatpush1.bf16.msra.mxu0 %v200
    %1273 = vmatprep.subr.bf16.mxu0 %v205
    %1274 = vmatpush1.bf16.msra.mxu0 %v204
    %1275 = vmatprep.subr.bf16.mxu0 %v209
    %1276 = vmatpush1.bf16.msra.mxu0 %v208
    %1277 = vmatprep.subr.bf16.mxu0 %v213
    %1278 = vmatpush1.bf16.msra.mxu0 %v212
    %1279 = vmatprep.subr.bf16.mxu0 %v217
    %1280 = vmatpush1.bf16.msra.mxu0 %v216
    %1281 = vmatprep.subr.bf16.mxu0 %v221
    %1282 = vmatpush1.bf16.msra.mxu0 %v220
    %1283 = vmatprep.subr.bf16.mxu0 %v225
    %1284 = vmatpush1.bf16.msra.mxu0 %v224
    %1285 = vmatprep.subr.bf16.mxu0 %v229
    %1286 = vmatpush1.bf16.msra.mxu0 %v228
    %1287 = vmatprep.subr.bf16.mxu0 0
    %1288 = vmatpush1.bf16.msra.mxu0 0
    %1289 = vmatprep.subr.bf16.mxu0 0
    %1290 = vmatpush1.bf16.msra.mxu0 0
    %1291 = vmatprep.subr.bf16.mxu0 0
    %1292 = vmatpush1.bf16.msra.mxu0 0
    %1293 = vmatprep.subr.bf16.mxu0 0
    %1294 = vmatpush1.bf16.msra.mxu0 0
    %1295 = vmatprep.subr.bf16.mxu0 0
    %1296 = vmatpush1.bf16.msra.mxu0 0
    %1297 = vmatprep.subr.bf16.mxu0 0
    %1298 = vmatpush1.bf16.msra.mxu0 0
    %1299 = vmatprep.subr.bf16.mxu0 0
    %1300 = vmatpush1.bf16.msra.mxu0 0
    %1301 = vmatprep.subr.bf16.mxu0 0
    %1302 = vmatpush1.bf16.msra.mxu0 0
    %1303 = vmatprep.mubr.bf16.mxu0 0
    %1304 = vmatmul.mubr.bf16.gmra.mrb[0].mxu0 %v1229
    %v1305 = vpop.f32.mrb[0].mxu0
    %v1306 = vadd.f32 0.0, %v1305
    %v1307 = vpop.f32.mrb[0].mxu0
    %v1308 = vadd.f32 0.0, %v1307
    %v1309 = vpop.f32.mrb[0].mxu0
    %v1310 = vpop.f32.mrb[0].mxu0
    %1311 = vdwg.mxu0
    %v1312 = vadd.f32 %v1223, %v1265
    %v1313 = vadd.f32 %v1224, %v1267
    %v1314 = vadd.f32 %v1225, %v1306
    %v1315 = vadd.f32 %v1226, %v1308
    %v1316 = vxor.u32 %v1312, 2147483648
    %v1317 = vmul.f32 %v1316, 1.442695
    %v1318 = vpow.pop %v1317
    %v1319 = vadd.f32 %v1318, 1.0
    %v1320 = vrcp.pop %v1319
    %v1321 = vmul.f32 1.0, %v1320
    %v1322 = vxor.u32 %v1313, 2147483648
    %v1323 = vmul.f32 %v1322, 1.442695
    %v1324 = vpow.pop %v1323
    %v1325 = vadd.f32 %v1324, 1.0
    %v1326 = vrcp.pop %v1325
    %v1327 = vmul.f32 1.0, %v1326
    %v1328 = vtanh.pop %v1314
    %v1329 = vxor.u32 %v1315, 2147483648
    %v1330 = vmul.f32 %v1329, 1.442695
    %v1331 = vpow.pop %v1330
    %v1332 = vadd.f32 %v1331, 1.0
    %v1333 = vrcp.pop %v1332
    %v1334 = vmul.f32 1.0, %v1333
    %v1335 = vmul.f32 %v1327, %v1228
    %v1336 = vmul.f32 %v1321, %v1328
    %v1337 = vadd.f32 %v1335, %v1336
    %v1338 = vtanh.pop %v1337
    %v1339 = vmul.f32 %v1334, %v1338
    %vm1340 = vcmp.gt.s32.totalorder %v58, 7
    %v1341 = vsel %vm1340, 1, 0
    %v1342 = vcvt.s32.f32 %v1341
    %1344 = vset.pattern.permute.xlu0 0
    %1345 = vperm.xlu0 %1344, %v1342
    %v1346 = vpop.permute.xlu0 %1345
    %v1348 = vsub.f32 %v1337, %v1228
    %v1349 = vmul.f32 %v1346, %v1348
    %v1350 = vadd.f32 %v1228, %v1349
    %v1351 = vsub.f32 %v1339, %v1227
    %v1352 = vmul.f32 %v1346, %v1351
    %v1353 = vadd.f32 %v1227, %v1352
    %1354 = vst [vmem:[#allocation5] sm:$0xff] %v1350
    %1355 = vst [vmem:[#allocation4] sm:$0xff] %v1353
    %v1356 = vpack.c.bf16 %v1353, %v1353
    %v1358 = vrot.slane %v1356, 4
    %1360 = vst [vmem:[#allocation3 + $0x18] sm:$0xf0] %v1358
    %v1361 = vld [vmem:[#allocation3] sm:$0xff]
    %v1362 = vld [vmem:[#allocation3 + $0x8] sm:$0xff]
    %v1363 = vld [vmem:[#allocation3 + $0x10] sm:$0xff]
    %v1364 = vld [vmem:[#allocation3 + $0x18] sm:$0xff]
    %v1365 = vld [vmem:[#allocation6] sm:$0xff]
    %v1366 = vld [vmem:[#allocation6 + $0x8] sm:$0xff]
    %v1367 = vld [vmem:[#allocation6 + $0x10] sm:$0xff]
    %v1368 = vld [vmem:[#allocation6 + $0x18] sm:$0xff]
    %v1369 = vld [vmem:[#allocation6 + $0x20] sm:$0xff]
    %v1370 = vld [vmem:[#allocation6 + $0x28] sm:$0xff]
    %v1371 = vld [vmem:[#allocation6 + $0x30] sm:$0xff]
    %v1372 = vld [vmem:[#allocation6 + $0x38] sm:$0xff]
    %v1373 = vld [vmem:[#allocation6 + $0x40] sm:$0xff]
    %v1374 = vld [vmem:[#allocation6 + $0x48] sm:$0xff]
    %v1375 = vld [vmem:[#allocation6 + $0x50] sm:$0xff]
    %v1376 = vld [vmem:[#allocation6 + $0x58] sm:$0xff]
    %v1377 = vld [vmem:[#allocation6 + $0x60] sm:$0xff]
    %v1378 = vld [vmem:[#allocation6 + $0x68] sm:$0xff]
    %v1379 = vld [vmem:[#allocation6 + $0x70] sm:$0xff]
    %v1380 = vld [vmem:[#allocation6 + $0x78] sm:$0xff]
    %v1381 = vld [vmem:[#allocation6 + $0x80] sm:$0xff]
    %v1382 = vld [vmem:[#allocation6 + $0x88] sm:$0xff]
    %v1383 = vld [vmem:[#allocation6 + $0x90] sm:$0xff]
    %v1384 = vld [vmem:[#allocation6 + $0x98] sm:$0xff]
    %v1385 = vld [vmem:[#allocation6 + $0xa0] sm:$0xff]
    %v1386 = vld [vmem:[#allocation6 + $0xa8] sm:$0xff]
    %v1387 = vld [vmem:[#allocation6 + $0xb0] sm:$0xff]
    %v1388 = vld [vmem:[#allocation6 + $0xb8] sm:$0xff]
    %v1389 = vld [vmem:[#allocation6 + $0xc0] sm:$0xff]
    %v1390 = vld [vmem:[#allocation6 + $0xc8] sm:$0xff]
    %v1391 = vld [vmem:[#allocation6 + $0xd0] sm:$0xff]
    %v1392 = vld [vmem:[#allocation6 + $0xd8] sm:$0xff]
    %v1393 = vld [vmem:[#allocation6 + $0xe0] sm:$0xff]
    %v1394 = vld [vmem:[#allocation6 + $0xe8] sm:$0xff]
    %v1395 = vld [vmem:[#allocation6 + $0xf0] sm:$0xff]
    %v1396 = vld [vmem:[#allocation6 + $0xf8] sm:$0xff]
    %v1397 = vld [vmem:[%s5] sm:$0xf]
    %v1399 = vlaneseq
    %v1400 = vshrl.u32 %v1399, 7
    %v1401 = vsub.s32 0, %v1400
    %v1402 = vrot.slane %v1397, %v1401
    %v1403 = vlaneseq
    %v1404 = vshrl.u32 %v1403, 7
    %v1405 = vsub.s32 1, %v1404
    %v1406 = vrot.slane %v1397, %v1405
    %v1407 = vlaneseq
    %v1408 = vshrl.u32 %v1407, 7
    %v1409 = vsub.s32 2, %v1408
    %v1410 = vrot.slane %v1397, %v1409
    %v1411 = vlaneseq
    %v1412 = vshrl.u32 %v1411, 7
    %v1413 = vsub.s32 3, %v1412
    %v1414 = vrot.slane %v1397, %v1413
    %v1451 = vunpack.c.l.b16 %v1365
    %v1452 = vunpack.c.h.b16 %v1365
    %v1453 = vunpack.c.l.b16 %v1366
    %v1454 = vunpack.c.h.b16 %v1366
    %v1455 = vunpack.c.l.b16 %v1367
    %v1456 = vunpack.c.h.b16 %v1367
    %v1457 = vunpack.c.l.b16 %v1368
    %v1458 = vunpack.c.h.b16 %v1368
    %v1459 = vunpack.c.l.b16 %v1369
    %v1460 = vunpack.c.h.b16 %v1369
    %v1461 = vunpack.c.l.b16 %v1370
    %v1462 = vunpack.c.h.b16 %v1370
    %v1463 = vunpack.c.l.b16 %v1371
    %v1464 = vunpack.c.h.b16 %v1371
    %v1465 = vunpack.c.l.b16 %v1372
    %v1466 = vunpack.c.h.b16 %v1372
    %v1467 = vunpack.c.l.b16 %v1373
    %v1468 = vunpack.c.h.b16 %v1373
    %v1469 = vunpack.c.l.b16 %v1374
    %v1470 = vunpack.c.h.b16 %v1374
    %v1471 = vunpack.c.l.b16 %v1375
    %v1472 = vunpack.c.h.b16 %v1375
    %v1473 = vunpack.c.l.b16 %v1376
    %v1474 = vunpack.c.h.b16 %v1376
    %v1475 = vunpack.c.l.b16 %v1377
    %v1476 = vunpack.c.h.b16 %v1377
    %v1477 = vunpack.c.l.b16 %v1378
    %v1478 = vunpack.c.h.b16 %v1378
    %v1479 = vunpack.c.l.b16 %v1379
    %v1480 = vunpack.c.h.b16 %v1379
    %v1481 = vunpack.c.l.b16 %v1380
    %v1482 = vunpack.c.h.b16 %v1380
    %v1483 = vunpack.c.l.b16 %v1381
    %v1484 = vunpack.c.h.b16 %v1381
    %v1485 = vunpack.c.l.b16 %v1382
    %v1486 = vunpack.c.h.b16 %v1382
    %v1487 = vunpack.c.l.b16 %v1383
    %v1488 = vunpack.c.h.b16 %v1383
    %v1489 = vunpack.c.l.b16 %v1384
    %v1490 = vunpack.c.h.b16 %v1384
    %v1491 = vunpack.c.l.b16 %v1385
    %v1492 = vunpack.c.h.b16 %v1385
    %v1493 = vunpack.c.l.b16 %v1386
    %v1494 = vunpack.c.h.b16 %v1386
    %v1495 = vunpack.c.l.b16 %v1387
    %v1496 = vunpack.c.h.b16 %v1387
    %v1497 = vunpack.c.l.b16 %v1388
    %v1498 = vunpack.c.h.b16 %v1388
    %v1499 = vunpack.c.l.b16 %v1389
    %v1500 = vunpack.c.h.b16 %v1389
    %v1501 = vunpack.c.l.b16 %v1390
    %v1502 = vunpack.c.h.b16 %v1390
    %v1503 = vunpack.c.l.b16 %v1391
    %v1504 = vunpack.c.h.b16 %v1391
    %v1505 = vunpack.c.l.b16 %v1392
    %v1506 = vunpack.c.h.b16 %v1392
    %v1507 = vunpack.c.l.b16 %v1393
    %v1508 = vunpack.c.h.b16 %v1393
    %v1509 = vunpack.c.l.b16 %v1394
    %v1510 = vunpack.c.h.b16 %v1394
    %v1511 = vunpack.c.l.b16 %v1395
    %v1512 = vunpack.c.h.b16 %v1395
    %v1513 = vunpack.c.l.b16 %v1396
    %v1514 = vunpack.c.h.b16 %v1396
    %v1515 = vpack.c.b16 %v1455, %v1451
    %v1516 = vpack.c.b16 %v1456, %v1452
    %v1517 = vpack.c.b16 %v1457, %v1453
    %v1518 = vpack.c.b16 %v1458, %v1454
    %v1519 = vpack.c.b16 %v1463, %v1459
    %v1520 = vpack.c.b16 %v1464, %v1460
    %v1521 = vpack.c.b16 %v1465, %v1461
    %v1522 = vpack.c.b16 %v1466, %v1462
    %v1523 = vpack.c.b16 %v1471, %v1467
    %v1524 = vpack.c.b16 %v1472, %v1468
    %v1525 = vpack.c.b16 %v1473, %v1469
    %v1526 = vpack.c.b16 %v1474, %v1470
    %v1527 = vpack.c.b16 %v1479, %v1475
    %v1528 = vpack.c.b16 %v1480, %v1476
    %v1529 = vpack.c.b16 %v1481, %v1477
    %v1530 = vpack.c.b16 %v1482, %v1478
    %v1531 = vpack.c.b16 %v1487, %v1483
    %v1532 = vpack.c.b16 %v1488, %v1484
    %v1533 = vpack.c.b16 %v1489, %v1485
    %v1534 = vpack.c.b16 %v1490, %v1486
    %v1535 = vpack.c.b16 %v1495, %v1491
    %v1536 = vpack.c.b16 %v1496, %v1492
    %v1537 = vpack.c.b16 %v1497, %v1493
    %v1538 = vpack.c.b16 %v1498, %v1494
    %v1539 = vpack.c.b16 %v1503, %v1499
    %v1540 = vpack.c.b16 %v1504, %v1500
    %v1541 = vpack.c.b16 %v1505, %v1501
    %v1542 = vpack.c.b16 %v1506, %v1502
    %v1543 = vpack.c.b16 %v1511, %v1507
    %v1544 = vpack.c.b16 %v1512, %v1508
    %v1545 = vpack.c.b16 %v1513, %v1509
    %v1546 = vpack.c.b16 %v1514, %v1510
    %1579 = vmatprep.subr.bf16.mxu0 %v1516
    %1580 = vmatpush1.bf16.msra.mxu0 %v1515
    %1581 = vmatprep.subr.bf16.mxu0 %v1520
    %1582 = vmatpush1.bf16.msra.mxu0 %v1519
    %1583 = vmatprep.subr.bf16.mxu0 %v1524
    %1584 = vmatpush1.bf16.msra.mxu0 %v1523
    %1585 = vmatprep.subr.bf16.mxu0 %v1528
    %1586 = vmatpush1.bf16.msra.mxu0 %v1527
    %1587 = vmatprep.subr.bf16.mxu0 %v1532
    %1588 = vmatpush1.bf16.msra.mxu0 %v1531
    %1589 = vmatprep.subr.bf16.mxu0 %v1536
    %1590 = vmatpush1.bf16.msra.mxu0 %v1535
    %1591 = vmatprep.subr.bf16.mxu0 %v1540
    %1592 = vmatpush1.bf16.msra.mxu0 %v1539
    %1593 = vmatprep.subr.bf16.mxu0 %v1544
    %1594 = vmatpush1.bf16.msra.mxu0 %v1543
    %1595 = vmatprep.subr.bf16.mxu0 0
    %1596 = vmatpush1.bf16.msra.mxu0 0
    %1597 = vmatprep.subr.bf16.mxu0 0
    %1598 = vmatpush1.bf16.msra.mxu0 0
    %1599 = vmatprep.subr.bf16.mxu0 0
    %1600 = vmatpush1.bf16.msra.mxu0 0
    %1601 = vmatprep.subr.bf16.mxu0 0
    %1602 = vmatpush1.bf16.msra.mxu0 0
    %1603 = vmatprep.subr.bf16.mxu0 0
    %1604 = vmatpush1.bf16.msra.mxu0 0
    %1605 = vmatprep.subr.bf16.mxu0 0
    %1606 = vmatpush1.bf16.msra.mxu0 0
    %1607 = vmatprep.subr.bf16.mxu0 0
    %1608 = vmatpush1.bf16.msra.mxu0 0
    %1609 = vmatprep.subr.bf16.mxu0 0
    %1610 = vmatpush1.bf16.msra.mxu0 0
    %1611 = vmatprep.mubr.bf16.mxu0 0
    %1612 = vmatmul.mubr.bf16.gmra.mrb[0].mxu0 %v1361
    %v1613 = vpop.f32.mrb[0].mxu0
    %v1614 = vadd.f32 %v1402, %v1613
    %v1615 = vpop.f32.mrb[0].mxu0
    %v1616 = vadd.f32 %v1406, %v1615
    %v1617 = vpop.f32.mrb[0].mxu0
    %v1618 = vadd.f32 %v1402, %v1617
    %v1619 = vpop.f32.mrb[0].mxu0
    %v1620 = vadd.f32 %v1406, %v1619
    %1621 = vmatprep.mubr.bf16.mxu0 0
    %1622 = vmatmul.mubr.bf16.gmra.mrb[0].mxu0 %v1362
    %v1623 = vpop.f32.mrb[0].mxu0
    %v1624 = vadd.f32 %v1402, %v1623
    %v1625 = vpop.f32.mrb[0].mxu0
    %v1626 = vadd.f32 %v1406, %v1625
    %v1627 = vpop.f32.mrb[0].mxu0
    %v1628 = vadd.f32 %v1402, %v1627
    %v1629 = vpop.f32.mrb[0].mxu0
    %v1630 = vadd.f32 %v1406, %v1629
    %1631 = vmatprep.mubr.bf16.mxu0 0
    %1632 = vmatmul.mubr.bf16.gmra.mrb[0].mxu0 %v1363
    %v1633 = vpop.f32.mrb[0].mxu0
    %v1634 = vadd.f32 %v1402, %v1633
    %v1635 = vpop.f32.mrb[0].mxu0
    %v1636 = vadd.f32 %v1406, %v1635
    %v1637 = vpop.f32.mrb[0].mxu0
    %v1638 = vadd.f32 %v1402, %v1637
    %v1639 = vpop.f32.mrb[0].mxu0
    %v1640 = vadd.f32 %v1406, %v1639
    %1641 = vmatprep.mubr.bf16.mxu0 0
    %1642 = vmatmul.mubr.bf16.gmra.mrb[0].mxu0 %v1364
    %v1643 = vpop.f32.mrb[0].mxu0
    %v1644 = vadd.f32 %v1402, %v1643
    %v1645 = vpop.f32.mrb[0].mxu0
    %v1646 = vadd.f32 %v1406, %v1645
    %v1647 = vpop.f32.mrb[0].mxu0
    %v1648 = vadd.f32 %v1402, %v1647
    %v1649 = vpop.f32.mrb[0].mxu0
    %v1650 = vadd.f32 %v1406, %v1649
    %1651 = vdwg.mxu0
    %1652 = vmatprep.subr.bf16.mxu0 %v1518
    %1653 = vmatpush1.bf16.msra.mxu0 %v1517
    %1654 = vmatprep.subr.bf16.mxu0 %v1522
    %1655 = vmatpush1.bf16.msra.mxu0 %v1521
    %1656 = vmatprep.subr.bf16.mxu0 %v1526
    %1657 = vmatpush1.bf16.msra.mxu0 %v1525
    %1658 = vmatprep.subr.bf16.mxu0 %v1530
    %1659 = vmatpush1.bf16.msra.mxu0 %v1529
    %1660 = vmatprep.subr.bf16.mxu0 %v1534
    %1661 = vmatpush1.bf16.msra.mxu0 %v1533
    %1662 = vmatprep.subr.bf16.mxu0 %v1538
    %1663 = vmatpush1.bf16.msra.mxu0 %v1537
    %1664 = vmatprep.subr.bf16.mxu0 %v1542
    %1665 = vmatpush1.bf16.msra.mxu0 %v1541
    %1666 = vmatprep.subr.bf16.mxu0 %v1546
    %1667 = vmatpush1.bf16.msra.mxu0 %v1545
    %1668 = vmatprep.subr.bf16.mxu0 0
    %1669 = vmatpush1.bf16.msra.mxu0 0
    %1670 = vmatprep.subr.bf16.mxu0 0
    %1671 = vmatpush1.bf16.msra.mxu0 0
    %1672 = vmatprep.subr.bf16.mxu0 0
    %1673 = vmatpush1.bf16.msra.mxu0 0
    %1674 = vmatprep.subr.bf16.mxu0 0
    %1675 = vmatpush1.bf16.msra.mxu0 0
    %1676 = vmatprep.subr.bf16.mxu0 0
    %1677 = vmatpush1.bf16.msra.mxu0 0
    %1678 = vmatprep.subr.bf16.mxu0 0
    %1679 = vmatpush1.bf16.msra.mxu0 0
    %1680 = vmatprep.subr.bf16.mxu0 0
    %1681 = vmatpush1.bf16.msra.mxu0 0
    %1682 = vmatprep.subr.bf16.mxu0 0
    %1683 = vmatpush1.bf16.msra.mxu0 0
    %1684 = vmatprep.mubr.bf16.mxu0 0
    %1685 = vmatmul.mubr.bf16.gmra.mrb[0].mxu0 %v1361
    %v1686 = vpop.f32.mrb[0].mxu0
    %v1687 = vadd.f32 %v1410, %v1686
    %v1688 = vpop.f32.mrb[0].mxu0
    %v1689 = vadd.f32 %v1414, %v1688
    %v1690 = vpop.f32.mrb[0].mxu0
    %v1691 = vadd.f32 %v1410, %v1690
    %v1692 = vpop.f32.mrb[0].mxu0
    %v1693 = vadd.f32 %v1414, %v1692
    %1694 = vmatprep.mubr.bf16.mxu0 0
    %1695 = vmatmul.mubr.bf16.gmra.mrb[0].mxu0 %v1362
    %v1696 = vpop.f32.mrb[0].mxu0
    %v1697 = vadd.f32 %v1410, %v1696
    %v1698 = vpop.f32.mrb[0].mxu0
    %v1699 = vadd.f32 %v1414, %v1698
    %v1700 = vpop.f32.mrb[0].mxu0
    %v1701 = vadd.f32 %v1410, %v1700
    %v1702 = vpop.f32.mrb[0].mxu0
    %v1703 = vadd.f32 %v1414, %v1702
    %1704 = vmatprep.mubr.bf16.mxu0 0
    %1705 = vmatmul.mubr.bf16.gmra.mrb[0].mxu0 %v1363
    %v1706 = vpop.f32.mrb[0].mxu0
    %v1707 = vadd.f32 %v1410, %v1706
    %v1708 = vpop.f32.mrb[0].mxu0
    %v1709 = vadd.f32 %v1414, %v1708
    %v1710 = vpop.f32.mrb[0].mxu0
    %v1711 = vadd.f32 %v1410, %v1710
    %v1712 = vpop.f32.mrb[0].mxu0
    %v1713 = vadd.f32 %v1414, %v1712
    %1714 = vmatprep.mubr.bf16.mxu0 0
    %1715 = vmatmul.mubr.bf16.gmra.mrb[0].mxu0 %v1364
    %v1716 = vpop.f32.mrb[0].mxu0
    %v1717 = vadd.f32 %v1410, %v1716
    %v1718 = vpop.f32.mrb[0].mxu0
    %v1719 = vadd.f32 %v1414, %v1718
    %v1720 = vpop.f32.mrb[0].mxu0
    %v1721 = vadd.f32 %v1410, %v1720
    %v1722 = vpop.f32.mrb[0].mxu0
    %v1723 = vadd.f32 %v1414, %v1722
    %1724 = vdwg.mxu0
    %v1725 = vpack.c.bf16 %v1618, %v1614
    %v1726 = vpack.c.bf16 %v1620, %v1616
    %v1727 = vpack.c.bf16 %v1691, %v1687
    %v1728 = vpack.c.bf16 %v1693, %v1689
    %v1729 = vpack.c.bf16 %v1628, %v1624
    %v1730 = vpack.c.bf16 %v1630, %v1626
    %v1731 = vpack.c.bf16 %v1701, %v1697
    %v1732 = vpack.c.bf16 %v1703, %v1699
    %v1733 = vpack.c.bf16 %v1638, %v1634
    %v1734 = vpack.c.bf16 %v1640, %v1636
    %v1735 = vpack.c.bf16 %v1711, %v1707
    %v1736 = vpack.c.bf16 %v1713, %v1709
    %v1737 = vpack.c.bf16 %v1648, %v1644
    %v1738 = vpack.c.bf16 %v1650, %v1646
    %v1739 = vpack.c.bf16 %v1721, %v1717
    %v1740 = vpack.c.bf16 %v1723, %v1719
    %1741 = vst [vmem:[#allocation2] sm:$0xff] %v1725
    %1742 = vst [vmem:[#allocation2 + $0x8] sm:$0xff] %v1726
    %1743 = vst [vmem:[#allocation2 + $0x10] sm:$0xff] %v1727
    %1744 = vst [vmem:[#allocation2 + $0x18] sm:$0xff] %v1728
    %1745 = vst [vmem:[#allocation2 + $0x20] sm:$0xff] %v1729
    %1746 = vst [vmem:[#allocation2 + $0x28] sm:$0xff] %v1730
    %1747 = vst [vmem:[#allocation2 + $0x30] sm:$0xff] %v1731
    %1748 = vst [vmem:[#allocation2 + $0x38] sm:$0xff] %v1732
    %1749 = vst [vmem:[#allocation2 + $0x40] sm:$0xff] %v1733
    %1750 = vst [vmem:[#allocation2 + $0x48] sm:$0xff] %v1734
    %1751 = vst [vmem:[#allocation2 + $0x50] sm:$0xff] %v1735
    %1752 = vst [vmem:[#allocation2 + $0x58] sm:$0xff] %v1736
    %1753 = vst [vmem:[#allocation2 + $0x60] sm:$0xff] %v1737
    %1754 = vst [vmem:[#allocation2 + $0x68] sm:$0xff] %v1738
    %1755 = vst [vmem:[#allocation2 + $0x70] sm:$0xff] %v1739
    %1756 = vst [vmem:[#allocation2 + $0x78] sm:$0xff] %v1740
    %1757 = vst [vmem:[#allocation4] sm:$0xff] 0.0
    %1758 = vst [vmem:[#allocation5] sm:$0xff] 0.0
    %v1759 = vld [vmem:[#allocation8] sm:$0xff]
    %v1760 = vld [vmem:[#allocation8 + $0x8] sm:$0xff]
    %v1761 = vld [vmem:[#allocation8 + $0x10] sm:$0xff]
    %v1762 = vld [vmem:[#allocation8 + $0x18] sm:$0xff]
    %v1763 = vld [vmem:[#allocation8 + $0x20] sm:$0xff]
    %v1764 = vld [vmem:[#allocation8 + $0x28] sm:$0xff]
    %v1765 = vld [vmem:[#allocation8 + $0x30] sm:$0xff]
    %v1766 = vld [vmem:[#allocation8 + $0x38] sm:$0xff]
    %v1767 = vld [vmem:[#allocation8 + $0x40] sm:$0xff]
    %v1768 = vld [vmem:[#allocation8 + $0x48] sm:$0xff]
    %v1769 = vld [vmem:[#allocation8 + $0x50] sm:$0xff]
    %v1770 = vld [vmem:[#allocation8 + $0x58] sm:$0xff]
    %v1771 = vld [vmem:[#allocation8 + $0x60] sm:$0xff]
    %v1772 = vld [vmem:[#allocation8 + $0x68] sm:$0xff]
    %v1773 = vld [vmem:[#allocation8 + $0x70] sm:$0xff]
    %v1774 = vld [vmem:[#allocation8 + $0x78] sm:$0xff]
    %v1775 = vld [vmem:[#allocation8 + $0x80] sm:$0xff]
    %v1776 = vld [vmem:[#allocation8 + $0x88] sm:$0xff]
    %v1777 = vld [vmem:[#allocation8 + $0x90] sm:$0xff]
    %v1778 = vld [vmem:[#allocation8 + $0x98] sm:$0xff]
    %v1779 = vld [vmem:[#allocation8 + $0xa0] sm:$0xff]
    %v1780 = vld [vmem:[#allocation8 + $0xa8] sm:$0xff]
    %v1781 = vld [vmem:[#allocation8 + $0xb0] sm:$0xff]
    %v1782 = vld [vmem:[#allocation8 + $0xb8] sm:$0xff]
    %v1783 = vld [vmem:[#allocation8 + $0xc0] sm:$0xff]
    %v1784 = vld [vmem:[#allocation8 + $0xc8] sm:$0xff]
    %v1785 = vld [vmem:[#allocation8 + $0xd0] sm:$0xff]
    %v1786 = vld [vmem:[#allocation8 + $0xd8] sm:$0xff]
    %v1787 = vld [vmem:[#allocation8 + $0xe0] sm:$0xff]
    %v1788 = vld [vmem:[#allocation8 + $0xe8] sm:$0xff]
    %v1789 = vld [vmem:[#allocation8 + $0xf0] sm:$0xff]
    %v1790 = vld [vmem:[#allocation8 + $0xf8] sm:$0xff]
    %v1791 = vld [vmem:[#allocation2] sm:$0xf]
    %v1792 = vld [vmem:[#allocation2 + $0x8] sm:$0xf]
    %v1793 = vld [vmem:[#allocation2 + $0x10] sm:$0xf]
    %v1794 = vld [vmem:[#allocation2 + $0x18] sm:$0xf]
    %v1795 = vunpack.c.l.bf16 %v1791
    %v1796 = vunpack.c.l.bf16 %v1792
    %v1797 = vunpack.c.l.bf16 %v1793
    %v1798 = vunpack.c.l.bf16 %v1794
    %v1799 = vld [vmem:[#allocation4] sm:$0xff]
    %v1800 = vld [vmem:[#allocation5] sm:$0xff]
    %v1801 = vpack.c.bf16 %v1799, %v1799
    %v1834 = vunpack.c.l.b16 %v1759
    %v1835 = vunpack.c.h.b16 %v1759
    %v1836 = vunpack.c.l.b16 %v1760
    %v1837 = vunpack.c.h.b16 %v1760
    %v1838 = vunpack.c.l.b16 %v1761
    %v1839 = vunpack.c.h.b16 %v1761
    %v1840 = vunpack.c.l.b16 %v1762
    %v1841 = vunpack.c.h.b16 %v1762
    %v1842 = vunpack.c.l.b16 %v1763
    %v1843 = vunpack.c.h.b16 %v1763
    %v1844 = vunpack.c.l.b16 %v1764
    %v1845 = vunpack.c.h.b16 %v1764
    %v1846 = vunpack.c.l.b16 %v1765
    %v1847 = vunpack.c.h.b16 %v1765
    %v1848 = vunpack.c.l.b16 %v1766
    %v1849 = vunpack.c.h.b16 %v1766
    %v1850 = vunpack.c.l.b16 %v1767
    %v1851 = vunpack.c.h.b16 %v1767
    %v1852 = vunpack.c.l.b16 %v1768
    %v1853 = vunpack.c.h.b16 %v1768
    %v1854 = vunpack.c.l.b16 %v1769
    %v1855 = vunpack.c.h.b16 %v1769
    %v1856 = vunpack.c.l.b16 %v1770
    %v1857 = vunpack.c.h.b16 %v1770
    %v1858 = vunpack.c.l.b16 %v1771
    %v1859 = vunpack.c.h.b16 %v1771
    %v1860 = vunpack.c.l.b16 %v1772
    %v1861 = vunpack.c.h.b16 %v1772
    %v1862 = vunpack.c.l.b16 %v1773
    %v1863 = vunpack.c.h.b16 %v1773
    %v1864 = vunpack.c.l.b16 %v1774
    %v1865 = vunpack.c.h.b16 %v1774
    %v1866 = vunpack.c.l.b16 %v1775
    %v1867 = vunpack.c.h.b16 %v1775
    %v1868 = vunpack.c.l.b16 %v1776
    %v1869 = vunpack.c.h.b16 %v1776
    %v1870 = vunpack.c.l.b16 %v1777
    %v1871 = vunpack.c.h.b16 %v1777
    %v1872 = vunpack.c.l.b16 %v1778
    %v1873 = vunpack.c.h.b16 %v1778
    %v1874 = vunpack.c.l.b16 %v1779
    %v1875 = vunpack.c.h.b16 %v1779
    %v1876 = vunpack.c.l.b16 %v1780
    %v1877 = vunpack.c.h.b16 %v1780
    %v1878 = vunpack.c.l.b16 %v1781
    %v1879 = vunpack.c.h.b16 %v1781
    %v1880 = vunpack.c.l.b16 %v1782
    %v1881 = vunpack.c.h.b16 %v1782
    %v1882 = vunpack.c.l.b16 %v1783
    %v1883 = vunpack.c.h.b16 %v1783
    %v1884 = vunpack.c.l.b16 %v1784
    %v1885 = vunpack.c.h.b16 %v1784
    %v1886 = vunpack.c.l.b16 %v1785
    %v1887 = vunpack.c.h.b16 %v1785
    %v1888 = vunpack.c.l.b16 %v1786
    %v1889 = vunpack.c.h.b16 %v1786
    %v1890 = vunpack.c.l.b16 %v1787
    %v1891 = vunpack.c.h.b16 %v1787
    %v1892 = vunpack.c.l.b16 %v1788
    %v1893 = vunpack.c.h.b16 %v1788
    %v1894 = vunpack.c.l.b16 %v1789
    %v1895 = vunpack.c.h.b16 %v1789
    %v1896 = vunpack.c.l.b16 %v1790
    %v1897 = vunpack.c.h.b16 %v1790
    %v1898 = vpack.c.b16 %v1838, %v1834
    %v1899 = vpack.c.b16 %v1839, %v1835
    %v1900 = vpack.c.b16 %v1840, %v1836
    %v1901 = vpack.c.b16 %v1841, %v1837
    %v1902 = vpack.c.b16 %v1846, %v1842
    %v1903 = vpack.c.b16 %v1847, %v1843
    %v1904 = vpack.c.b16 %v1848, %v1844
    %v1905 = vpack.c.b16 %v1849, %v1845
    %v1906 = vpack.c.b16 %v1854, %v1850
    %v1907 = vpack.c.b16 %v1855, %v1851
    %v1908 = vpack.c.b16 %v1856, %v1852
    %v1909 = vpack.c.b16 %v1857, %v1853
    %v1910 = vpack.c.b16 %v1862, %v1858
    %v1911 = vpack.c.b16 %v1863, %v1859
    %v1912 = vpack.c.b16 %v1864, %v1860
    %v1913 = vpack.c.b16 %v1865, %v1861
    %v1914 = vpack.c.b16 %v1870, %v1866
    %v1915 = vpack.c.b16 %v1871, %v1867
    %v1916 = vpack.c.b16 %v1872, %v1868
    %v1917 = vpack.c.b16 %v1873, %v1869
    %v1918 = vpack.c.b16 %v1878, %v1874
    %v1919 = vpack.c.b16 %v1879, %v1875
    %v1920 = vpack.c.b16 %v1880, %v1876
    %v1921 = vpack.c.b16 %v1881, %v1877
    %v1922 = vpack.c.b16 %v1886, %v1882
    %v1923 = vpack.c.b16 %v1887, %v1883
    %v1924 = vpack.c.b16 %v1888, %v1884
    %v1925 = vpack.c.b16 %v1889, %v1885
    %v1926 = vpack.c.b16 %v1894, %v1890
    %v1927 = vpack.c.b16 %v1895, %v1891
    %v1928 = vpack.c.b16 %v1896, %v1892
    %v1929 = vpack.c.b16 %v1897, %v1893
    %1962 = vmatprep.subr.bf16.mxu0 %v1899
    %1963 = vmatpush1.bf16.msra.mxu0 %v1898
    %1964 = vmatprep.subr.bf16.mxu0 %v1903
    %1965 = vmatpush1.bf16.msra.mxu0 %v1902
    %1966 = vmatprep.subr.bf16.mxu0 %v1907
    %1967 = vmatpush1.bf16.msra.mxu0 %v1906
    %1968 = vmatprep.subr.bf16.mxu0 %v1911
    %1969 = vmatpush1.bf16.msra.mxu0 %v1910
    %1970 = vmatprep.subr.bf16.mxu0 %v1915
    %1971 = vmatpush1.bf16.msra.mxu0 %v1914
    %1972 = vmatprep.subr.bf16.mxu0 %v1919
    %1973 = vmatpush1.bf16.msra.mxu0 %v1918
    %1974 = vmatprep.subr.bf16.mxu0 %v1923
    %1975 = vmatpush1.bf16.msra.mxu0 %v1922
    %1976 = vmatprep.subr.bf16.mxu0 %v1927
    %1977 = vmatpush1.bf16.msra.mxu0 %v1926
    %1978 = vmatprep.subr.bf16.mxu0 0
    %1979 = vmatpush1.bf16.msra.mxu0 0
    %1980 = vmatprep.subr.bf16.mxu0 0
    %1981 = vmatpush1.bf16.msra.mxu0 0
    %1982 = vmatprep.subr.bf16.mxu0 0
    %1983 = vmatpush1.bf16.msra.mxu0 0
    %1984 = vmatprep.subr.bf16.mxu0 0
    %1985 = vmatpush1.bf16.msra.mxu0 0
    %1986 = vmatprep.subr.bf16.mxu0 0
    %1987 = vmatpush1.bf16.msra.mxu0 0
    %1988 = vmatprep.subr.bf16.mxu0 0
    %1989 = vmatpush1.bf16.msra.mxu0 0
    %1990 = vmatprep.subr.bf16.mxu0 0
    %1991 = vmatpush1.bf16.msra.mxu0 0
    %1992 = vmatprep.subr.bf16.mxu0 0
    %1993 = vmatpush1.bf16.msra.mxu0 0
    %1994 = vmatprep.mubr.bf16.mxu0 0
    %1995 = vmatmul.mubr.bf16.gmra.mrb[0].mxu0 %v1801
    %v1996 = vpop.f32.mrb[0].mxu0
    %v1997 = vadd.f32 0.0, %v1996
    %v1998 = vpop.f32.mrb[0].mxu0
    %v1999 = vadd.f32 0.0, %v1998
    %v2000 = vpop.f32.mrb[0].mxu0
    %v2001 = vpop.f32.mrb[0].mxu0
    %2002 = vdwg.mxu0
    %2003 = vmatprep.subr.bf16.mxu0 %v1901
    %2004 = vmatpush1.bf16.msra.mxu0 %v1900
    %2005 = vmatprep.subr.bf16.mxu0 %v1905
    %2006 = vmatpush1.bf16.msra.mxu0 %v1904
    %2007 = vmatprep.subr.bf16.mxu0 %v1909
    %2008 = vmatpush1.bf16.msra.mxu0 %v1908
    %2009 = vmatprep.subr.bf16.mxu0 %v1913
    %2010 = vmatpush1.bf16.msra.mxu0 %v1912
    %2011 = vmatprep.subr.bf16.mxu0 %v1917
    %2012 = vmatpush1.bf16.msra.mxu0 %v1916
    %2013 = vmatprep.subr.bf16.mxu0 %v1921
    %2014 = vmatpush1.bf16.msra.mxu0 %v1920
    %2015 = vmatprep.subr.bf16.mxu0 %v1925
    %2016 = vmatpush1.bf16.msra.mxu0 %v1924
    %2017 = vmatprep.subr.bf16.mxu0 %v1929
    %2018 = vmatpush1.bf16.msra.mxu0 %v1928
    %2019 = vmatprep.subr.bf16.mxu0 0
    %2020 = vmatpush1.bf16.msra.mxu0 0
    %2021 = vmatprep.subr.bf16.mxu0 0
    %2022 = vmatpush1.bf16.msra.mxu0 0
    %2023 = vmatprep.subr.bf16.mxu0 0
    %2024 = vmatpush1.bf16.msra.mxu0 0
    %2025 = vmatprep.subr.bf16.mxu0 0
    %2026 = vmatpush1.bf16.msra.mxu0 0
    %2027 = vmatprep.subr.bf16.mxu0 0
    %2028 = vmatpush1.bf16.msra.mxu0 0
    %2029 = vmatprep.subr.bf16.mxu0 0
    %2030 = vmatpush1.bf16.msra.mxu0 0
    %2031 = vmatprep.subr.bf16.mxu0 0
    %2032 = vmatpush1.bf16.msra.mxu0 0
    %2033 = vmatprep.subr.bf16.mxu0 0
    %2034 = vmatpush1.bf16.msra.mxu0 0
    %2035 = vmatprep.mubr.bf16.mxu0 0
    %2036 = vmatmul.mubr.bf16.gmra.mrb[0].mxu0 %v1801
    %v2037 = vpop.f32.mrb[0].mxu0
    %v2038 = vadd.f32 0.0, %v2037
    %v2039 = vpop.f32.mrb[0].mxu0
    %v2040 = vadd.f32 0.0, %v2039
    %v2041 = vpop.f32.mrb[0].mxu0
    %v2042 = vpop.f32.mrb[0].mxu0
    %2043 = vdwg.mxu0
    %v2044 = vadd.f32 %v1795, %v1997
    %v2045 = vadd.f32 %v1796, %v1999
    %v2046 = vadd.f32 %v1797, %v2038
    %v2047 = vadd.f32 %v1798, %v2040
    %v2048 = vxor.u32 %v2044, 2147483648
    %v2049 = vmul.f32 %v2048, 1.442695
    %v2050 = vpow.pop %v2049
    %v2051 = vadd.f32 %v2050, 1.0
    %v2052 = vrcp.pop %v2051
    %v2053 = vmul.f32 1.0, %v2052
    %v2054 = vxor.u32 %v2045, 2147483648
    %v2055 = vmul.f32 %v2054, 1.442695
    %v2056 = vpow.pop %v2055
    %v2057 = vadd.f32 %v2056, 1.0
    %v2058 = vrcp.pop %v2057
    %v2059 = vmul.f32 1.0, %v2058
    %v2060 = vtanh.pop %v2046
    %v2061 = vxor.u32 %v2047, 2147483648
    %v2062 = vmul.f32 %v2061, 1.442695
    %v2063 = vpow.pop %v2062
    %v2064 = vadd.f32 %v2063, 1.0
    %v2065 = vrcp.pop %v2064
    %v2066 = vmul.f32 1.0, %v2065
    %v2067 = vmul.f32 %v2059, %v1800
    %v2068 = vmul.f32 %v2053, %v2060
    %v2069 = vadd.f32 %v2067, %v2068
    %v2070 = vtanh.pop %v2069
    %v2071 = vmul.f32 %v2066, %v2070
    %v2072 = vsub.f32 %v2069, %v1800
    %v2073 = vmul.f32 %v378, %v2072
    %v2074 = vadd.f32 %v1800, %v2073
    %v2075 = vsub.f32 %v2071, %v1799
    %v2076 = vmul.f32 %v378, %v2075
    %v2077 = vadd.f32 %v1799, %v2076
    %2078 = vst [vmem:[#allocation5] sm:$0xff] %v2074
    %2079 = vst [vmem:[#allocation4] sm:$0xff] %v2077
    %v2080 = vld [vmem:[#allocation2] sm:$0xf0]
    %v2081 = vld [vmem:[#allocation2 + $0x8] sm:$0xf0]
    %v2082 = vld [vmem:[#allocation2 + $0x10] sm:$0xf0]
    %v2083 = vld [vmem:[#allocation2 + $0x18] sm:$0xf0]
    %v2088 = vrot.slane %v2080, 4
    %v2089 = vrot.slane %v2081, 4
    %v2090 = vrot.slane %v2082, 4
    %v2091 = vrot.slane %v2083, 4
    %v2096 = vunpack.c.l.bf16 %v2088
    %v2097 = vunpack.c.l.bf16 %v2089
    %v2098 = vunpack.c.l.bf16 %v2090
    %v2099 = vunpack.c.l.bf16 %v2091
    %v2100 = vld [vmem:[#allocation4] sm:$0xff]
    %v2101 = vld [vmem:[#allocation5] sm:$0xff]
    %v2102 = vpack.c.bf16 %v2100, %v2100
    %2103 = vmatprep.subr.bf16.mxu0 %v1899
    %2104 = vmatpush1.bf16.msra.mxu0 %v1898
    %2105 = vmatprep.subr.bf16.mxu0 %v1903
    %2106 = vmatpush1.bf16.msra.mxu0 %v1902
    %2107 = vmatprep.subr.bf16.mxu0 %v1907
    %2108 = vmatpush1.bf16.msra.mxu0 %v1906
    %2109 = vmatprep.subr.bf16.mxu0 %v1911
    %2110 = vmatpush1.bf16.msra.mxu0 %v1910
    %2111 = vmatprep.subr.bf16.mxu0 %v1915
    %2112 = vmatpush1.bf16.msra.mxu0 %v1914
    %2113 = vmatprep.subr.bf16.mxu0 %v1919
    %2114 = vmatpush1.bf16.msra.mxu0 %v1918
    %2115 = vmatprep.subr.bf16.mxu0 %v1923
    %2116 = vmatpush1.bf16.msra.mxu0 %v1922
    %2117 = vmatprep.subr.bf16.mxu0 %v1927
    %2118 = vmatpush1.bf16.msra.mxu0 %v1926
    %2119 = vmatprep.subr.bf16.mxu0 0
    %2120 = vmatpush1.bf16.msra.mxu0 0
    %2121 = vmatprep.subr.bf16.mxu0 0
    %2122 = vmatpush1.bf16.msra.mxu0 0
    %2123 = vmatprep.subr.bf16.mxu0 0
    %2124 = vmatpush1.bf16.msra.mxu0 0
    %2125 = vmatprep.subr.bf16.mxu0 0
    %2126 = vmatpush1.bf16.msra.mxu0 0
    %2127 = vmatprep.subr.bf16.mxu0 0
    %2128 = vmatpush1.bf16.msra.mxu0 0
    %2129 = vmatprep.subr.bf16.mxu0 0
    %2130 = vmatpush1.bf16.msra.mxu0 0
    %2131 = vmatprep.subr.bf16.mxu0 0
    %2132 = vmatpush1.bf16.msra.mxu0 0
    %2133 = vmatprep.subr.bf16.mxu0 0
    %2134 = vmatpush1.bf16.msra.mxu0 0
    %2135 = vmatprep.mubr.bf16.mxu0 0
    %2136 = vmatmul.mubr.bf16.gmra.mrb[0].mxu0 %v2102
    %v2137 = vpop.f32.mrb[0].mxu0
    %v2138 = vadd.f32 0.0, %v2137
    %v2139 = vpop.f32.mrb[0].mxu0
    %v2140 = vadd.f32 0.0, %v2139
    %v2141 = vpop.f32.mrb[0].mxu0
    %v2142 = vpop.f32.mrb[0].mxu0
    %2143 = vdwg.mxu0
    %2144 = vmatprep.subr.bf16.mxu0 %v1901
    %2145 = vmatpush1.bf16.msra.mxu0 %v1900
    %2146 = vmatprep.subr.bf16.mxu0 %v1905
    %2147 = vmatpush1.bf16.msra.mxu0 %v1904
    %2148 = vmatprep.subr.bf16.mxu0 %v1909
    %2149 = vmatpush1.bf16.msra.mxu0 %v1908
    %2150 = vmatprep.subr.bf16.mxu0 %v1913
    %2151 = vmatpush1.bf16.msra.mxu0 %v1912
    %2152 = vmatprep.subr.bf16.mxu0 %v1917
    %2153 = vmatpush1.bf16.msra.mxu0 %v1916
    %2154 = vmatprep.subr.bf16.mxu0 %v1921
    %2155 = vmatpush1.bf16.msra.mxu0 %v1920
    %2156 = vmatprep.subr.bf16.mxu0 %v1925
    %2157 = vmatpush1.bf16.msra.mxu0 %v1924
    %2158 = vmatprep.subr.bf16.mxu0 %v1929
    %2159 = vmatpush1.bf16.msra.mxu0 %v1928
    %2160 = vmatprep.subr.bf16.mxu0 0
    %2161 = vmatpush1.bf16.msra.mxu0 0
    %2162 = vmatprep.subr.bf16.mxu0 0
    %2163 = vmatpush1.bf16.msra.mxu0 0
    %2164 = vmatprep.subr.bf16.mxu0 0
    %2165 = vmatpush1.bf16.msra.mxu0 0
    %2166 = vmatprep.subr.bf16.mxu0 0
    %2167 = vmatpush1.bf16.msra.mxu0 0
    %2168 = vmatprep.subr.bf16.mxu0 0
    %2169 = vmatpush1.bf16.msra.mxu0 0
    %2170 = vmatprep.subr.bf16.mxu0 0
    %2171 = vmatpush1.bf16.msra.mxu0 0
    %2172 = vmatprep.subr.bf16.mxu0 0
    %2173 = vmatpush1.bf16.msra.mxu0 0
    %2174 = vmatprep.subr.bf16.mxu0 0
    %2175 = vmatpush1.bf16.msra.mxu0 0
    %2176 = vmatprep.mubr.bf16.mxu0 0
    %2177 = vmatmul.mubr.bf16.gmra.mrb[0].mxu0 %v2102
    %v2178 = vpop.f32.mrb[0].mxu0
    %v2179 = vadd.f32 0.0, %v2178
    %v2180 = vpop.f32.mrb[0].mxu0
    %v2181 = vadd.f32 0.0, %v2180
    %v2182 = vpop.f32.mrb[0].mxu0
    %v2183 = vpop.f32.mrb[0].mxu0
    %2184 = vdwg.mxu0
    %v2185 = vadd.f32 %v2096, %v2138
    %v2186 = vadd.f32 %v2097, %v2140
    %v2187 = vadd.f32 %v2098, %v2179
    %v2188 = vadd.f32 %v2099, %v2181
    %v2189 = vxor.u32 %v2185, 2147483648
    %v2190 = vmul.f32 %v2189, 1.442695
    %v2191 = vpow.pop %v2190
    %v2192 = vadd.f32 %v2191, 1.0
    %v2193 = vrcp.pop %v2192
    %v2194 = vmul.f32 1.0, %v2193
    %v2195 = vxor.u32 %v2186, 2147483648
    %v2196 = vmul.f32 %v2195, 1.442695
    %v2197 = vpow.pop %v2196
    %v2198 = vadd.f32 %v2197, 1.0
    %v2199 = vrcp.pop %v2198
    %v2200 = vmul.f32 1.0, %v2199
    %v2201 = vtanh.pop %v2187
    %v2202 = vxor.u32 %v2188, 2147483648
    %v2203 = vmul.f32 %v2202, 1.442695
    %v2204 = vpow.pop %v2203
    %v2205 = vadd.f32 %v2204, 1.0
    %v2206 = vrcp.pop %v2205
    %v2207 = vmul.f32 1.0, %v2206
    %v2208 = vmul.f32 %v2200, %v2101
    %v2209 = vmul.f32 %v2194, %v2201
    %v2210 = vadd.f32 %v2208, %v2209
    %v2211 = vtanh.pop %v2210
    %v2212 = vmul.f32 %v2207, %v2211
    %v2213 = vsub.f32 %v2210, %v2101
    %v2214 = vmul.f32 %v515, %v2213
    %v2215 = vadd.f32 %v2101, %v2214
    %v2216 = vsub.f32 %v2212, %v2100
    %v2217 = vmul.f32 %v515, %v2216
    %v2218 = vadd.f32 %v2100, %v2217
    %2219 = vst [vmem:[#allocation5] sm:$0xff] %v2215
    %2220 = vst [vmem:[#allocation4] sm:$0xff] %v2218
    %v2221 = vld [vmem:[#allocation2 + $0x20] sm:$0xf]
    %v2222 = vld [vmem:[#allocation2 + $0x28] sm:$0xf]
    %v2223 = vld [vmem:[#allocation2 + $0x30] sm:$0xf]
    %v2224 = vld [vmem:[#allocation2 + $0x38] sm:$0xf]
    %v2225 = vunpack.c.l.bf16 %v2221
    %v2226 = vunpack.c.l.bf16 %v2222
    %v2227 = vunpack.c.l.bf16 %v2223
    %v2228 = vunpack.c.l.bf16 %v2224
    %v2229 = vld [vmem:[#allocation4] sm:$0xff]
    %v2230 = vld [vmem:[#allocation5] sm:$0xff]
    %v2231 = vpack.c.bf16 %v2229, %v2229
    %2232 = vmatprep.subr.bf16.mxu0 %v1899
    %2233 = vmatpush1.bf16.msra.mxu0 %v1898
    %2234 = vmatprep.subr.bf16.mxu0 %v1903
    %2235 = vmatpush1.bf16.msra.mxu0 %v1902
    %2236 = vmatprep.subr.bf16.mxu0 %v1907
    %2237 = vmatpush1.bf16.msra.mxu0 %v1906
    %2238 = vmatprep.subr.bf16.mxu0 %v1911
    %2239 = vmatpush1.bf16.msra.mxu0 %v1910
    %2240 = vmatprep.subr.bf16.mxu0 %v1915
    %2241 = vmatpush1.bf16.msra.mxu0 %v1914
    %2242 = vmatprep.subr.bf16.mxu0 %v1919
    %2243 = vmatpush1.bf16.msra.mxu0 %v1918
    %2244 = vmatprep.subr.bf16.mxu0 %v1923
    %2245 = vmatpush1.bf16.msra.mxu0 %v1922
    %2246 = vmatprep.subr.bf16.mxu0 %v1927
    %2247 = vmatpush1.bf16.msra.mxu0 %v1926
    %2248 = vmatprep.subr.bf16.mxu0 0
    %2249 = vmatpush1.bf16.msra.mxu0 0
    %2250 = vmatprep.subr.bf16.mxu0 0
    %2251 = vmatpush1.bf16.msra.mxu0 0
    %2252 = vmatprep.subr.bf16.mxu0 0
    %2253 = vmatpush1.bf16.msra.mxu0 0
    %2254 = vmatprep.subr.bf16.mxu0 0
    %2255 = vmatpush1.bf16.msra.mxu0 0
    %2256 = vmatprep.subr.bf16.mxu0 0
    %2257 = vmatpush1.bf16.msra.mxu0 0
    %2258 = vmatprep.subr.bf16.mxu0 0
    %2259 = vmatpush1.bf16.msra.mxu0 0
    %2260 = vmatprep.subr.bf16.mxu0 0
    %2261 = vmatpush1.bf16.msra.mxu0 0
    %2262 = vmatprep.subr.bf16.mxu0 0
    %2263 = vmatpush1.bf16.msra.mxu0 0
    %2264 = vmatprep.mubr.bf16.mxu0 0
    %2265 = vmatmul.mubr.bf16.gmra.mrb[0].mxu0 %v2231
    %v2266 = vpop.f32.mrb[0].mxu0
    %v2267 = vadd.f32 0.0, %v2266
    %v2268 = vpop.f32.mrb[0].mxu0
    %v2269 = vadd.f32 0.0, %v2268
    %v2270 = vpop.f32.mrb[0].mxu0
    %v2271 = vpop.f32.mrb[0].mxu0
    %2272 = vdwg.mxu0
    %2273 = vmatprep.subr.bf16.mxu0 %v1901
    %2274 = vmatpush1.bf16.msra.mxu0 %v1900
    %2275 = vmatprep.subr.bf16.mxu0 %v1905
    %2276 = vmatpush1.bf16.msra.mxu0 %v1904
    %2277 = vmatprep.subr.bf16.mxu0 %v1909
    %2278 = vmatpush1.bf16.msra.mxu0 %v1908
    %2279 = vmatprep.subr.bf16.mxu0 %v1913
    %2280 = vmatpush1.bf16.msra.mxu0 %v1912
    %2281 = vmatprep.subr.bf16.mxu0 %v1917
    %2282 = vmatpush1.bf16.msra.mxu0 %v1916
    %2283 = vmatprep.subr.bf16.mxu0 %v1921
    %2284 = vmatpush1.bf16.msra.mxu0 %v1920
    %2285 = vmatprep.subr.bf16.mxu0 %v1925
    %2286 = vmatpush1.bf16.msra.mxu0 %v1924
    %2287 = vmatprep.subr.bf16.mxu0 %v1929
    %2288 = vmatpush1.bf16.msra.mxu0 %v1928
    %2289 = vmatprep.subr.bf16.mxu0 0
    %2290 = vmatpush1.bf16.msra.mxu0 0
    %2291 = vmatprep.subr.bf16.mxu0 0
    %2292 = vmatpush1.bf16.msra.mxu0 0
    %2293 = vmatprep.subr.bf16.mxu0 0
    %2294 = vmatpush1.bf16.msra.mxu0 0
    %2295 = vmatprep.subr.bf16.mxu0 0
    %2296 = vmatpush1.bf16.msra.mxu0 0
    %2297 = vmatprep.subr.bf16.mxu0 0
    %2298 = vmatpush1.bf16.msra.mxu0 0
    %2299 = vmatprep.subr.bf16.mxu0 0
    %2300 = vmatpush1.bf16.msra.mxu0 0
    %2301 = vmatprep.subr.bf16.mxu0 0
    %2302 = vmatpush1.bf16.msra.mxu0 0
    %2303 = vmatprep.subr.bf16.mxu0 0
    %2304 = vmatpush1.bf16.msra.mxu0 0
    %2305 = vmatprep.mubr.bf16.mxu0 0
    %2306 = vmatmul.mubr.bf16.gmra.mrb[0].mxu0 %v2231
    %v2307 = vpop.f32.mrb[0].mxu0
    %v2308 = vadd.f32 0.0, %v2307
    %v2309 = vpop.f32.mrb[0].mxu0
    %v2310 = vadd.f32 0.0, %v2309
    %v2311 = vpop.f32.mrb[0].mxu0
    %v2312 = vpop.f32.mrb[0].mxu0
    %2313 = vdwg.mxu0
    %v2314 = vadd.f32 %v2225, %v2267
    %v2315 = vadd.f32 %v2226, %v2269
    %v2316 = vadd.f32 %v2227, %v2308
    %v2317 = vadd.f32 %v2228, %v2310
    %v2318 = vxor.u32 %v2314, 2147483648
    %v2319 = vmul.f32 %v2318, 1.442695
    %v2320 = vpow.pop %v2319
    %v2321 = vadd.f32 %v2320, 1.0
    %v2322 = vrcp.pop %v2321
    %v2323 = vmul.f32 1.0, %v2322
    %v2324 = vxor.u32 %v2315, 2147483648
    %v2325 = vmul.f32 %v2324, 1.442695
    %v2326 = vpow.pop %v2325
    %v2327 = vadd.f32 %v2326, 1.0
    %v2328 = vrcp.pop %v2327
    %v2329 = vmul.f32 1.0, %v2328
    %v2330 = vtanh.pop %v2316
    %v2331 = vxor.u32 %v2317, 2147483648
    %v2332 = vmul.f32 %v2331, 1.442695
    %v2333 = vpow.pop %v2332
    %v2334 = vadd.f32 %v2333, 1.0
    %v2335 = vrcp.pop %v2334
    %v2336 = vmul.f32 1.0, %v2335
    %v2337 = vmul.f32 %v2329, %v2230
    %v2338 = vmul.f32 %v2323, %v2330
    %v2339 = vadd.f32 %v2337, %v2338
    %v2340 = vtanh.pop %v2339
    %v2341 = vmul.f32 %v2336, %v2340
    %v2342 = vsub.f32 %v2339, %v2230
    %v2343 = vmul.f32 %v655, %v2342
    %v2344 = vadd.f32 %v2230, %v2343
    %v2345 = vsub.f32 %v2341, %v2229
    %v2346 = vmul.f32 %v655, %v2345
    %v2347 = vadd.f32 %v2229, %v2346
    %2348 = vst [vmem:[#allocation5] sm:$0xff] %v2344
    %2349 = vst [vmem:[#allocation4] sm:$0xff] %v2347
    %v2350 = vld [vmem:[#allocation2 + $0x20] sm:$0xf0]
    %v2351 = vld [vmem:[#allocation2 + $0x28] sm:$0xf0]
    %v2352 = vld [vmem:[#allocation2 + $0x30] sm:$0xf0]
    %v2353 = vld [vmem:[#allocation2 + $0x38] sm:$0xf0]
    %v2358 = vrot.slane %v2350, 4
    %v2359 = vrot.slane %v2351, 4
    %v2360 = vrot.slane %v2352, 4
    %v2361 = vrot.slane %v2353, 4
    %v2366 = vunpack.c.l.bf16 %v2358
    %v2367 = vunpack.c.l.bf16 %v2359
    %v2368 = vunpack.c.l.bf16 %v2360
    %v2369 = vunpack.c.l.bf16 %v2361
    %v2370 = vld [vmem:[#allocation4] sm:$0xff]
    %v2371 = vld [vmem:[#allocation5] sm:$0xff]
    %v2372 = vpack.c.bf16 %v2370, %v2370
    %2373 = vmatprep.subr.bf16.mxu0 %v1899
    %2374 = vmatpush1.bf16.msra.mxu0 %v1898
    %2375 = vmatprep.subr.bf16.mxu0 %v1903
    %2376 = vmatpush1.bf16.msra.mxu0 %v1902
    %2377 = vmatprep.subr.bf16.mxu0 %v1907
    %2378 = vmatpush1.bf16.msra.mxu0 %v1906
    %2379 = vmatprep.subr.bf16.mxu0 %v1911
    %2380 = vmatpush1.bf16.msra.mxu0 %v1910
    %2381 = vmatprep.subr.bf16.mxu0 %v1915
    %2382 = vmatpush1.bf16.msra.mxu0 %v1914
    %2383 = vmatprep.subr.bf16.mxu0 %v1919
    %2384 = vmatpush1.bf16.msra.mxu0 %v1918
    %2385 = vmatprep.subr.bf16.mxu0 %v1923
    %2386 = vmatpush1.bf16.msra.mxu0 %v1922
    %2387 = vmatprep.subr.bf16.mxu0 %v1927
    %2388 = vmatpush1.bf16.msra.mxu0 %v1926
    %2389 = vmatprep.subr.bf16.mxu0 0
    %2390 = vmatpush1.bf16.msra.mxu0 0
    %2391 = vmatprep.subr.bf16.mxu0 0
    %2392 = vmatpush1.bf16.msra.mxu0 0
    %2393 = vmatprep.subr.bf16.mxu0 0
    %2394 = vmatpush1.bf16.msra.mxu0 0
    %2395 = vmatprep.subr.bf16.mxu0 0
    %2396 = vmatpush1.bf16.msra.mxu0 0
    %2397 = vmatprep.subr.bf16.mxu0 0
    %2398 = vmatpush1.bf16.msra.mxu0 0
    %2399 = vmatprep.subr.bf16.mxu0 0
    %2400 = vmatpush1.bf16.msra.mxu0 0
    %2401 = vmatprep.subr.bf16.mxu0 0
    %2402 = vmatpush1.bf16.msra.mxu0 0
    %2403 = vmatprep.subr.bf16.mxu0 0
    %2404 = vmatpush1.bf16.msra.mxu0 0
    %2405 = vmatprep.mubr.bf16.mxu0 0
    %2406 = vmatmul.mubr.bf16.gmra.mrb[0].mxu0 %v2372
    %v2407 = vpop.f32.mrb[0].mxu0
    %v2408 = vadd.f32 0.0, %v2407
    %v2409 = vpop.f32.mrb[0].mxu0
    %v2410 = vadd.f32 0.0, %v2409
    %v2411 = vpop.f32.mrb[0].mxu0
    %v2412 = vpop.f32.mrb[0].mxu0
    %2413 = vdwg.mxu0
    %2414 = vmatprep.subr.bf16.mxu0 %v1901
    %2415 = vmatpush1.bf16.msra.mxu0 %v1900
    %2416 = vmatprep.subr.bf16.mxu0 %v1905
    %2417 = vmatpush1.bf16.msra.mxu0 %v1904
    %2418 = vmatprep.subr.bf16.mxu0 %v1909
    %2419 = vmatpush1.bf16.msra.mxu0 %v1908
    %2420 = vmatprep.subr.bf16.mxu0 %v1913
    %2421 = vmatpush1.bf16.msra.mxu0 %v1912
    %2422 = vmatprep.subr.bf16.mxu0 %v1917
    %2423 = vmatpush1.bf16.msra.mxu0 %v1916
    %2424 = vmatprep.subr.bf16.mxu0 %v1921
    %2425 = vmatpush1.bf16.msra.mxu0 %v1920
    %2426 = vmatprep.subr.bf16.mxu0 %v1925
    %2427 = vmatpush1.bf16.msra.mxu0 %v1924
    %2428 = vmatprep.subr.bf16.mxu0 %v1929
    %2429 = vmatpush1.bf16.msra.mxu0 %v1928
    %2430 = vmatprep.subr.bf16.mxu0 0
    %2431 = vmatpush1.bf16.msra.mxu0 0
    %2432 = vmatprep.subr.bf16.mxu0 0
    %2433 = vmatpush1.bf16.msra.mxu0 0
    %2434 = vmatprep.subr.bf16.mxu0 0
    %2435 = vmatpush1.bf16.msra.mxu0 0
    %2436 = vmatprep.subr.bf16.mxu0 0
    %2437 = vmatpush1.bf16.msra.mxu0 0
    %2438 = vmatprep.subr.bf16.mxu0 0
    %2439 = vmatpush1.bf16.msra.mxu0 0
    %2440 = vmatprep.subr.bf16.mxu0 0
    %2441 = vmatpush1.bf16.msra.mxu0 0
    %2442 = vmatprep.subr.bf16.mxu0 0
    %2443 = vmatpush1.bf16.msra.mxu0 0
    %2444 = vmatprep.subr.bf16.mxu0 0
    %2445 = vmatpush1.bf16.msra.mxu0 0
    %2446 = vmatprep.mubr.bf16.mxu0 0
    %2447 = vmatmul.mubr.bf16.gmra.mrb[0].mxu0 %v2372
    %v2448 = vpop.f32.mrb[0].mxu0
    %v2449 = vadd.f32 0.0, %v2448
    %v2450 = vpop.f32.mrb[0].mxu0
    %v2451 = vadd.f32 0.0, %v2450
    %v2452 = vpop.f32.mrb[0].mxu0
    %v2453 = vpop.f32.mrb[0].mxu0
    %2454 = vdwg.mxu0
    %v2455 = vadd.f32 %v2366, %v2408
    %v2456 = vadd.f32 %v2367, %v2410
    %v2457 = vadd.f32 %v2368, %v2449
    %v2458 = vadd.f32 %v2369, %v2451
    %v2459 = vxor.u32 %v2455, 2147483648
    %v2460 = vmul.f32 %v2459, 1.442695
    %v2461 = vpow.pop %v2460
    %v2462 = vadd.f32 %v2461, 1.0
    %v2463 = vrcp.pop %v2462
    %v2464 = vmul.f32 1.0, %v2463
    %v2465 = vxor.u32 %v2456, 2147483648
    %v2466 = vmul.f32 %v2465, 1.442695
    %v2467 = vpow.pop %v2466
    %v2468 = vadd.f32 %v2467, 1.0
    %v2469 = vrcp.pop %v2468
    %v2470 = vmul.f32 1.0, %v2469
    %v2471 = vtanh.pop %v2457
    %v2472 = vxor.u32 %v2458, 2147483648
    %v2473 = vmul.f32 %v2472, 1.442695
    %v2474 = vpow.pop %v2473
    %v2475 = vadd.f32 %v2474, 1.0
    %v2476 = vrcp.pop %v2475
    %v2477 = vmul.f32 1.0, %v2476
    %v2478 = vmul.f32 %v2470, %v2371
    %v2479 = vmul.f32 %v2464, %v2471
    %v2480 = vadd.f32 %v2478, %v2479
    %v2481 = vtanh.pop %v2480
    %v2482 = vmul.f32 %v2477, %v2481
    %v2483 = vsub.f32 %v2480, %v2371
    %v2484 = vmul.f32 %v792, %v2483
    %v2485 = vadd.f32 %v2371, %v2484
    %v2486 = vsub.f32 %v2482, %v2370
    %v2487 = vmul.f32 %v792, %v2486
    %v2488 = vadd.f32 %v2370, %v2487
    %2489 = vst [vmem:[#allocation5] sm:$0xff] %v2485
    %2490 = vst [vmem:[#allocation4] sm:$0xff] %v2488
    %v2491 = vld [vmem:[#allocation2 + $0x40] sm:$0xf]
    %v2492 = vld [vmem:[#allocation2 + $0x48] sm:$0xf]
    %v2493 = vld [vmem:[#allocation2 + $0x50] sm:$0xf]
    %v2494 = vld [vmem:[#allocation2 + $0x58] sm:$0xf]
    %v2495 = vunpack.c.l.bf16 %v2491
    %v2496 = vunpack.c.l.bf16 %v2492
    %v2497 = vunpack.c.l.bf16 %v2493
    %v2498 = vunpack.c.l.bf16 %v2494
    %v2499 = vld [vmem:[#allocation4] sm:$0xff]
    %v2500 = vld [vmem:[#allocation5] sm:$0xff]
    %v2501 = vpack.c.bf16 %v2499, %v2499
    %2502 = vmatprep.subr.bf16.mxu0 %v1899
    %2503 = vmatpush1.bf16.msra.mxu0 %v1898
    %2504 = vmatprep.subr.bf16.mxu0 %v1903
    %2505 = vmatpush1.bf16.msra.mxu0 %v1902
    %2506 = vmatprep.subr.bf16.mxu0 %v1907
    %2507 = vmatpush1.bf16.msra.mxu0 %v1906
    %2508 = vmatprep.subr.bf16.mxu0 %v1911
    %2509 = vmatpush1.bf16.msra.mxu0 %v1910
    %2510 = vmatprep.subr.bf16.mxu0 %v1915
    %2511 = vmatpush1.bf16.msra.mxu0 %v1914
    %2512 = vmatprep.subr.bf16.mxu0 %v1919
    %2513 = vmatpush1.bf16.msra.mxu0 %v1918
    %2514 = vmatprep.subr.bf16.mxu0 %v1923
    %2515 = vmatpush1.bf16.msra.mxu0 %v1922
    %2516 = vmatprep.subr.bf16.mxu0 %v1927
    %2517 = vmatpush1.bf16.msra.mxu0 %v1926
    %2518 = vmatprep.subr.bf16.mxu0 0
    %2519 = vmatpush1.bf16.msra.mxu0 0
    %2520 = vmatprep.subr.bf16.mxu0 0
    %2521 = vmatpush1.bf16.msra.mxu0 0
    %2522 = vmatprep.subr.bf16.mxu0 0
    %2523 = vmatpush1.bf16.msra.mxu0 0
    %2524 = vmatprep.subr.bf16.mxu0 0
    %2525 = vmatpush1.bf16.msra.mxu0 0
    %2526 = vmatprep.subr.bf16.mxu0 0
    %2527 = vmatpush1.bf16.msra.mxu0 0
    %2528 = vmatprep.subr.bf16.mxu0 0
    %2529 = vmatpush1.bf16.msra.mxu0 0
    %2530 = vmatprep.subr.bf16.mxu0 0
    %2531 = vmatpush1.bf16.msra.mxu0 0
    %2532 = vmatprep.subr.bf16.mxu0 0
    %2533 = vmatpush1.bf16.msra.mxu0 0
    %2534 = vmatprep.mubr.bf16.mxu0 0
    %2535 = vmatmul.mubr.bf16.gmra.mrb[0].mxu0 %v2501
    %v2536 = vpop.f32.mrb[0].mxu0
    %v2537 = vadd.f32 0.0, %v2536
    %v2538 = vpop.f32.mrb[0].mxu0
    %v2539 = vadd.f32 0.0, %v2538
    %v2540 = vpop.f32.mrb[0].mxu0
    %v2541 = vpop.f32.mrb[0].mxu0
    %2542 = vdwg.mxu0
    %2543 = vmatprep.subr.bf16.mxu0 %v1901
    %2544 = vmatpush1.bf16.msra.mxu0 %v1900
    %2545 = vmatprep.subr.bf16.mxu0 %v1905
    %2546 = vmatpush1.bf16.msra.mxu0 %v1904
    %2547 = vmatprep.subr.bf16.mxu0 %v1909
    %2548 = vmatpush1.bf16.msra.mxu0 %v1908
    %2549 = vmatprep.subr.bf16.mxu0 %v1913
    %2550 = vmatpush1.bf16.msra.mxu0 %v1912
    %2551 = vmatprep.subr.bf16.mxu0 %v1917
    %2552 = vmatpush1.bf16.msra.mxu0 %v1916
    %2553 = vmatprep.subr.bf16.mxu0 %v1921
    %2554 = vmatpush1.bf16.msra.mxu0 %v1920
    %2555 = vmatprep.subr.bf16.mxu0 %v1925
    %2556 = vmatpush1.bf16.msra.mxu0 %v1924
    %2557 = vmatprep.subr.bf16.mxu0 %v1929
    %2558 = vmatpush1.bf16.msra.mxu0 %v1928
    %2559 = vmatprep.subr.bf16.mxu0 0
    %2560 = vmatpush1.bf16.msra.mxu0 0
    %2561 = vmatprep.subr.bf16.mxu0 0
    %2562 = vmatpush1.bf16.msra.mxu0 0
    %2563 = vmatprep.subr.bf16.mxu0 0
    %2564 = vmatpush1.bf16.msra.mxu0 0
    %2565 = vmatprep.subr.bf16.mxu0 0
    %2566 = vmatpush1.bf16.msra.mxu0 0
    %2567 = vmatprep.subr.bf16.mxu0 0
    %2568 = vmatpush1.bf16.msra.mxu0 0
    %2569 = vmatprep.subr.bf16.mxu0 0
    %2570 = vmatpush1.bf16.msra.mxu0 0
    %2571 = vmatprep.subr.bf16.mxu0 0
    %2572 = vmatpush1.bf16.msra.mxu0 0
    %2573 = vmatprep.subr.bf16.mxu0 0
    %2574 = vmatpush1.bf16.msra.mxu0 0
    %2575 = vmatprep.mubr.bf16.mxu0 0
    %2576 = vmatmul.mubr.bf16.gmra.mrb[0].mxu0 %v2501
    %v2577 = vpop.f32.mrb[0].mxu0
    %v2578 = vadd.f32 0.0, %v2577
    %v2579 = vpop.f32.mrb[0].mxu0
    %v2580 = vadd.f32 0.0, %v2579
    %v2581 = vpop.f32.mrb[0].mxu0
    %v2582 = vpop.f32.mrb[0].mxu0
    %2583 = vdwg.mxu0
    %v2584 = vadd.f32 %v2495, %v2537
    %v2585 = vadd.f32 %v2496, %v2539
    %v2586 = vadd.f32 %v2497, %v2578
    %v2587 = vadd.f32 %v2498, %v2580
    %v2588 = vxor.u32 %v2584, 2147483648
    %v2589 = vmul.f32 %v2588, 1.442695
    %v2590 = vpow.pop %v2589
    %v2591 = vadd.f32 %v2590, 1.0
    %v2592 = vrcp.pop %v2591
    %v2593 = vmul.f32 1.0, %v2592
    %v2594 = vxor.u32 %v2585, 2147483648
    %v2595 = vmul.f32 %v2594, 1.442695
    %v2596 = vpow.pop %v2595
    %v2597 = vadd.f32 %v2596, 1.0
    %v2598 = vrcp.pop %v2597
    %v2599 = vmul.f32 1.0, %v2598
    %v2600 = vtanh.pop %v2586
    %v2601 = vxor.u32 %v2587, 2147483648
    %v2602 = vmul.f32 %v2601, 1.442695
    %v2603 = vpow.pop %v2602
    %v2604 = vadd.f32 %v2603, 1.0
    %v2605 = vrcp.pop %v2604
    %v2606 = vmul.f32 1.0, %v2605
    %v2607 = vmul.f32 %v2599, %v2500
    %v2608 = vmul.f32 %v2593, %v2600
    %v2609 = vadd.f32 %v2607, %v2608
    %v2610 = vtanh.pop %v2609
    %v2611 = vmul.f32 %v2606, %v2610
    %v2612 = vsub.f32 %v2609, %v2500
    %v2613 = vmul.f32 %v932, %v2612
    %v2614 = vadd.f32 %v2500, %v2613
    %v2615 = vsub.f32 %v2611, %v2499
    %v2616 = vmul.f32 %v932, %v2615
    %v2617 = vadd.f32 %v2499, %v2616
    %2618 = vst [vmem:[#allocation5] sm:$0xff] %v2614
    %2619 = vst [vmem:[#allocation4] sm:$0xff] %v2617
    %v2620 = vld [vmem:[#allocation2 + $0x40] sm:$0xf0]
    %v2621 = vld [vmem:[#allocation2 + $0x48] sm:$0xf0]
    %v2622 = vld [vmem:[#allocation2 + $0x50] sm:$0xf0]
    %v2623 = vld [vmem:[#allocation2 + $0x58] sm:$0xf0]
    %v2628 = vrot.slane %v2620, 4
    %v2629 = vrot.slane %v2621, 4
    %v2630 = vrot.slane %v2622, 4
    %v2631 = vrot.slane %v2623, 4
    %v2636 = vunpack.c.l.bf16 %v2628
    %v2637 = vunpack.c.l.bf16 %v2629
    %v2638 = vunpack.c.l.bf16 %v2630
    %v2639 = vunpack.c.l.bf16 %v2631
    %v2640 = vld [vmem:[#allocation4] sm:$0xff]
    %v2641 = vld [vmem:[#allocation5] sm:$0xff]
    %v2642 = vpack.c.bf16 %v2640, %v2640
    %2643 = vmatprep.subr.bf16.mxu0 %v1899
    %2644 = vmatpush1.bf16.msra.mxu0 %v1898
    %2645 = vmatprep.subr.bf16.mxu0 %v1903
    %2646 = vmatpush1.bf16.msra.mxu0 %v1902
    %2647 = vmatprep.subr.bf16.mxu0 %v1907
    %2648 = vmatpush1.bf16.msra.mxu0 %v1906
    %2649 = vmatprep.subr.bf16.mxu0 %v1911
    %2650 = vmatpush1.bf16.msra.mxu0 %v1910
    %2651 = vmatprep.subr.bf16.mxu0 %v1915
    %2652 = vmatpush1.bf16.msra.mxu0 %v1914
    %2653 = vmatprep.subr.bf16.mxu0 %v1919
    %2654 = vmatpush1.bf16.msra.mxu0 %v1918
    %2655 = vmatprep.subr.bf16.mxu0 %v1923
    %2656 = vmatpush1.bf16.msra.mxu0 %v1922
    %2657 = vmatprep.subr.bf16.mxu0 %v1927
    %2658 = vmatpush1.bf16.msra.mxu0 %v1926
    %2659 = vmatprep.subr.bf16.mxu0 0
    %2660 = vmatpush1.bf16.msra.mxu0 0
    %2661 = vmatprep.subr.bf16.mxu0 0
    %2662 = vmatpush1.bf16.msra.mxu0 0
    %2663 = vmatprep.subr.bf16.mxu0 0
    %2664 = vmatpush1.bf16.msra.mxu0 0
    %2665 = vmatprep.subr.bf16.mxu0 0
    %2666 = vmatpush1.bf16.msra.mxu0 0
    %2667 = vmatprep.subr.bf16.mxu0 0
    %2668 = vmatpush1.bf16.msra.mxu0 0
    %2669 = vmatprep.subr.bf16.mxu0 0
    %2670 = vmatpush1.bf16.msra.mxu0 0
    %2671 = vmatprep.subr.bf16.mxu0 0
    %2672 = vmatpush1.bf16.msra.mxu0 0
    %2673 = vmatprep.subr.bf16.mxu0 0
    %2674 = vmatpush1.bf16.msra.mxu0 0
    %2675 = vmatprep.mubr.bf16.mxu0 0
    %2676 = vmatmul.mubr.bf16.gmra.mrb[0].mxu0 %v2642
    %v2677 = vpop.f32.mrb[0].mxu0
    %v2678 = vadd.f32 0.0, %v2677
    %v2679 = vpop.f32.mrb[0].mxu0
    %v2680 = vadd.f32 0.0, %v2679
    %v2681 = vpop.f32.mrb[0].mxu0
    %v2682 = vpop.f32.mrb[0].mxu0
    %2683 = vdwg.mxu0
    %2684 = vmatprep.subr.bf16.mxu0 %v1901
    %2685 = vmatpush1.bf16.msra.mxu0 %v1900
    %2686 = vmatprep.subr.bf16.mxu0 %v1905
    %2687 = vmatpush1.bf16.msra.mxu0 %v1904
    %2688 = vmatprep.subr.bf16.mxu0 %v1909
    %2689 = vmatpush1.bf16.msra.mxu0 %v1908
    %2690 = vmatprep.subr.bf16.mxu0 %v1913
    %2691 = vmatpush1.bf16.msra.mxu0 %v1912
    %2692 = vmatprep.subr.bf16.mxu0 %v1917
    %2693 = vmatpush1.bf16.msra.mxu0 %v1916
    %2694 = vmatprep.subr.bf16.mxu0 %v1921
    %2695 = vmatpush1.bf16.msra.mxu0 %v1920
    %2696 = vmatprep.subr.bf16.mxu0 %v1925
    %2697 = vmatpush1.bf16.msra.mxu0 %v1924
    %2698 = vmatprep.subr.bf16.mxu0 %v1929
    %2699 = vmatpush1.bf16.msra.mxu0 %v1928
    %2700 = vmatprep.subr.bf16.mxu0 0
    %2701 = vmatpush1.bf16.msra.mxu0 0
    %2702 = vmatprep.subr.bf16.mxu0 0
    %2703 = vmatpush1.bf16.msra.mxu0 0
    %2704 = vmatprep.subr.bf16.mxu0 0
    %2705 = vmatpush1.bf16.msra.mxu0 0
    %2706 = vmatprep.subr.bf16.mxu0 0
    %2707 = vmatpush1.bf16.msra.mxu0 0
    %2708 = vmatprep.subr.bf16.mxu0 0
    %2709 = vmatpush1.bf16.msra.mxu0 0
    %2710 = vmatprep.subr.bf16.mxu0 0
    %2711 = vmatpush1.bf16.msra.mxu0 0
    %2712 = vmatprep.subr.bf16.mxu0 0
    %2713 = vmatpush1.bf16.msra.mxu0 0
    %2714 = vmatprep.subr.bf16.mxu0 0
    %2715 = vmatpush1.bf16.msra.mxu0 0
    %2716 = vmatprep.mubr.bf16.mxu0 0
    %2717 = vmatmul.mubr.bf16.gmra.mrb[0].mxu0 %v2642
    %v2718 = vpop.f32.mrb[0].mxu0
    %v2719 = vadd.f32 0.0, %v2718
    %v2720 = vpop.f32.mrb[0].mxu0
    %v2721 = vadd.f32 0.0, %v2720
    %v2722 = vpop.f32.mrb[0].mxu0
    %v2723 = vpop.f32.mrb[0].mxu0
    %2724 = vdwg.mxu0
    %v2725 = vadd.f32 %v2636, %v2678
    %v2726 = vadd.f32 %v2637, %v2680
    %v2727 = vadd.f32 %v2638, %v2719
    %v2728 = vadd.f32 %v2639, %v2721
    %v2729 = vxor.u32 %v2725, 2147483648
    %v2730 = vmul.f32 %v2729, 1.442695
    %v2731 = vpow.pop %v2730
    %v2732 = vadd.f32 %v2731, 1.0
    %v2733 = vrcp.pop %v2732
    %v2734 = vmul.f32 1.0, %v2733
    %v2735 = vxor.u32 %v2726, 2147483648
    %v2736 = vmul.f32 %v2735, 1.442695
    %v2737 = vpow.pop %v2736
    %v2738 = vadd.f32 %v2737, 1.0
    %v2739 = vrcp.pop %v2738
    %v2740 = vmul.f32 1.0, %v2739
    %v2741 = vtanh.pop %v2727
    %v2742 = vxor.u32 %v2728, 2147483648
    %v2743 = vmul.f32 %v2742, 1.442695
    %v2744 = vpow.pop %v2743
    %v2745 = vadd.f32 %v2744, 1.0
    %v2746 = vrcp.pop %v2745
    %v2747 = vmul.f32 1.0, %v2746
    %v2748 = vmul.f32 %v2740, %v2641
    %v2749 = vmul.f32 %v2734, %v2741
    %v2750 = vadd.f32 %v2748, %v2749
    %v2751 = vtanh.pop %v2750
    %v2752 = vmul.f32 %v2747, %v2751
    %v2753 = vsub.f32 %v2750, %v2641
    %v2754 = vmul.f32 %v1069, %v2753
    %v2755 = vadd.f32 %v2641, %v2754
    %v2756 = vsub.f32 %v2752, %v2640
    %v2757 = vmul.f32 %v1069, %v2756
    %v2758 = vadd.f32 %v2640, %v2757
    %2759 = vst [vmem:[#allocation5] sm:$0xff] %v2755
    %2760 = vst [vmem:[#allocation4] sm:$0xff] %v2758
    %v2761 = vld [vmem:[#allocation2 + $0x60] sm:$0xf]
    %v2762 = vld [vmem:[#allocation2 + $0x68] sm:$0xf]
    %v2763 = vld [vmem:[#allocation2 + $0x70] sm:$0xf]
    %v2764 = vld [vmem:[#allocation2 + $0x78] sm:$0xf]
    %v2765 = vunpack.c.l.bf16 %v2761
    %v2766 = vunpack.c.l.bf16 %v2762
    %v2767 = vunpack.c.l.bf16 %v2763
    %v2768 = vunpack.c.l.bf16 %v2764
    %v2769 = vld [vmem:[#allocation4] sm:$0xff]
    %v2770 = vld [vmem:[#allocation5] sm:$0xff]
    %v2771 = vpack.c.bf16 %v2769, %v2769
    %2772 = vmatprep.subr.bf16.mxu0 %v1899
    %2773 = vmatpush1.bf16.msra.mxu0 %v1898
    %2774 = vmatprep.subr.bf16.mxu0 %v1903
    %2775 = vmatpush1.bf16.msra.mxu0 %v1902
    %2776 = vmatprep.subr.bf16.mxu0 %v1907
    %2777 = vmatpush1.bf16.msra.mxu0 %v1906
    %2778 = vmatprep.subr.bf16.mxu0 %v1911
    %2779 = vmatpush1.bf16.msra.mxu0 %v1910
    %2780 = vmatprep.subr.bf16.mxu0 %v1915
    %2781 = vmatpush1.bf16.msra.mxu0 %v1914
    %2782 = vmatprep.subr.bf16.mxu0 %v1919
    %2783 = vmatpush1.bf16.msra.mxu0 %v1918
    %2784 = vmatprep.subr.bf16.mxu0 %v1923
    %2785 = vmatpush1.bf16.msra.mxu0 %v1922
    %2786 = vmatprep.subr.bf16.mxu0 %v1927
    %2787 = vmatpush1.bf16.msra.mxu0 %v1926
    %2788 = vmatprep.subr.bf16.mxu0 0
    %2789 = vmatpush1.bf16.msra.mxu0 0
    %2790 = vmatprep.subr.bf16.mxu0 0
    %2791 = vmatpush1.bf16.msra.mxu0 0
    %2792 = vmatprep.subr.bf16.mxu0 0
    %2793 = vmatpush1.bf16.msra.mxu0 0
    %2794 = vmatprep.subr.bf16.mxu0 0
    %2795 = vmatpush1.bf16.msra.mxu0 0
    %2796 = vmatprep.subr.bf16.mxu0 0
    %2797 = vmatpush1.bf16.msra.mxu0 0
    %2798 = vmatprep.subr.bf16.mxu0 0
    %2799 = vmatpush1.bf16.msra.mxu0 0
    %2800 = vmatprep.subr.bf16.mxu0 0
    %2801 = vmatpush1.bf16.msra.mxu0 0
    %2802 = vmatprep.subr.bf16.mxu0 0
    %2803 = vmatpush1.bf16.msra.mxu0 0
    %2804 = vmatprep.mubr.bf16.mxu0 0
    %2805 = vmatmul.mubr.bf16.gmra.mrb[0].mxu0 %v2771
    %v2806 = vpop.f32.mrb[0].mxu0
    %v2807 = vadd.f32 0.0, %v2806
    %v2808 = vpop.f32.mrb[0].mxu0
    %v2809 = vadd.f32 0.0, %v2808
    %v2810 = vpop.f32.mrb[0].mxu0
    %v2811 = vpop.f32.mrb[0].mxu0
    %2812 = vdwg.mxu0
    %2813 = vmatprep.subr.bf16.mxu0 %v1901
    %2814 = vmatpush1.bf16.msra.mxu0 %v1900
    %2815 = vmatprep.subr.bf16.mxu0 %v1905
    %2816 = vmatpush1.bf16.msra.mxu0 %v1904
    %2817 = vmatprep.subr.bf16.mxu0 %v1909
    %2818 = vmatpush1.bf16.msra.mxu0 %v1908
    %2819 = vmatprep.subr.bf16.mxu0 %v1913
    %2820 = vmatpush1.bf16.msra.mxu0 %v1912
    %2821 = vmatprep.subr.bf16.mxu0 %v1917
    %2822 = vmatpush1.bf16.msra.mxu0 %v1916
    %2823 = vmatprep.subr.bf16.mxu0 %v1921
    %2824 = vmatpush1.bf16.msra.mxu0 %v1920
    %2825 = vmatprep.subr.bf16.mxu0 %v1925
    %2826 = vmatpush1.bf16.msra.mxu0 %v1924
    %2827 = vmatprep.subr.bf16.mxu0 %v1929
    %2828 = vmatpush1.bf16.msra.mxu0 %v1928
    %2829 = vmatprep.subr.bf16.mxu0 0
    %2830 = vmatpush1.bf16.msra.mxu0 0
    %2831 = vmatprep.subr.bf16.mxu0 0
    %2832 = vmatpush1.bf16.msra.mxu0 0
    %2833 = vmatprep.subr.bf16.mxu0 0
    %2834 = vmatpush1.bf16.msra.mxu0 0
    %2835 = vmatprep.subr.bf16.mxu0 0
    %2836 = vmatpush1.bf16.msra.mxu0 0
    %2837 = vmatprep.subr.bf16.mxu0 0
    %2838 = vmatpush1.bf16.msra.mxu0 0
    %2839 = vmatprep.subr.bf16.mxu0 0
    %2840 = vmatpush1.bf16.msra.mxu0 0
    %2841 = vmatprep.subr.bf16.mxu0 0
    %2842 = vmatpush1.bf16.msra.mxu0 0
    %2843 = vmatprep.subr.bf16.mxu0 0
    %2844 = vmatpush1.bf16.msra.mxu0 0
    %2845 = vmatprep.mubr.bf16.mxu0 0
    %2846 = vmatmul.mubr.bf16.gmra.mrb[0].mxu0 %v2771
    %v2847 = vpop.f32.mrb[0].mxu0
    %v2848 = vadd.f32 0.0, %v2847
    %v2849 = vpop.f32.mrb[0].mxu0
    %v2850 = vadd.f32 0.0, %v2849
    %v2851 = vpop.f32.mrb[0].mxu0
    %v2852 = vpop.f32.mrb[0].mxu0
    %2853 = vdwg.mxu0
    %v2854 = vadd.f32 %v2765, %v2807
    %v2855 = vadd.f32 %v2766, %v2809
    %v2856 = vadd.f32 %v2767, %v2848
    %v2857 = vadd.f32 %v2768, %v2850
    %v2858 = vxor.u32 %v2854, 2147483648
    %v2859 = vmul.f32 %v2858, 1.442695
    %v2860 = vpow.pop %v2859
    %v2861 = vadd.f32 %v2860, 1.0
    %v2862 = vrcp.pop %v2861
    %v2863 = vmul.f32 1.0, %v2862
    %v2864 = vxor.u32 %v2855, 2147483648
    %v2865 = vmul.f32 %v2864, 1.442695
    %v2866 = vpow.pop %v2865
    %v2867 = vadd.f32 %v2866, 1.0
    %v2868 = vrcp.pop %v2867
    %v2869 = vmul.f32 1.0, %v2868
    %v2870 = vtanh.pop %v2856
    %v2871 = vxor.u32 %v2857, 2147483648
    %v2872 = vmul.f32 %v2871, 1.442695
    %v2873 = vpow.pop %v2872
    %v2874 = vadd.f32 %v2873, 1.0
    %v2875 = vrcp.pop %v2874
    %v2876 = vmul.f32 1.0, %v2875
    %v2877 = vmul.f32 %v2869, %v2770
    %v2878 = vmul.f32 %v2863, %v2870
    %v2879 = vadd.f32 %v2877, %v2878
    %v2880 = vtanh.pop %v2879
    %v2881 = vmul.f32 %v2876, %v2880
    %v2882 = vsub.f32 %v2879, %v2770
    %v2883 = vmul.f32 %v1209, %v2882
    %v2884 = vadd.f32 %v2770, %v2883
    %v2885 = vsub.f32 %v2881, %v2769
    %v2886 = vmul.f32 %v1209, %v2885
    %v2887 = vadd.f32 %v2769, %v2886
    %2888 = vst [vmem:[#allocation5] sm:$0xff] %v2884
    %2889 = vst [vmem:[#allocation4] sm:$0xff] %v2887
    %v2890 = vld [vmem:[#allocation2 + $0x60] sm:$0xf0]
    %v2891 = vld [vmem:[#allocation2 + $0x68] sm:$0xf0]
    %v2892 = vld [vmem:[#allocation2 + $0x70] sm:$0xf0]
    %v2893 = vld [vmem:[#allocation2 + $0x78] sm:$0xf0]
    %v2898 = vrot.slane %v2890, 4
    %v2899 = vrot.slane %v2891, 4
    %v2900 = vrot.slane %v2892, 4
    %v2901 = vrot.slane %v2893, 4
    %v2906 = vunpack.c.l.bf16 %v2898
    %v2907 = vunpack.c.l.bf16 %v2899
    %v2908 = vunpack.c.l.bf16 %v2900
    %v2909 = vunpack.c.l.bf16 %v2901
    %v2910 = vld [vmem:[#allocation4] sm:$0xff]
    %v2911 = vld [vmem:[#allocation5] sm:$0xff]
    %v2912 = vpack.c.bf16 %v2910, %v2910
    %2913 = vmatprep.subr.bf16.mxu0 %v1899
    %2914 = vmatpush1.bf16.msra.mxu0 %v1898
    %2915 = vmatprep.subr.bf16.mxu0 %v1903
    %2916 = vmatpush1.bf16.msra.mxu0 %v1902
    %2917 = vmatprep.subr.bf16.mxu0 %v1907
    %2918 = vmatpush1.bf16.msra.mxu0 %v1906
    %2919 = vmatprep.subr.bf16.mxu0 %v1911
    %2920 = vmatpush1.bf16.msra.mxu0 %v1910
    %2921 = vmatprep.subr.bf16.mxu0 %v1915
    %2922 = vmatpush1.bf16.msra.mxu0 %v1914
    %2923 = vmatprep.subr.bf16.mxu0 %v1919
    %2924 = vmatpush1.bf16.msra.mxu0 %v1918
    %2925 = vmatprep.subr.bf16.mxu0 %v1923
    %2926 = vmatpush1.bf16.msra.mxu0 %v1922
    %2927 = vmatprep.subr.bf16.mxu0 %v1927
    %2928 = vmatpush1.bf16.msra.mxu0 %v1926
    %2929 = vmatprep.subr.bf16.mxu0 0
    %2930 = vmatpush1.bf16.msra.mxu0 0
    %2931 = vmatprep.subr.bf16.mxu0 0
    %2932 = vmatpush1.bf16.msra.mxu0 0
    %2933 = vmatprep.subr.bf16.mxu0 0
    %2934 = vmatpush1.bf16.msra.mxu0 0
    %2935 = vmatprep.subr.bf16.mxu0 0
    %2936 = vmatpush1.bf16.msra.mxu0 0
    %2937 = vmatprep.subr.bf16.mxu0 0
    %2938 = vmatpush1.bf16.msra.mxu0 0
    %2939 = vmatprep.subr.bf16.mxu0 0
    %2940 = vmatpush1.bf16.msra.mxu0 0
    %2941 = vmatprep.subr.bf16.mxu0 0
    %2942 = vmatpush1.bf16.msra.mxu0 0
    %2943 = vmatprep.subr.bf16.mxu0 0
    %2944 = vmatpush1.bf16.msra.mxu0 0
    %2945 = vmatprep.mubr.bf16.mxu0 0
    %2946 = vmatmul.mubr.bf16.gmra.mrb[0].mxu0 %v2912
    %v2947 = vpop.f32.mrb[0].mxu0
    %v2948 = vadd.f32 0.0, %v2947
    %v2949 = vpop.f32.mrb[0].mxu0
    %v2950 = vadd.f32 0.0, %v2949
    %v2951 = vpop.f32.mrb[0].mxu0
    %v2952 = vpop.f32.mrb[0].mxu0
    %2953 = vdwg.mxu0
    %2954 = vmatprep.subr.bf16.mxu0 %v1901
    %2955 = vmatpush1.bf16.msra.mxu0 %v1900
    %2956 = vmatprep.subr.bf16.mxu0 %v1905
    %2957 = vmatpush1.bf16.msra.mxu0 %v1904
    %2958 = vmatprep.subr.bf16.mxu0 %v1909
    %2959 = vmatpush1.bf16.msra.mxu0 %v1908
    %2960 = vmatprep.subr.bf16.mxu0 %v1913
    %2961 = vmatpush1.bf16.msra.mxu0 %v1912
    %2962 = vmatprep.subr.bf16.mxu0 %v1917
    %2963 = vmatpush1.bf16.msra.mxu0 %v1916
    %2964 = vmatprep.subr.bf16.mxu0 %v1921
    %2965 = vmatpush1.bf16.msra.mxu0 %v1920
    %2966 = vmatprep.subr.bf16.mxu0 %v1925
    %2967 = vmatpush1.bf16.msra.mxu0 %v1924
    %2968 = vmatprep.subr.bf16.mxu0 %v1929
    %2969 = vmatpush1.bf16.msra.mxu0 %v1928
    %2970 = vmatprep.subr.bf16.mxu0 0
    %2971 = vmatpush1.bf16.msra.mxu0 0
    %2972 = vmatprep.subr.bf16.mxu0 0
    %2973 = vmatpush1.bf16.msra.mxu0 0
    %2974 = vmatprep.subr.bf16.mxu0 0
    %2975 = vmatpush1.bf16.msra.mxu0 0
    %2976 = vmatprep.subr.bf16.mxu0 0
    %2977 = vmatpush1.bf16.msra.mxu0 0
    %2978 = vmatprep.subr.bf16.mxu0 0
    %2979 = vmatpush1.bf16.msra.mxu0 0
    %2980 = vmatprep.subr.bf16.mxu0 0
    %2981 = vmatpush1.bf16.msra.mxu0 0
    %2982 = vmatprep.subr.bf16.mxu0 0
    %2983 = vmatpush1.bf16.msra.mxu0 0
    %2984 = vmatprep.subr.bf16.mxu0 0
    %2985 = vmatpush1.bf16.msra.mxu0 0
    %2986 = vmatprep.mubr.bf16.mxu0 0
    %2987 = vmatmul.mubr.bf16.gmra.mrb[0].mxu0 %v2912
    %v2988 = vpop.f32.mrb[0].mxu0
    %v2989 = vadd.f32 0.0, %v2988
    %v2990 = vpop.f32.mrb[0].mxu0
    %v2991 = vadd.f32 0.0, %v2990
    %v2992 = vpop.f32.mrb[0].mxu0
    %v2993 = vpop.f32.mrb[0].mxu0
    %2994 = vdwg.mxu0
    %v2995 = vadd.f32 %v2906, %v2948
    %v2996 = vadd.f32 %v2907, %v2950
    %v2997 = vadd.f32 %v2908, %v2989
    %v2998 = vadd.f32 %v2909, %v2991
    %v2999 = vxor.u32 %v2995, 2147483648
    %v3000 = vmul.f32 %v2999, 1.442695
    %v3001 = vpow.pop %v3000
    %v3002 = vadd.f32 %v3001, 1.0
    %v3003 = vrcp.pop %v3002
    %v3004 = vmul.f32 1.0, %v3003
    %v3005 = vxor.u32 %v2996, 2147483648
    %v3006 = vmul.f32 %v3005, 1.442695
    %v3007 = vpow.pop %v3006
    %v3008 = vadd.f32 %v3007, 1.0
    %v3009 = vrcp.pop %v3008
    %v3010 = vmul.f32 1.0, %v3009
    %v3011 = vtanh.pop %v2997
    %v3012 = vxor.u32 %v2998, 2147483648
    %v3013 = vmul.f32 %v3012, 1.442695
    %v3014 = vpow.pop %v3013
    %v3015 = vadd.f32 %v3014, 1.0
    %v3016 = vrcp.pop %v3015
    %v3017 = vmul.f32 1.0, %v3016
    %v3018 = vmul.f32 %v3010, %v2911
    %v3019 = vmul.f32 %v3004, %v3011
    %v3020 = vadd.f32 %v3018, %v3019
    %v3021 = vtanh.pop %v3020
    %v3022 = vmul.f32 %v3017, %v3021
    %v3023 = vsub.f32 %v3020, %v2911
    %v3024 = vmul.f32 %v1346, %v3023
    %v3025 = vadd.f32 %v2911, %v3024
    %v3026 = vsub.f32 %v3022, %v2910
    %v3027 = vmul.f32 %v1346, %v3026
    %v3028 = vadd.f32 %v2910, %v3027
    %3029 = vst [vmem:[#allocation5] sm:$0xff] %v3025
    %3030 = vst [vmem:[#allocation4] sm:$0xff] %v3028
    %v3031 = vld [vmem:[#allocation4] sm:$0xff]
    %v3032 = vpack.c.bf16 %v3031, %v3031
    %v3033 = vld [vmem:[%s6] sm:$0xf]
    %v3034 = vld [vmem:[%s6 + $0x4] sm:$0xf]
    %v3035 = vld [vmem:[%s6 + $0x8] sm:$0xf]
    %v3036 = vld [vmem:[%s6 + $0xc] sm:$0xf]
    %v3037 = vld [vmem:[%s6 + $0x10] sm:$0xf]
    %v3038 = vld [vmem:[%s6 + $0x14] sm:$0xf]
    %v3039 = vld [vmem:[%s6 + $0x18] sm:$0xf]
    %v3040 = vld [vmem:[%s6 + $0x1c] sm:$0xf]
    %v3041 = vld [vmem:[%s6 + $0x20] sm:$0xf]
    %v3042 = vld [vmem:[%s6 + $0x24] sm:$0xf]
    %v3043 = vld [vmem:[%s6 + $0x28] sm:$0xf]
    %v3044 = vld [vmem:[%s6 + $0x2c] sm:$0xf]
    %v3045 = vld [vmem:[%s6 + $0x30] sm:$0xf]
    %v3046 = vld [vmem:[%s6 + $0x34] sm:$0xf]
    %v3047 = vld [vmem:[%s6 + $0x38] sm:$0xf]
    %v3048 = vld [vmem:[%s6 + $0x3c] sm:$0xf]
    %v3049 = vld [vmem:[%s7] sm:$0x1]
    %v3051 = vlaneseq
    %v3052 = vshrl.u32 %v3051, 7
    %v3053 = vsub.s32 0, %v3052
    %v3054 = vrot.slane %v3049, %v3053
    %v3072 = vunpack.c.l.b16 %v3033
    %v3073 = vunpack.c.l.b16 %v3034
    %v3074 = vunpack.c.l.b16 %v3035
    %v3075 = vunpack.c.l.b16 %v3036
    %v3076 = vunpack.c.l.b16 %v3037
    %v3077 = vunpack.c.l.b16 %v3038
    %v3078 = vunpack.c.l.b16 %v3039
    %v3079 = vunpack.c.l.b16 %v3040
    %v3080 = vunpack.c.l.b16 %v3041
    %v3081 = vunpack.c.l.b16 %v3042
    %v3082 = vunpack.c.l.b16 %v3043
    %v3083 = vunpack.c.l.b16 %v3044
    %v3084 = vunpack.c.l.b16 %v3045
    %v3085 = vunpack.c.l.b16 %v3046
    %v3086 = vunpack.c.l.b16 %v3047
    %v3087 = vunpack.c.l.b16 %v3048
    %v3088 = vpack.c.b16 %v3073, %v3072
    %v3089 = vpack.c.b16 %v3075, %v3074
    %v3090 = vpack.c.b16 %v3077, %v3076
    %v3091 = vpack.c.b16 %v3079, %v3078
    %v3092 = vpack.c.b16 %v3081, %v3080
    %v3093 = vpack.c.b16 %v3083, %v3082
    %v3094 = vpack.c.b16 %v3085, %v3084
    %v3095 = vpack.c.b16 %v3087, %v3086
    %3104 = vmatprep.subr.bf16.mxu0 0
    %3105 = vmatpush1.bf16.msra.mxu0 %v3088
    %3106 = vmatprep.subr.bf16.mxu0 0
    %3107 = vmatpush1.bf16.msra.mxu0 %v3089
    %3108 = vmatprep.subr.bf16.mxu0 0
    %3109 = vmatpush1.bf16.msra.mxu0 %v3090
    %3110 = vmatprep.subr.bf16.mxu0 0
    %3111 = vmatpush1.bf16.msra.mxu0 %v3091
    %3112 = vmatprep.subr.bf16.mxu0 0
    %3113 = vmatpush1.bf16.msra.mxu0 %v3092
    %3114 = vmatprep.subr.bf16.mxu0 0
    %3115 = vmatpush1.bf16.msra.mxu0 %v3093
    %3116 = vmatprep.subr.bf16.mxu0 0
    %3117 = vmatpush1.bf16.msra.mxu0 %v3094
    %3118 = vmatprep.subr.bf16.mxu0 0
    %3119 = vmatpush1.bf16.msra.mxu0 %v3095
    %3120 = vmatprep.subr.bf16.mxu0 0
    %3121 = vmatpush1.bf16.msra.mxu0 0
    %3122 = vmatprep.subr.bf16.mxu0 0
    %3123 = vmatpush1.bf16.msra.mxu0 0
    %3124 = vmatprep.subr.bf16.mxu0 0
    %3125 = vmatpush1.bf16.msra.mxu0 0
    %3126 = vmatprep.subr.bf16.mxu0 0
    %3127 = vmatpush1.bf16.msra.mxu0 0
    %3128 = vmatprep.subr.bf16.mxu0 0
    %3129 = vmatpush1.bf16.msra.mxu0 0
    %3130 = vmatprep.subr.bf16.mxu0 0
    %3131 = vmatpush1.bf16.msra.mxu0 0
    %3132 = vmatprep.subr.bf16.mxu0 0
    %3133 = vmatpush1.bf16.msra.mxu0 0
    %3134 = vmatprep.subr.bf16.mxu0 0
    %3135 = vmatpush1.bf16.msra.mxu0 0
    %3136 = vmatprep.mubr.bf16.mxu0 0
    %3137 = vmatmul.mubr.bf16.gmra.mrb[0].mxu0 %v3032
    %v3138 = vpop.f32.mrb[0].mxu0
    %v3139 = vadd.f32 %v3054, %v3138
    %v3140 = vpop.f32.mrb[0].mxu0
    %v3141 = vpop.f32.mrb[0].mxu0
    %v3142 = vpop.f32.mrb[0].mxu0
    %3143 = vdwg.mxu0
    %3144 = vst [vmem:[%s8] sm:$0xff] %v3139
    // Predicated region
    $region42: #{rnn_forward.1} parent=1 // pred_check
      _
    $region43: #{rnn_forward.1} parent=1 // pred_check_branch
      %3146 = sbr.rel (0) target = $region45
    $region44: #{rnn_forward.1} parent=1 // pred_region
      _
    $region45: #{rnn_forward.1} parent=1 // pred_fallthru
      _
    // Predicated region
    $region46: #{rnn_forward.1} parent=1 // pred_check
      _
    $region47: #{rnn_forward.1} parent=1 // pred_check_branch
      %3148 = sbr.rel (0) target = $region49
    $region48: #{rnn_forward.1} parent=1 // pred_region
      _
    $region49: #{rnn_forward.1} parent=1 // pred_fallthru
      _
    %3149 = vsyncpa [#allocation7], 1
    %3150 = vsyncpa [#allocation9], 1

</llo_original>
